<compile_context>
chip_gen: v5e
topology: v5e:2x2
jax: 0.10.0
libtpu: 0.0.40
codegen_flags: <defaults>
</compile_context>

<pallas_src>
import math

import numpy as np
import jax
import jax.numpy as jnp
from jax.experimental import pallas as pl


# ---------------------------------------------------------------------------
# Model configuration
# ---------------------------------------------------------------------------
LB, CM, SB, NSIZE = 4, 1, 8, 16
NIN, NOUT = 4, 3
C_IN = 3
C_SPLAT = CM * LB             # 4   (splat conv output channels)
C_G = 8 * CM * LB             # 32  (gconv / local channels)
C_OUT = LB * NOUT * NIN       # 48  (conv_out channels)
H1 = NSIZE // 2               # 8   (splat output spatial == spatial_bin)
H2 = NSIZE // 4               # 4   (gconv output spatial)
RW = H1 * C_G                 # 256 (one output row: 8 px * 32 ch)

# consolidated-bias layout (lane-aligned segment starts)
N_B1 = H1 * H1 * C_SPLAT      # 256
N_B23 = H2 * H2 * C_G + H1 * H1 * C_G   # 512 + 2048 = 2560
N_BG0 = 32 * CM * LB          # 128
N_BG1 = 16 * CM * LB          # 64
N_BG2 = H1 * C_G              # 256
N_BOUT = H1 * C_OUT           # 384
OFF_B1 = 0
OFF_B23 = OFF_B1 + N_B1                      # 256
OFF_BG0 = OFF_B23 + N_B23                    # 2816
OFF_BG1 = OFF_BG0 + N_BG0                    # 2944
OFF_BG2 = OFF_BG1 + 128                      # 3072 (bg1 padded to 128 lanes)
OFF_BOUT = OFF_BG2 + N_BG2                   # 3328
BIAS_TOTAL = OFF_BOUT + N_BOUT               # 3712


# ---------------------------------------------------------------------------
# Raw ("PyTorch-layout") parameter init
# ---------------------------------------------------------------------------
def init_coeffs_params(key):
    keys = iter(jax.random.split(key, 20))

    def conv_p(cout, cin, k, use_bias=True):
        scale = 1.0 / math.sqrt(k * k * cin)
        w = jax.random.normal(next(keys), (cout, cin, k, k), jnp.float32) * scale
        b = (jax.random.normal(next(keys), (cout,), jnp.float32) * scale
             if use_bias else None)
        return w, b

    def fc_p(cout, cin):
        scale = 1.0 / math.sqrt(cin)
        w = jax.random.normal(next(keys), (cout, cin), jnp.float32) * scale
        b = jax.random.normal(next(keys), (cout,), jnp.float32) * scale
        return w, b

    return {
        "splat":    conv_p(C_SPLAT, C_IN, 3),          # 3x3 s2 p1, ReLU
        "gconv":    conv_p(C_G, C_SPLAT, 3),           # 3x3 s2 p1, ReLU
        "gfc0":     fc_p(32 * CM * LB, C_G * H2 * H2), # 512 -> 128, ReLU
        "gfc1":     fc_p(16 * CM * LB, 32 * CM * LB),  # 128 -> 64, ReLU
        "gfc2":     fc_p(8 * CM * LB, 16 * CM * LB),   # 64 -> 32
        "local0":   conv_p(C_G, C_SPLAT, 3),           # 3x3 s1 p1, ReLU
        "local1":   conv_p(C_G, C_G, 3, use_bias=False),  # 3x3 s1 p1, no bias/act
        "conv_out": conv_p(C_OUT, C_G, 1),             # 1x1, bias, no act
    }


# ---------------------------------------------------------------------------
# One-time weight packing (outside the hot path)
# ---------------------------------------------------------------------------
def _conv_to_dense(w_oihw, hin, win, oh, ow, stride, pad, in_chmajor):
    """Scatter a (Cout,Cin,K,K) conv weight into a dense matrix of shape
    (hin*win*Cin, oh*ow*Cout) acting on the flattened input.  Output columns
    are channels-last: (i*ow + j)*Cout + cout.  Input rows are channel-major
    (ci*hin*win + r*win + c) if in_chmajor else channels-last."""
    w = np.asarray(w_oihw, np.float32)
    cout, cin, k, _ = w.shape
    m = np.zeros((hin * win * cin, oh * ow * cout), np.float32)
    ci = np.arange(cin)
    co = np.arange(cout)
    for i in range(oh):
        for j in range(ow):
            ocols = (i * ow + j) * cout + co
            for di in range(k):
                r = i * stride - pad + di
                if not 0 <= r < hin:
                    continue
                for dj in range(k):
                    c = j * stride - pad + dj
                    if not 0 <= c < win:
                        continue
                    if in_chmajor:
                        rows = ci * (hin * win) + r * win + c
                    else:
                        rows = (r * win + c) * cin + ci
                    m[rows[:, None], ocols[None, :]] = w[:, :, di, dj].T
    return m


def prepare_params(params, dtype=jnp.bfloat16):
    f32 = np.float32

    w_sp, b_sp = params["splat"]
    w_gc, b_gc = params["gconv"]
    w_f0, b_f0 = params["gfc0"]
    w_f1, b_f1 = params["gfc1"]
    w_f2, b_f2 = params["gfc2"]
    w_l0, b_l0 = params["local0"]
    w_l1, _ = params["local1"]
    w_co, b_co = params["conv_out"]

    # splat conv: consumes the raw NCHW flatten (channel-major), stride 2
    w1 = _conv_to_dense(w_sp, NSIZE, NSIZE, H1, H1, 2, 1, in_chmajor=True)   # (768,256)
    b1 = np.tile(np.asarray(b_sp, f32), H1 * H1)                             # (256,)

    # gconv: channels-last (8,8,4) flatten -> channels-last (4,4,32) flatten
    w2 = _conv_to_dense(w_gc, H1, H1, H2, H2, 2, 1, in_chmajor=False)        # (256,512)
    b2 = np.tile(np.asarray(b_gc, f32), H2 * H2)                             # (512,)
    # local conv 0: channels-last (8,8,4) -> channels-last (8,8,32)
    w3 = _conv_to_dense(w_l0, H1, H1, H1, H1, 1, 1, in_chmajor=False)        # (256,2048)
    b3 = np.tile(np.asarray(b_l0, f32), H1 * H1)                             # (2048,)
    # merged gconv | local0 weight (one GEMM, one bias/ReLU pass)
    w23 = np.concatenate([w2, w3], axis=1)                                   # (256,2560)
    b23 = np.concatenate([b2, b3])                                           # (2560,)

    # gfc0: permute rows once so it consumes the channels-last flatten
    # (PyTorch flattens NCHW: torch index = c*16 + p, our index = p*32 + c)
    g0 = np.asarray(w_f0, f32).T                                             # (512,128)
    perm = np.empty(C_G * H2 * H2, np.int64)
    for p in range(H2 * H2):
        for c in range(C_G):
            perm[p * C_G + c] = c * (H2 * H2) + p
    g0 = g0[perm]
    bg0 = np.asarray(b_f0, f32)                                              # (128,)
    g1 = np.asarray(w_f1, f32).T                                             # (128,64)
    bg1 = np.asarray(b_f1, f32)                                              # (64,)
    # gfc2 pre-tiled 8x along width: col j*32 + c holds gfc2 column c, so the
    # GEMM emits the width-tiled global row directly (no in-kernel lane concat)
    g2t = np.tile(np.asarray(w_f2, f32).T, (1, H1))                          # (64,256)
    bg2t = np.tile(np.asarray(b_f2, f32), H1)                                # (256,)

    # local conv 1 (no bias): 3 block-banded (256x256) matrices (one per
    # height tap di), K-stacked into a single (768,256) matrix.
    w_l1 = np.asarray(w_l1, f32)
    wb4 = np.zeros((3, RW, RW), f32)
    for di in range(3):
        for j in range(H1):
            for dj in range(3):
                jin = j - 1 + dj
                if 0 <= jin < H1:
                    wb4[di, jin * C_G:(jin + 1) * C_G,
                        j * C_G:(j + 1) * C_G] = w_l1[:, :, di, dj].T
    wb4s = wb4.reshape(3 * RW, RW)                                           # (768,256)

    # conv_out (1x1, 32->48): block-diagonal over the 8 width positions
    w_co2 = np.asarray(w_co, f32)[:, :, 0, 0].T                              # (32,48)
    wout = np.zeros((RW, H1 * C_OUT), f32)
    for j in range(H1):
        wout[j * C_G:(j + 1) * C_G, j * C_OUT:(j + 1) * C_OUT] = w_co2
    bout = np.tile(np.asarray(b_co, f32), H1)                                # (384,)

    # consolidated bias slab (one DMA, lane-aligned segment starts)
    bias = np.zeros((1, BIAS_TOTAL), f32)
    bias[0, OFF_B1:OFF_B1 + N_B1] = b1
    bias[0, OFF_B23:OFF_B23 + N_B23] = b23
    bias[0, OFF_BG0:OFF_BG0 + N_BG0] = bg0
    bias[0, OFF_BG1:OFF_BG1 + N_BG1] = bg1
    bias[0, OFF_BG2:OFF_BG2 + N_BG2] = bg2t
    bias[0, OFF_BOUT:OFF_BOUT + N_BOUT] = bout

    cast = lambda a: jnp.asarray(a, dtype)
    fp = lambda a: jnp.asarray(a, jnp.float32)
    return dict(
        w1=cast(w1), w23=cast(w23),
        g0=fp(g0), g1=fp(g1), g2t=fp(g2t),        # tiny FC chain kept in f32
        wb4s=cast(wb4s), wout=cast(wout),
        bias=fp(bias),
    )


# ---------------------------------------------------------------------------
# The fused Pallas kernel: whole Coeffs forward in one VMEM-resident body
# ---------------------------------------------------------------------------
def _coeffs_kernel(x_ref, w1_ref, w23_ref, g0_ref, g1_ref, g2t_ref,
                   wb4_ref, wout_ref, bias_ref, o_ref):
    f32 = jnp.float32
    cdt = w1_ref.dtype                    # bf16 MXU operands, f32 accumulation
    B = x_ref.shape[0]

    def mm(a, w):
        return jnp.dot(a.astype(w.dtype), w, preferred_element_type=f32)

    # static, lane-aligned slices of the consolidated bias slab
    b1 = bias_ref[:, OFF_B1:OFF_B1 + N_B1]
    b23 = bias_ref[:, OFF_B23:OFF_B23 + N_B23]
    bg0 = bias_ref[:, OFF_BG0:OFF_BG0 + N_BG0]
    bg1 = bias_ref[:, OFF_BG1:OFF_BG1 + N_BG1]
    bg2 = bias_ref[:, OFF_BG2:OFF_BG2 + N_BG2]
    bout = bias_ref[:, OFF_BOUT:OFF_BOUT + N_BOUT]

    # splat conv (3x3 s2 p1, 3->4) as one dense GEMM + bias + ReLU
    out1 = jnp.maximum(mm(x_ref[...], w1_ref[...]) + b1, 0.0)            # (B,256)

    # merged gconv (4->32, s2) | local0 (4->32, s1): one GEMM, one ReLU pass
    gl = jnp.maximum(mm(out1, w23_ref[...]) + b23, 0.0)                  # (B,2560)
    g = gl[:, :H2 * H2 * C_G]                                            # (B,512)
    loc = gl[:, H2 * H2 * C_G:]                                          # (B,2048)

    # global FC chain (tiny; kept in f32).  g2t is pre-tiled 8x along width,
    # so `grow` is already the lane-tiled global row (cols = j*32 + c).
    g = jnp.maximum(jnp.dot(g, g0_ref[...], preferred_element_type=f32) + bg0, 0.0)
    g = jnp.maximum(jnp.dot(g, g1_ref[...], preferred_element_type=f32) + bg1, 0.0)
    grow = jnp.dot(g, g2t_ref[...], preferred_element_type=f32) + bg2    # (B,256)

    # Build the K-stacked banded LHS for local1 entirely in registers (bf16):
    # rows = i*B + b, lanes = [row i-1 | row i | row i+1] each 256 wide.
    loc16 = loc.astype(cdt)                                              # cast once
    s = [loc16[:, i * RW:(i + 1) * RW] for i in range(H1)]               # H1 x (B,256)
    zrow = jnp.zeros((B, RW), cdt)
    row_pieces = []
    for i in range(H1):
        prev_r = zrow if i == 0 else s[i - 1]
        next_r = zrow if i == H1 - 1 else s[i + 1]
        row_pieces.append(jnp.concatenate([prev_r, s[i], next_r], axis=1))
    lhs = jnp.concatenate(row_pieces, axis=0)                            # (H1*B,768)

    # local conv 1 (3x3 s1 p1, 32->32, no bias/act): ONE GEMM, K accumulates
    # the three height taps on the MXU for free.
    acc = jnp.dot(lhs, wb4_ref[...], preferred_element_type=f32)         # (H1*B,256)

    # fusion = ReLU(local + global broadcast), fused as the conv_out prologue
    gtile = jnp.concatenate([grow] * H1, axis=0)                         # (H1*B,256)
    fusion = jnp.maximum(acc + gtile, 0.0)

    # 1x1 conv_out (32->48) as a block-diagonal GEMM; lane-dense output store
    o_ref[...] = mm(fusion, wout_ref[...]) + bout                        # (H1*B,384)


def coeffs_forward(prepared, x_nchw):
    B = x_nchw.shape[0]
    xflat = x_nchw.reshape(B, -1)                      # free flatten of NCHW input

    out2d = pl.pallas_call(
        _coeffs_kernel,
        out_shape=jax.ShapeDtypeStruct((H1 * B, H1 * C_OUT), jnp.float32),
    )(xflat,
      prepared["w1"], prepared["w23"], prepared["g0"], prepared["g1"],
      prepared["g2t"], prepared["wb4s"], prepared["wout"], prepared["bias"])

    # rows = i*B + b, cols = j*48 + (l*12 + m)  ->  (B, nin*nout, lb, sb, sb)
    o = out2d.reshape(H1, B, H1, LB, NIN * NOUT)       # (i, b, j, l, m)
    return jnp.transpose(o, (1, 4, 3, 0, 2))           # (b, m, l, i, j)


# ---------------------------------------------------------------------------
# Pure-JAX reference (f32) for a correctness self-check
# ---------------------------------------------------------------------------
def coeffs_reference(params, x):
    def conv(x, w, b, stride, pad):
        y = jax.lax.conv_general_dilated(
            x, w, (stride, stride), [(pad, pad), (pad, pad)],
            dimension_numbers=("NCHW", "OIHW", "NCHW"))
        if b is not None:
            y = y + b[None, :, None, None]
        return y

    B = x.shape[0]
    w, b = params["splat"];   x1 = jax.nn.relu(conv(x, w, b, 2, 1))
    w, b = params["gconv"];   x2 = jax.nn.relu(conv(x1, w, b, 2, 1))
    g = x2.reshape(B, -1)
    w, b = params["gfc0"];    g = jax.nn.relu(g @ w.T + b)
    w, b = params["gfc1"];    g = jax.nn.relu(g @ w.T + b)
    w, b = params["gfc2"];    g = g @ w.T + b
    w, b = params["local0"];  l = jax.nn.relu(conv(x1, w, b, 1, 1))
    w, _ = params["local1"];  l = conv(l, w, None, 1, 1)
    fusion = jax.nn.relu(l + g[:, :, None, None])
    w, b = params["conv_out"]
    o = conv(fusion, w, b, 1, 0)                                   # (B,48,8,8)
    y = o.reshape(B, LB, NIN * NOUT, o.shape[2], o.shape[3])       # (b,l,m,i,j)
    return jnp.transpose(y, (0, 2, 1, 3, 4))                       # (b,m,l,i,j)


if __name__ == "__main__":
    key = jax.random.PRNGKey(0)
    pkey, xkey = jax.random.split(key)
    params = init_coeffs_params(pkey)
    prepared = prepare_params(params)
    lowres_input = jax.random.normal(xkey, (2, C_IN, NSIZE, NSIZE), jnp.float32)

    fwd = jax.jit(coeffs_forward)
    y = jax.block_until_ready(fwd(prepared, lowres_input))

    assert y.shape == (2, NIN * NOUT, LB, SB, SB), y.shape
    assert bool(jnp.all(jnp.isfinite(y)))

    # correctness self-check against the f32 reference (bf16 matmul tolerance)
    y_ref = coeffs_reference(params, lowres_input)
    max_err = float(jnp.max(jnp.abs(y - y_ref)))
    assert jnp.allclose(y, y_ref, atol=0.15, rtol=0.05), max_err

    print("KERNEL_OK")
</pallas_src>

<mosaic_0001>
module attributes {stable_mosaic.version = 11 : i64} {
  func.func @_coeffs_kernel(%arg0: memref<2x768xf32, #tpu.memory_space<vmem>>, %arg1: memref<768x256xbf16, #tpu.memory_space<vmem>>, %arg2: memref<256x2560xbf16, #tpu.memory_space<vmem>>, %arg3: memref<512x128xf32, #tpu.memory_space<vmem>>, %arg4: memref<128x64xf32, #tpu.memory_space<vmem>>, %arg5: memref<64x256xf32, #tpu.memory_space<vmem>>, %arg6: memref<768x256xbf16, #tpu.memory_space<vmem>>, %arg7: memref<256x384xbf16, #tpu.memory_space<vmem>>, %arg8: memref<1x3712xf32, #tpu.memory_space<vmem>>, %arg9: memref<16x384xf32, #tpu.memory_space<vmem>>) attributes {dimension_semantics = [], scalar_prefetch = 0 : i64, scratch_operands = 0 : i64, tpu.core_type = #tpu.core_type<tc>} {
    %c0 = arith.constant 0 : index
    %c0_0 = arith.constant 0 : index
    %0 = vector.load %arg8[%c0, %c0_0] : memref<1x3712xf32, #tpu.memory_space<vmem>>, vector<1x256xf32>
    %c0_1 = arith.constant 0 : index
    %c256 = arith.constant 256 : index
    %1 = vector.load %arg8[%c0_1, %c256] : memref<1x3712xf32, #tpu.memory_space<vmem>>, vector<1x2560xf32>
    %c0_2 = arith.constant 0 : index
    %c2816 = arith.constant 2816 : index
    %2 = vector.load %arg8[%c0_2, %c2816] : memref<1x3712xf32, #tpu.memory_space<vmem>>, vector<1x128xf32>
    %c0_3 = arith.constant 0 : index
    %c2944 = arith.constant 2944 : index
    %3 = vector.load %arg8[%c0_3, %c2944] : memref<1x3712xf32, #tpu.memory_space<vmem>>, vector<1x64xf32>
    %c0_4 = arith.constant 0 : index
    %c3072 = arith.constant 3072 : index
    %4 = vector.load %arg8[%c0_4, %c3072] : memref<1x3712xf32, #tpu.memory_space<vmem>>, vector<1x256xf32>
    %c0_5 = arith.constant 0 : index
    %c3328 = arith.constant 3328 : index
    %5 = vector.load %arg8[%c0_5, %c3328] : memref<1x3712xf32, #tpu.memory_space<vmem>>, vector<1x384xf32>
    %c0_6 = arith.constant 0 : index
    %c0_7 = arith.constant 0 : index
    %6 = vector.load %arg0[%c0_6, %c0_7] : memref<2x768xf32, #tpu.memory_space<vmem>>, vector<2x768xf32>
    %c0_8 = arith.constant 0 : index
    %c0_9 = arith.constant 0 : index
    %7 = vector.load %arg1[%c0_8, %c0_9] : memref<768x256xbf16, #tpu.memory_space<vmem>>, vector<768x256xbf16>
    %8 = arith.truncf %6 : vector<2x768xf32> to vector<2x768xbf16>
    %cst = arith.constant dense<0.000000e+00> : vector<2x256xf32>
    %9 = tpu.matmul %8, %7, %cst {dimension_numbers = #tpu.dot_dimension_numbers<[1], [0], [0], [1], [0, 0, 1, 1], [], []>} : vector<2x768xbf16>, vector<768x256xbf16>, vector<2x256xf32> -> vector<2x256xf32>
    %10 = vector.broadcast %0 : vector<1x256xf32> to vector<2x256xf32>
    %11 = arith.addf %9, %10 : vector<2x256xf32>
    %cst_10 = arith.constant 0.000000e+00 : f32
    %12 = vector.broadcast %cst_10 : f32 to vector<2x256xf32>
    %13 = arith.maximumf %11, %12 : vector<2x256xf32>
    %c0_11 = arith.constant 0 : index
    %c0_12 = arith.constant 0 : index
    %14 = vector.load %arg2[%c0_11, %c0_12] : memref<256x2560xbf16, #tpu.memory_space<vmem>>, vector<256x2560xbf16>
    %15 = arith.truncf %13 : vector<2x256xf32> to vector<2x256xbf16>
    %cst_13 = arith.constant dense<0.000000e+00> : vector<2x2560xf32>
    %16 = tpu.matmul %15, %14, %cst_13 {dimension_numbers = #tpu.dot_dimension_numbers<[1], [0], [0], [1], [0, 0, 1, 1], [], []>} : vector<2x256xbf16>, vector<256x2560xbf16>, vector<2x2560xf32> -> vector<2x2560xf32>
    %17 = vector.broadcast %1 : vector<1x2560xf32> to vector<2x2560xf32>
    %18 = arith.addf %16, %17 : vector<2x2560xf32>
    %cst_14 = arith.constant 0.000000e+00 : f32
    %19 = vector.broadcast %cst_14 : f32 to vector<2x2560xf32>
    %20 = arith.maximumf %18, %19 : vector<2x2560xf32>
    %21 = vector.extract_strided_slice %20 {offsets = [0, 0], sizes = [2, 512], strides = [1, 1]} : vector<2x2560xf32> to vector<2x512xf32>
    %22 = vector.extract_strided_slice %20 {offsets = [0, 512], sizes = [2, 2048], strides = [1, 1]} : vector<2x2560xf32> to vector<2x2048xf32>
    %c0_15 = arith.constant 0 : index
    %c0_16 = arith.constant 0 : index
    %23 = vector.load %arg3[%c0_15, %c0_16] : memref<512x128xf32, #tpu.memory_space<vmem>>, vector<512x128xf32>
    %cst_17 = arith.constant dense<0.000000e+00> : vector<2x128xf32>
    %24 = tpu.matmul %21, %23, %cst_17 {dimension_numbers = #tpu.dot_dimension_numbers<[1], [0], [0], [1], [0, 0, 1, 1], [], []>} : vector<2x512xf32>, vector<512x128xf32>, vector<2x128xf32> -> vector<2x128xf32>
    %25 = vector.broadcast %2 : vector<1x128xf32> to vector<2x128xf32>
    %26 = arith.addf %24, %25 : vector<2x128xf32>
    %cst_18 = arith.constant 0.000000e+00 : f32
    %27 = vector.broadcast %cst_18 : f32 to vector<2x128xf32>
    %28 = arith.maximumf %26, %27 : vector<2x128xf32>
    %c0_19 = arith.constant 0 : index
    %c0_20 = arith.constant 0 : index
    %29 = vector.load %arg4[%c0_19, %c0_20] : memref<128x64xf32, #tpu.memory_space<vmem>>, vector<128x64xf32>
    %cst_21 = arith.constant dense<0.000000e+00> : vector<2x64xf32>
    %30 = tpu.matmul %28, %29, %cst_21 {dimension_numbers = #tpu.dot_dimension_numbers<[1], [0], [0], [1], [0, 0, 1, 1], [], []>} : vector<2x128xf32>, vector<128x64xf32>, vector<2x64xf32> -> vector<2x64xf32>
    %31 = vector.broadcast %3 : vector<1x64xf32> to vector<2x64xf32>
    %32 = arith.addf %30, %31 : vector<2x64xf32>
    %cst_22 = arith.constant 0.000000e+00 : f32
    %33 = vector.broadcast %cst_22 : f32 to vector<2x64xf32>
    %34 = arith.maximumf %32, %33 : vector<2x64xf32>
    %c0_23 = arith.constant 0 : index
    %c0_24 = arith.constant 0 : index
    %35 = vector.load %arg5[%c0_23, %c0_24] : memref<64x256xf32, #tpu.memory_space<vmem>>, vector<64x256xf32>
    %cst_25 = arith.constant dense<0.000000e+00> : vector<2x256xf32>
    %36 = tpu.matmul %34, %35, %cst_25 {dimension_numbers = #tpu.dot_dimension_numbers<[1], [0], [0], [1], [0, 0, 1, 1], [], []>} : vector<2x64xf32>, vector<64x256xf32>, vector<2x256xf32> -> vector<2x256xf32>
    %37 = vector.broadcast %4 : vector<1x256xf32> to vector<2x256xf32>
    %38 = arith.addf %36, %37 : vector<2x256xf32>
    %39 = arith.truncf %22 : vector<2x2048xf32> to vector<2x2048xbf16>
    %40 = vector.extract_strided_slice %39 {offsets = [0, 0], sizes = [2, 256], strides = [1, 1]} : vector<2x2048xbf16> to vector<2x256xbf16>
    %41 = vector.extract_strided_slice %39 {offsets = [0, 256], sizes = [2, 256], strides = [1, 1]} : vector<2x2048xbf16> to vector<2x256xbf16>
    %42 = vector.extract_strided_slice %39 {offsets = [0, 512], sizes = [2, 256], strides = [1, 1]} : vector<2x2048xbf16> to vector<2x256xbf16>
    %43 = vector.extract_strided_slice %39 {offsets = [0, 768], sizes = [2, 256], strides = [1, 1]} : vector<2x2048xbf16> to vector<2x256xbf16>
    %44 = vector.extract_strided_slice %39 {offsets = [0, 1024], sizes = [2, 256], strides = [1, 1]} : vector<2x2048xbf16> to vector<2x256xbf16>
    %45 = vector.extract_strided_slice %39 {offsets = [0, 1280], sizes = [2, 256], strides = [1, 1]} : vector<2x2048xbf16> to vector<2x256xbf16>
    %46 = vector.extract_strided_slice %39 {offsets = [0, 1536], sizes = [2, 256], strides = [1, 1]} : vector<2x2048xbf16> to vector<2x256xbf16>
    %47 = vector.extract_strided_slice %39 {offsets = [0, 1792], sizes = [2, 256], strides = [1, 1]} : vector<2x2048xbf16> to vector<2x256xbf16>
    %cst_26 = arith.constant 0.000000e+00 : bf16
    %48 = vector.broadcast %cst_26 : bf16 to vector<2x256xbf16>
    %49 = tpu.concatenate %48, %40, %41 in 1 : vector<2x256xbf16>, vector<2x256xbf16>, vector<2x256xbf16> -> vector<2x768xbf16>
    %50 = tpu.concatenate %40, %41, %42 in 1 : vector<2x256xbf16>, vector<2x256xbf16>, vector<2x256xbf16> -> vector<2x768xbf16>
    %51 = tpu.concatenate %41, %42, %43 in 1 : vector<2x256xbf16>, vector<2x256xbf16>, vector<2x256xbf16> -> vector<2x768xbf16>
    %52 = tpu.concatenate %42, %43, %44 in 1 : vector<2x256xbf16>, vector<2x256xbf16>, vector<2x256xbf16> -> vector<2x768xbf16>
    %53 = tpu.concatenate %43, %44, %45 in 1 : vector<2x256xbf16>, vector<2x256xbf16>, vector<2x256xbf16> -> vector<2x768xbf16>
    %54 = tpu.concatenate %44, %45, %46 in 1 : vector<2x256xbf16>, vector<2x256xbf16>, vector<2x256xbf16> -> vector<2x768xbf16>
    %55 = tpu.concatenate %45, %46, %47 in 1 : vector<2x256xbf16>, vector<2x256xbf16>, vector<2x256xbf16> -> vector<2x768xbf16>
    %56 = tpu.concatenate %46, %47, %48 in 1 : vector<2x256xbf16>, vector<2x256xbf16>, vector<2x256xbf16> -> vector<2x768xbf16>
    %57 = tpu.concatenate %49, %50, %51, %52, %53, %54, %55, %56 in 0 : vector<2x768xbf16>, vector<2x768xbf16>, vector<2x768xbf16>, vector<2x768xbf16>, vector<2x768xbf16>, vector<2x768xbf16>, vector<2x768xbf16>, vector<2x768xbf16> -> vector<16x768xbf16>
    %c0_27 = arith.constant 0 : index
    %c0_28 = arith.constant 0 : index
    %58 = vector.load %arg6[%c0_27, %c0_28] : memref<768x256xbf16, #tpu.memory_space<vmem>>, vector<768x256xbf16>
    %cst_29 = arith.constant dense<0.000000e+00> : vector<16x256xf32>
    %59 = tpu.matmul %57, %58, %cst_29 {dimension_numbers = #tpu.dot_dimension_numbers<[1], [0], [0], [1], [0, 0, 1, 1], [], []>} : vector<16x768xbf16>, vector<768x256xbf16>, vector<16x256xf32> -> vector<16x256xf32>
    %60 = tpu.concatenate %38, %38, %38, %38, %38, %38, %38, %38 in 0 : vector<2x256xf32>, vector<2x256xf32>, vector<2x256xf32>, vector<2x256xf32>, vector<2x256xf32>, vector<2x256xf32>, vector<2x256xf32>, vector<2x256xf32> -> vector<16x256xf32>
    %61 = arith.addf %59, %60 : vector<16x256xf32>
    %cst_30 = arith.constant 0.000000e+00 : f32
    %62 = vector.broadcast %cst_30 : f32 to vector<16x256xf32>
    %63 = arith.maximumf %61, %62 : vector<16x256xf32>
    %c0_31 = arith.constant 0 : index
    %c0_32 = arith.constant 0 : index
    %64 = vector.load %arg7[%c0_31, %c0_32] : memref<256x384xbf16, #tpu.memory_space<vmem>>, vector<256x384xbf16>
    %65 = arith.truncf %63 : vector<16x256xf32> to vector<16x256xbf16>
    %cst_33 = arith.constant dense<0.000000e+00> : vector<16x384xf32>
    %66 = tpu.matmul %65, %64, %cst_33 {dimension_numbers = #tpu.dot_dimension_numbers<[1], [0], [0], [1], [0, 0, 1, 1], [], []>} : vector<16x256xbf16>, vector<256x384xbf16>, vector<16x384xf32> -> vector<16x384xf32>
    %67 = vector.broadcast %5 : vector<1x384xf32> to vector<16x384xf32>
    %68 = arith.addf %66, %67 : vector<16x384xf32>
    %c0_34 = arith.constant 0 : index
    %c0_35 = arith.constant 0 : index
    %69 = vector.load %arg9[%c0_34, %c0_35] : memref<16x384xf32, #tpu.memory_space<vmem>>, vector<16x384xf32>
    tpu.vector_store %arg9[%c0_34, %c0_35], %68 {strides = array<i32>} : memref<16x384xf32, #tpu.memory_space<vmem>>, vector<16x384xf32>,
    return
  }
}

</mosaic_0001>

<llo_original>
// kernel: coeffs_forward.1
$region0: #{coeffs_forward.1}
  #allocation0 [shape = 'u32[]', space=smem, size = 0x4, offset = 0x4, fixed_abs, tag = 'smem constant byte address 0x4 - core index']
  #allocation1 [shape = 'u32[72,128]{1,0:T(1,128)}', space=vmem, size = 0x9000, scoped, tag = 'internal scratch']
  %s0 = inlined_call_operand.vmem [shape: f32[2,768], index: 0, kind: input, shape index: {}]
  %s1 = inlined_call_operand.hbm [shape: bf16[768,256], index: 1, kind: input, shape index: {}]
  %s2 = inlined_call_operand.hbm [shape: bf16[256,2560], index: 2, kind: input, shape index: {}]
  %s3 = inlined_call_operand.hbm [shape: f32[512,128], index: 3, kind: input, shape index: {}]
  %s4 = inlined_call_operand.vmem [shape: f32[128,64], index: 4, kind: input, shape index: {}]
  %s5 = inlined_call_operand.hbm [shape: f32[64,256], index: 5, kind: input, shape index: {}]
  %s6 = inlined_call_operand.hbm [shape: bf16[768,256], index: 6, kind: input, shape index: {}]
  %s7 = inlined_call_operand.hbm [shape: bf16[256,384], index: 7, kind: input, shape index: {}]
  %s8 = inlined_call_operand.hbm [shape: f32[1,3712], index: 8, kind: input, shape index: {}]
  %s9 = inlined_call_operand.vmem [shape: f32[16,384], index: 9, kind: output, shape index: {}]
  %s10 = sld [smem:[#allocation0]]
  $region74: #{coeffs_forward.1} parent=0
    _
  %s12 = ssub.s32 1, %s10
  %s13 = scalar_select 0, %s12, %s10
  $region1: #{coeffs_forward.1} parent=0
    #allocation2 [shape = 'u8[393216]{0}', space=vmem, size = 0x60000, scoped, tag = 'input window, operand 1, single buffered']
    #allocation3 [shape = 's32[1]{0}', space=sflag, size = 0x4, scoped, tag = 'scoped memory for coeffs_forward.1']
    #allocation4 [shape = 'u8[1310720]{0}', space=vmem, size = 0x140000, scoped, tag = 'input window, operand 2, single buffered']
    #allocation5 [shape = 's32[1]{0}', space=sflag, size = 0x4, scoped, tag = 'scoped memory for coeffs_forward.1']
    #allocation6 [shape = 'u8[262144]{0}', space=vmem, size = 0x40000, scoped, tag = 'input window, operand 3, single buffered']
    #allocation7 [shape = 'u8[65536]{0}', space=vmem, size = 0x10000, scoped, tag = 'input window, operand 5, single buffered']
    #allocation8 [shape = 's32[1]{0}', space=sflag, size = 0x4, scoped, tag = 'scoped memory for coeffs_forward.1']
    #allocation9 [shape = 'u8[393216]{0}', space=vmem, size = 0x60000, scoped, tag = 'input window, operand 6, single buffered']
    #allocation10 [shape = 'u8[196608]{0}', space=vmem, size = 0x30000, scoped, tag = 'input window, operand 7, single buffered']
    #allocation11 [shape = 's32[1]{0}', space=sflag, size = 0x4, scoped, tag = 'scoped memory for coeffs_forward.1']
    #allocation12 [shape = 'u8[14848]{0}', space=vmem, size = 0x3c00, scoped, tag = 'input window, operand 8, single buffered']
    %14 = vsyncpa [#allocation3], 0
    %15 = vsyncpa [#allocation5], 0
    %16 = vsyncpa [#allocation8], 0
    %17 = vsyncpa [#allocation11], 0
    // Predicated region
    $region2: #{coeffs_forward.1} parent=1 // pred_check
      _
    $region3: #{coeffs_forward.1} parent=1 // pred_check_branch
      %19 = sbr.rel (0) target = $region5
    $region4: #{coeffs_forward.1} parent=1 // pred_region
      _
    $region5: #{coeffs_forward.1} parent=1 // pred_fallthru
      _
    // Predicated region
    $region6: #{coeffs_forward.1} parent=1 // pred_check
      _
    $region7: #{coeffs_forward.1} parent=1 // pred_check_branch
      %21 = sbr.rel (0) target = $region9
    $region8: #{coeffs_forward.1} parent=1 // pred_region
      %23 = vsyncadd [#allocation3], 0
      %s24 = sshll.u32 %s1, 4
      %s25 = int_to_ptr.hbm [resolvable:$true] %s24
      %s26 = sshll.u32 [#allocation2], 4
      %s27 = int_to_ptr.vmem [resolvable:$true] %s26
      %32 = dma.hbm_to_vmem [thread:$0]  %s25, 12288, %s27, [#allocation3], 128, 128, 8
    $region9: #{coeffs_forward.1} parent=1 // pred_fallthru
      _
    // Predicated region
    $region10: #{coeffs_forward.1} parent=1 // pred_check
      _
    $region11: #{coeffs_forward.1} parent=1 // pred_check_branch
      %34 = sbr.rel (0) target = $region13
    $region12: #{coeffs_forward.1} parent=1 // pred_region
      %36 = vsyncadd [#allocation5], 0
      %s37 = sshll.u32 %s2, 4
      %s38 = int_to_ptr.hbm [resolvable:$true] %s37
      %s39 = sshll.u32 [#allocation4], 4
      %s40 = int_to_ptr.vmem [resolvable:$true] %s39
      %45 = dma.hbm_to_vmem [thread:$0]  %s38, 40960, %s40, [#allocation5], 1280, 1280, 80
    $region13: #{coeffs_forward.1} parent=1 // pred_fallthru
      _
    // Predicated region
    $region14: #{coeffs_forward.1} parent=1 // pred_check
      _
    $region15: #{coeffs_forward.1} parent=1 // pred_check_branch
      %47 = sbr.rel (0) target = $region17
    $region16: #{coeffs_forward.1} parent=1 // pred_region
      %49 = vsyncadd [#allocation5], 0
      %s50 = sshll.u32 %s3, 4
      %s51 = int_to_ptr.hbm [resolvable:$true] %s50
      %s52 = sshll.u32 [#allocation6], 4
      %s53 = int_to_ptr.vmem [resolvable:$true] %s52
      %58 = dma.hbm_to_vmem [thread:$0]  %s51, 8192, %s53, [#allocation5], 128, 128, 8
    $region17: #{coeffs_forward.1} parent=1 // pred_fallthru
      _
    // Predicated region
    $region18: #{coeffs_forward.1} parent=1 // pred_check
      _
    $region19: #{coeffs_forward.1} parent=1 // pred_check_branch
      %60 = sbr.rel (0) target = $region21
    $region20: #{coeffs_forward.1} parent=1 // pred_region
      _
    $region21: #{coeffs_forward.1} parent=1 // pred_fallthru
      _
    // Predicated region
    $region22: #{coeffs_forward.1} parent=1 // pred_check
      _
    $region23: #{coeffs_forward.1} parent=1 // pred_check_branch
      %62 = sbr.rel (0) target = $region25
    $region24: #{coeffs_forward.1} parent=1 // pred_region
      %64 = vsyncadd [#allocation8], 0
      %s65 = sshll.u32 %s5, 4
      %s66 = int_to_ptr.hbm [resolvable:$true] %s65
      %s67 = sshll.u32 [#allocation7], 4
      %s68 = int_to_ptr.vmem [resolvable:$true] %s67
      %73 = dma.hbm_to_vmem [thread:$0]  %s66, 2048, %s68, [#allocation8], 256, 256, 16
    $region25: #{coeffs_forward.1} parent=1 // pred_fallthru
      _
    // Predicated region
    $region26: #{coeffs_forward.1} parent=1 // pred_check
      _
    $region27: #{coeffs_forward.1} parent=1 // pred_check_branch
      %75 = sbr.rel (0) target = $region29
    $region28: #{coeffs_forward.1} parent=1 // pred_region
      %77 = vsyncadd [#allocation8], 0
      %s78 = sshll.u32 %s6, 4
      %s79 = int_to_ptr.hbm [resolvable:$true] %s78
      %s80 = sshll.u32 [#allocation9], 4
      %s81 = int_to_ptr.vmem [resolvable:$true] %s80
      %86 = dma.hbm_to_vmem [thread:$0]  %s79, 12288, %s81, [#allocation8], 128, 128, 8
    $region29: #{coeffs_forward.1} parent=1 // pred_fallthru
      _
    // Predicated region
    $region30: #{coeffs_forward.1} parent=1 // pred_check
      _
    $region31: #{coeffs_forward.1} parent=1 // pred_check_branch
      %88 = sbr.rel (0) target = $region33
    $region32: #{coeffs_forward.1} parent=1 // pred_region
      %90 = vsyncadd [#allocation11], 0
      %s91 = sshll.u32 %s7, 4
      %s92 = int_to_ptr.hbm [resolvable:$true] %s91
      %s93 = sshll.u32 [#allocation10], 4
      %s94 = int_to_ptr.vmem [resolvable:$true] %s93
      %99 = dma.hbm_to_vmem [thread:$0]  %s92, 6144, %s94, [#allocation11], 192, 192, 12
    $region33: #{coeffs_forward.1} parent=1 // pred_fallthru
      _
    // Predicated region
    $region34: #{coeffs_forward.1} parent=1 // pred_check
      _
    $region35: #{coeffs_forward.1} parent=1 // pred_check_branch
      %101 = sbr.rel (0) target = $region37
    $region36: #{coeffs_forward.1} parent=1 // pred_region
      %103 = vsyncadd [#allocation11], 0
      %s105 = sshll.u32 %s8, 4
      %s106 = int_to_ptr.hbm [resolvable:$true] %s105
      %s107 = sshll.u32 [#allocation12], 4
      %s108 = int_to_ptr.vmem [resolvable:$true] %s107
      %110 = dma.hbm_to_vmem [thread:$0]  %s106, 464, %s108, [#allocation11]
    $region37: #{coeffs_forward.1} parent=1 // pred_fallthru
      _
    // Predicated region
    $region38: #{coeffs_forward.1} parent=1 // pred_check
      _
    $region39: #{coeffs_forward.1} parent=1 // pred_check_branch
      %112 = sbr.rel (0) target = $region41
    $region40: #{coeffs_forward.1} parent=1 // pred_region
      %114 = dma.done [#allocation3], 12288
    $region41: #{coeffs_forward.1} parent=1 // pred_fallthru
      _
    // Predicated region
    $region42: #{coeffs_forward.1} parent=1 // pred_check
      _
    $region43: #{coeffs_forward.1} parent=1 // pred_check_branch
      %116 = sbr.rel (0) target = $region45
    $region44: #{coeffs_forward.1} parent=1 // pred_region
      %118 = dma.done [#allocation5], 40960
    $region45: #{coeffs_forward.1} parent=1 // pred_fallthru
      _
    // Predicated region
    $region46: #{coeffs_forward.1} parent=1 // pred_check
      _
    $region47: #{coeffs_forward.1} parent=1 // pred_check_branch
      %120 = sbr.rel (0) target = $region49
    $region48: #{coeffs_forward.1} parent=1 // pred_region
      %122 = dma.done [#allocation5], 8192
    $region49: #{coeffs_forward.1} parent=1 // pred_fallthru
      _
    // Predicated region
    $region50: #{coeffs_forward.1} parent=1 // pred_check
      _
    $region51: #{coeffs_forward.1} parent=1 // pred_check_branch
      %124 = sbr.rel (0) target = $region53
    $region52: #{coeffs_forward.1} parent=1 // pred_region
      %126 = dma.done [#allocation8], 2048
    $region53: #{coeffs_forward.1} parent=1 // pred_fallthru
      _
    // Predicated region
    $region54: #{coeffs_forward.1} parent=1 // pred_check
      _
    $region55: #{coeffs_forward.1} parent=1 // pred_check_branch
      %128 = sbr.rel (0) target = $region57
    $region56: #{coeffs_forward.1} parent=1 // pred_region
      %130 = dma.done [#allocation8], 12288
    $region57: #{coeffs_forward.1} parent=1 // pred_fallthru
      _
    // Predicated region
    $region58: #{coeffs_forward.1} parent=1 // pred_check
      _
    $region59: #{coeffs_forward.1} parent=1 // pred_check_branch
      %132 = sbr.rel (0) target = $region61
    $region60: #{coeffs_forward.1} parent=1 // pred_region
      %134 = dma.done [#allocation11], 6144
    $region61: #{coeffs_forward.1} parent=1 // pred_fallthru
      _
    // Predicated region
    $region62: #{coeffs_forward.1} parent=1 // pred_check
      _
    $region63: #{coeffs_forward.1} parent=1 // pred_check_branch
      %136 = sbr.rel (0) target = $region65
    $region64: #{coeffs_forward.1} parent=1 // pred_region
      %138 = dma.done [#allocation11], 464
    $region65: #{coeffs_forward.1} parent=1 // pred_fallthru
      _
    %v140 = vld [vmem:[#allocation12] sm:$0x3]
    %v141 = vld [vmem:[#allocation12 + $0x2] sm:$0xff]
    %v142 = vld [vmem:[#allocation12 + $0xa] sm:$0xff]
    %v143 = vld [vmem:[#allocation12 + $0x12] sm:$0xf]
    %v144 = vld [vmem:[#allocation12 + $0x16] sm:$0x1]
    %v145 = vld [vmem:[#allocation12 + $0x17] sm:$0x1]
    %v146 = vld [vmem:[#allocation12 + $0x18] sm:$0x3]
    %v147 = vld [vmem:[#allocation12 + $0x1a] sm:$0x7]
    %v148 = vld [vmem:[%s0] sm:$0xff]
    %v149 = vld [vmem:[%s0 + $0x8] sm:$0xf]
    %v150 = vld [vmem:[#allocation2] sm:$0xff]
    %v151 = vld [vmem:[#allocation2 + $0x8] sm:$0xff]
    %v152 = vld [vmem:[#allocation2 + $0x10] sm:$0xff]
    %v153 = vld [vmem:[#allocation2 + $0x18] sm:$0xff]
    %v154 = vld [vmem:[#allocation2 + $0x20] sm:$0xff]
    %v155 = vld [vmem:[#allocation2 + $0x28] sm:$0xff]
    %v156 = vld [vmem:[#allocation2 + $0x30] sm:$0xff]
    %v157 = vld [vmem:[#allocation2 + $0x38] sm:$0xff]
    %v158 = vld [vmem:[#allocation2 + $0x40] sm:$0xff]
    %v159 = vld [vmem:[#allocation2 + $0x48] sm:$0xff]
    %v160 = vld [vmem:[#allocation2 + $0x50] sm:$0xff]
    %v161 = vld [vmem:[#allocation2 + $0x58] sm:$0xff]
    %v162 = vld [vmem:[#allocation2 + $0x60] sm:$0xff]
    %v163 = vld [vmem:[#allocation2 + $0x68] sm:$0xff]
    %v164 = vld [vmem:[#allocation2 + $0x70] sm:$0xff]
    %v165 = vld [vmem:[#allocation2 + $0x78] sm:$0xff]
    %v166 = vld [vmem:[#allocation2 + $0x80] sm:$0xff]
    %v167 = vld [vmem:[#allocation2 + $0x88] sm:$0xff]
    %v168 = vld [vmem:[#allocation2 + $0x90] sm:$0xff]
    %v169 = vld [vmem:[#allocation2 + $0x98] sm:$0xff]
    %v170 = vld [vmem:[#allocation2 + $0xa0] sm:$0xff]
    %v171 = vld [vmem:[#allocation2 + $0xa8] sm:$0xff]
    %v172 = vld [vmem:[#allocation2 + $0xb0] sm:$0xff]
    %v173 = vld [vmem:[#allocation2 + $0xb8] sm:$0xff]
    %v174 = vld [vmem:[#allocation2 + $0xc0] sm:$0xff]
    %v175 = vld [vmem:[#allocation2 + $0xc8] sm:$0xff]
    %v176 = vld [vmem:[#allocation2 + $0xd0] sm:$0xff]
    %v177 = vld [vmem:[#allocation2 + $0xd8] sm:$0xff]
    %v178 = vld [vmem:[#allocation2 + $0xe0] sm:$0xff]
    %v179 = vld [vmem:[#allocation2 + $0xe8] sm:$0xff]
    %v180 = vld [vmem:[#allocation2 + $0xf0] sm:$0xff]
    %v181 = vld [vmem:[#allocation2 + $0xf8] sm:$0xff]
    %v182 = vld [vmem:[#allocation2 + $0x100] sm:$0xff]
    %v183 = vld [vmem:[#allocation2 + $0x108] sm:$0xff]
    %v184 = vld [vmem:[#allocation2 + $0x110] sm:$0xff]
    %v185 = vld [vmem:[#allocation2 + $0x118] sm:$0xff]
    %v186 = vld [vmem:[#allocation2 + $0x120] sm:$0xff]
    %v187 = vld [vmem:[#allocation2 + $0x128] sm:$0xff]
    %v188 = vld [vmem:[#allocation2 + $0x130] sm:$0xff]
    %v189 = vld [vmem:[#allocation2 + $0x138] sm:$0xff]
    %v190 = vld [vmem:[#allocation2 + $0x140] sm:$0xff]
    %v191 = vld [vmem:[#allocation2 + $0x148] sm:$0xff]
    %v192 = vld [vmem:[#allocation2 + $0x150] sm:$0xff]
    %v193 = vld [vmem:[#allocation2 + $0x158] sm:$0xff]
    %v194 = vld [vmem:[#allocation2 + $0x160] sm:$0xff]
    %v195 = vld [vmem:[#allocation2 + $0x168] sm:$0xff]
    %v196 = vld [vmem:[#allocation2 + $0x170] sm:$0xff]
    %v197 = vld [vmem:[#allocation2 + $0x178] sm:$0xff]
    %v198 = vld [vmem:[#allocation2 + $0x180] sm:$0xff]
    %v199 = vld [vmem:[#allocation2 + $0x188] sm:$0xff]
    %v200 = vld [vmem:[#allocation2 + $0x190] sm:$0xff]
    %v201 = vld [vmem:[#allocation2 + $0x198] sm:$0xff]
    %v202 = vld [vmem:[#allocation2 + $0x1a0] sm:$0xff]
    %v203 = vld [vmem:[#allocation2 + $0x1a8] sm:$0xff]
    %v204 = vld [vmem:[#allocation2 + $0x1b0] sm:$0xff]
    %v205 = vld [vmem:[#allocation2 + $0x1b8] sm:$0xff]
    %v206 = vld [vmem:[#allocation2 + $0x1c0] sm:$0xff]
    %v207 = vld [vmem:[#allocation2 + $0x1c8] sm:$0xff]
    %v208 = vld [vmem:[#allocation2 + $0x1d0] sm:$0xff]
    %v209 = vld [vmem:[#allocation2 + $0x1d8] sm:$0xff]
    %v210 = vld [vmem:[#allocation2 + $0x1e0] sm:$0xff]
    %v211 = vld [vmem:[#allocation2 + $0x1e8] sm:$0xff]
    %v212 = vld [vmem:[#allocation2 + $0x1f0] sm:$0xff]
    %v213 = vld [vmem:[#allocation2 + $0x1f8] sm:$0xff]
    %v214 = vld [vmem:[#allocation2 + $0x200] sm:$0xff]
    %v215 = vld [vmem:[#allocation2 + $0x208] sm:$0xff]
    %v216 = vld [vmem:[#allocation2 + $0x210] sm:$0xff]
    %v217 = vld [vmem:[#allocation2 + $0x218] sm:$0xff]
    %v218 = vld [vmem:[#allocation2 + $0x220] sm:$0xff]
    %v219 = vld [vmem:[#allocation2 + $0x228] sm:$0xff]
    %v220 = vld [vmem:[#allocation2 + $0x230] sm:$0xff]
    %v221 = vld [vmem:[#allocation2 + $0x238] sm:$0xff]
    %v222 = vld [vmem:[#allocation2 + $0x240] sm:$0xff]
    %v223 = vld [vmem:[#allocation2 + $0x248] sm:$0xff]
    %v224 = vld [vmem:[#allocation2 + $0x250] sm:$0xff]
    %v225 = vld [vmem:[#allocation2 + $0x258] sm:$0xff]
    %v226 = vld [vmem:[#allocation2 + $0x260] sm:$0xff]
    %v227 = vld [vmem:[#allocation2 + $0x268] sm:$0xff]
    %v228 = vld [vmem:[#allocation2 + $0x270] sm:$0xff]
    %v229 = vld [vmem:[#allocation2 + $0x278] sm:$0xff]
    %v230 = vld [vmem:[#allocation2 + $0x280] sm:$0xff]
    %v231 = vld [vmem:[#allocation2 + $0x288] sm:$0xff]
    %v232 = vld [vmem:[#allocation2 + $0x290] sm:$0xff]
    %v233 = vld [vmem:[#allocation2 + $0x298] sm:$0xff]
    %v234 = vld [vmem:[#allocation2 + $0x2a0] sm:$0xff]
    %v235 = vld [vmem:[#allocation2 + $0x2a8] sm:$0xff]
    %v236 = vld [vmem:[#allocation2 + $0x2b0] sm:$0xff]
    %v237 = vld [vmem:[#allocation2 + $0x2b8] sm:$0xff]
    %v238 = vld [vmem:[#allocation2 + $0x2c0] sm:$0xff]
    %v239 = vld [vmem:[#allocation2 + $0x2c8] sm:$0xff]
    %v240 = vld [vmem:[#allocation2 + $0x2d0] sm:$0xff]
    %v241 = vld [vmem:[#allocation2 + $0x2d8] sm:$0xff]
    %v242 = vld [vmem:[#allocation2 + $0x2e0] sm:$0xff]
    %v243 = vld [vmem:[#allocation2 + $0x2e8] sm:$0xff]
    %v244 = vld [vmem:[#allocation2 + $0x2f0] sm:$0xff]
    %v245 = vld [vmem:[#allocation2 + $0x2f8] sm:$0xff]
    %248 = vst [vmem:[#allocation1] ss:$4 sm:$0xff] %v148
    %s249 = scalar_lea.vmem [#allocation1], 32
    %250 = vst [vmem:[%s249] ss:$4 sm:$0xff] %v149
    %v251 = vld.sshfl [vmem:[#allocation1] sm:$0xff pattern:$0x73625140]
    %v252 = vld.sshfl [vmem:[#allocation1 + $0x8] sm:$0xff pattern:$0x73625140]
    %v253 = vld.sshfl [vmem:[#allocation1 + $0x10] sm:$0xff pattern:$0x73625140]
    %v254 = vld.sshfl [vmem:[#allocation1 + $0x18] sm:$0xff pattern:$0x73625140]
    %v255 = vld.sshfl [vmem:[#allocation1 + $0x20] sm:$0xff pattern:$0x73625140]
    %v256 = vld.sshfl [vmem:[#allocation1 + $0x28] sm:$0xff pattern:$0x73625140]
    %v263 = vpack.c.bf16 %v251, %v251
    %v264 = vpack.c.bf16 %v252, %v252
    %v265 = vpack.c.bf16 %v253, %v253
    %v266 = vpack.c.bf16 %v254, %v254
    %v267 = vpack.c.bf16 %v255, %v255
    %v268 = vpack.c.bf16 %v256, %v256
    %v270 = vperm.slane %v140, 0
    %v271 = vperm.slane %v140, 1
    %v370 = vunpack.c.l.b16 %v150
    %v371 = vunpack.c.h.b16 %v150
    %v372 = vunpack.c.l.b16 %v151
    %v373 = vunpack.c.h.b16 %v151
    %v374 = vunpack.c.l.b16 %v152
    %v375 = vunpack.c.h.b16 %v152
    %v376 = vunpack.c.l.b16 %v153
    %v377 = vunpack.c.h.b16 %v153
    %v378 = vunpack.c.l.b16 %v154
    %v379 = vunpack.c.h.b16 %v154
    %v380 = vunpack.c.l.b16 %v155
    %v381 = vunpack.c.h.b16 %v155
    %v382 = vunpack.c.l.b16 %v156
    %v383 = vunpack.c.h.b16 %v156
    %v384 = vunpack.c.l.b16 %v157
    %v385 = vunpack.c.h.b16 %v157
    %v386 = vunpack.c.l.b16 %v158
    %v387 = vunpack.c.h.b16 %v158
    %v388 = vunpack.c.l.b16 %v159
    %v389 = vunpack.c.h.b16 %v159
    %v390 = vunpack.c.l.b16 %v160
    %v391 = vunpack.c.h.b16 %v160
    %v392 = vunpack.c.l.b16 %v161
    %v393 = vunpack.c.h.b16 %v161
    %v394 = vunpack.c.l.b16 %v162
    %v395 = vunpack.c.h.b16 %v162
    %v396 = vunpack.c.l.b16 %v163
    %v397 = vunpack.c.h.b16 %v163
    %v398 = vunpack.c.l.b16 %v164
    %v399 = vunpack.c.h.b16 %v164
    %v400 = vunpack.c.l.b16 %v165
    %v401 = vunpack.c.h.b16 %v165
    %v402 = vunpack.c.l.b16 %v166
    %v403 = vunpack.c.h.b16 %v166
    %v404 = vunpack.c.l.b16 %v167
    %v405 = vunpack.c.h.b16 %v167
    %v406 = vunpack.c.l.b16 %v168
    %v407 = vunpack.c.h.b16 %v168
    %v408 = vunpack.c.l.b16 %v169
    %v409 = vunpack.c.h.b16 %v169
    %v410 = vunpack.c.l.b16 %v170
    %v411 = vunpack.c.h.b16 %v170
    %v412 = vunpack.c.l.b16 %v171
    %v413 = vunpack.c.h.b16 %v171
    %v414 = vunpack.c.l.b16 %v172
    %v415 = vunpack.c.h.b16 %v172
    %v416 = vunpack.c.l.b16 %v173
    %v417 = vunpack.c.h.b16 %v173
    %v418 = vunpack.c.l.b16 %v174
    %v419 = vunpack.c.h.b16 %v174
    %v420 = vunpack.c.l.b16 %v175
    %v421 = vunpack.c.h.b16 %v175
    %v422 = vunpack.c.l.b16 %v176
    %v423 = vunpack.c.h.b16 %v176
    %v424 = vunpack.c.l.b16 %v177
    %v425 = vunpack.c.h.b16 %v177
    %v426 = vunpack.c.l.b16 %v178
    %v427 = vunpack.c.h.b16 %v178
    %v428 = vunpack.c.l.b16 %v179
    %v429 = vunpack.c.h.b16 %v179
    %v430 = vunpack.c.l.b16 %v180
    %v431 = vunpack.c.h.b16 %v180
    %v432 = vunpack.c.l.b16 %v181
    %v433 = vunpack.c.h.b16 %v181
    %v434 = vunpack.c.l.b16 %v182
    %v435 = vunpack.c.h.b16 %v182
    %v436 = vunpack.c.l.b16 %v183
    %v437 = vunpack.c.h.b16 %v183
    %v438 = vunpack.c.l.b16 %v184
    %v439 = vunpack.c.h.b16 %v184
    %v440 = vunpack.c.l.b16 %v185
    %v441 = vunpack.c.h.b16 %v185
    %v442 = vunpack.c.l.b16 %v186
    %v443 = vunpack.c.h.b16 %v186
    %v444 = vunpack.c.l.b16 %v187
    %v445 = vunpack.c.h.b16 %v187
    %v446 = vunpack.c.l.b16 %v188
    %v447 = vunpack.c.h.b16 %v188
    %v448 = vunpack.c.l.b16 %v189
    %v449 = vunpack.c.h.b16 %v189
    %v450 = vunpack.c.l.b16 %v190
    %v451 = vunpack.c.h.b16 %v190
    %v452 = vunpack.c.l.b16 %v191
    %v453 = vunpack.c.h.b16 %v191
    %v454 = vunpack.c.l.b16 %v192
    %v455 = vunpack.c.h.b16 %v192
    %v456 = vunpack.c.l.b16 %v193
    %v457 = vunpack.c.h.b16 %v193
    %v458 = vunpack.c.l.b16 %v194
    %v459 = vunpack.c.h.b16 %v194
    %v460 = vunpack.c.l.b16 %v195
    %v461 = vunpack.c.h.b16 %v195
    %v462 = vunpack.c.l.b16 %v196
    %v463 = vunpack.c.h.b16 %v196
    %v464 = vunpack.c.l.b16 %v197
    %v465 = vunpack.c.h.b16 %v197
    %v466 = vunpack.c.l.b16 %v198
    %v467 = vunpack.c.h.b16 %v198
    %v468 = vunpack.c.l.b16 %v199
    %v469 = vunpack.c.h.b16 %v199
    %v470 = vunpack.c.l.b16 %v200
    %v471 = vunpack.c.h.b16 %v200
    %v472 = vunpack.c.l.b16 %v201
    %v473 = vunpack.c.h.b16 %v201
    %v474 = vunpack.c.l.b16 %v202
    %v475 = vunpack.c.h.b16 %v202
    %v476 = vunpack.c.l.b16 %v203
    %v477 = vunpack.c.h.b16 %v203
    %v478 = vunpack.c.l.b16 %v204
    %v479 = vunpack.c.h.b16 %v204
    %v480 = vunpack.c.l.b16 %v205
    %v481 = vunpack.c.h.b16 %v205
    %v482 = vunpack.c.l.b16 %v206
    %v483 = vunpack.c.h.b16 %v206
    %v484 = vunpack.c.l.b16 %v207
    %v485 = vunpack.c.h.b16 %v207
    %v486 = vunpack.c.l.b16 %v208
    %v487 = vunpack.c.h.b16 %v208
    %v488 = vunpack.c.l.b16 %v209
    %v489 = vunpack.c.h.b16 %v209
    %v490 = vunpack.c.l.b16 %v210
    %v491 = vunpack.c.h.b16 %v210
    %v492 = vunpack.c.l.b16 %v211
    %v493 = vunpack.c.h.b16 %v211
    %v494 = vunpack.c.l.b16 %v212
    %v495 = vunpack.c.h.b16 %v212
    %v496 = vunpack.c.l.b16 %v213
    %v497 = vunpack.c.h.b16 %v213
    %v498 = vunpack.c.l.b16 %v214
    %v499 = vunpack.c.h.b16 %v214
    %v500 = vunpack.c.l.b16 %v215
    %v501 = vunpack.c.h.b16 %v215
    %v502 = vunpack.c.l.b16 %v216
    %v503 = vunpack.c.h.b16 %v216
    %v504 = vunpack.c.l.b16 %v217
    %v505 = vunpack.c.h.b16 %v217
    %v506 = vunpack.c.l.b16 %v218
    %v507 = vunpack.c.h.b16 %v218
    %v508 = vunpack.c.l.b16 %v219
    %v509 = vunpack.c.h.b16 %v219
    %v510 = vunpack.c.l.b16 %v220
    %v511 = vunpack.c.h.b16 %v220
    %v512 = vunpack.c.l.b16 %v221
    %v513 = vunpack.c.h.b16 %v221
    %v514 = vunpack.c.l.b16 %v222
    %v515 = vunpack.c.h.b16 %v222
    %v516 = vunpack.c.l.b16 %v223
    %v517 = vunpack.c.h.b16 %v223
    %v518 = vunpack.c.l.b16 %v224
    %v519 = vunpack.c.h.b16 %v224
    %v520 = vunpack.c.l.b16 %v225
    %v521 = vunpack.c.h.b16 %v225
    %v522 = vunpack.c.l.b16 %v226
    %v523 = vunpack.c.h.b16 %v226
    %v524 = vunpack.c.l.b16 %v227
    %v525 = vunpack.c.h.b16 %v227
    %v526 = vunpack.c.l.b16 %v228
    %v527 = vunpack.c.h.b16 %v228
    %v528 = vunpack.c.l.b16 %v229
    %v529 = vunpack.c.h.b16 %v229
    %v530 = vunpack.c.l.b16 %v230
    %v531 = vunpack.c.h.b16 %v230
    %v532 = vunpack.c.l.b16 %v231
    %v533 = vunpack.c.h.b16 %v231
    %v534 = vunpack.c.l.b16 %v232
    %v535 = vunpack.c.h.b16 %v232
    %v536 = vunpack.c.l.b16 %v233
    %v537 = vunpack.c.h.b16 %v233
    %v538 = vunpack.c.l.b16 %v234
    %v539 = vunpack.c.h.b16 %v234
    %v540 = vunpack.c.l.b16 %v235
    %v541 = vunpack.c.h.b16 %v235
    %v542 = vunpack.c.l.b16 %v236
    %v543 = vunpack.c.h.b16 %v236
    %v544 = vunpack.c.l.b16 %v237
    %v545 = vunpack.c.h.b16 %v237
    %v546 = vunpack.c.l.b16 %v238
    %v547 = vunpack.c.h.b16 %v238
    %v548 = vunpack.c.l.b16 %v239
    %v549 = vunpack.c.h.b16 %v239
    %v550 = vunpack.c.l.b16 %v240
    %v551 = vunpack.c.h.b16 %v240
    %v552 = vunpack.c.l.b16 %v241
    %v553 = vunpack.c.h.b16 %v241
    %v554 = vunpack.c.l.b16 %v242
    %v555 = vunpack.c.h.b16 %v242
    %v556 = vunpack.c.l.b16 %v243
    %v557 = vunpack.c.h.b16 %v243
    %v558 = vunpack.c.l.b16 %v244
    %v559 = vunpack.c.h.b16 %v244
    %v560 = vunpack.c.l.b16 %v245
    %v561 = vunpack.c.h.b16 %v245
    %v562 = vpack.c.b16 %v372, %v370
    %v563 = vpack.c.b16 %v373, %v371
    %v564 = vpack.c.b16 %v376, %v374
    %v565 = vpack.c.b16 %v377, %v375
    %v566 = vpack.c.b16 %v380, %v378
    %v567 = vpack.c.b16 %v381, %v379
    %v568 = vpack.c.b16 %v384, %v382
    %v569 = vpack.c.b16 %v385, %v383
    %v570 = vpack.c.b16 %v388, %v386
    %v571 = vpack.c.b16 %v389, %v387
    %v572 = vpack.c.b16 %v392, %v390
    %v573 = vpack.c.b16 %v393, %v391
    %v574 = vpack.c.b16 %v396, %v394
    %v575 = vpack.c.b16 %v397, %v395
    %v576 = vpack.c.b16 %v400, %v398
    %v577 = vpack.c.b16 %v401, %v399
    %v578 = vpack.c.b16 %v404, %v402
    %v579 = vpack.c.b16 %v405, %v403
    %v580 = vpack.c.b16 %v408, %v406
    %v581 = vpack.c.b16 %v409, %v407
    %v582 = vpack.c.b16 %v412, %v410
    %v583 = vpack.c.b16 %v413, %v411
    %v584 = vpack.c.b16 %v416, %v414
    %v585 = vpack.c.b16 %v417, %v415
    %v586 = vpack.c.b16 %v420, %v418
    %v587 = vpack.c.b16 %v421, %v419
    %v588 = vpack.c.b16 %v424, %v422
    %v589 = vpack.c.b16 %v425, %v423
    %v590 = vpack.c.b16 %v428, %v426
    %v591 = vpack.c.b16 %v429, %v427
    %v592 = vpack.c.b16 %v432, %v430
    %v593 = vpack.c.b16 %v433, %v431
    %v594 = vpack.c.b16 %v436, %v434
    %v595 = vpack.c.b16 %v437, %v435
    %v596 = vpack.c.b16 %v440, %v438
    %v597 = vpack.c.b16 %v441, %v439
    %v598 = vpack.c.b16 %v444, %v442
    %v599 = vpack.c.b16 %v445, %v443
    %v600 = vpack.c.b16 %v448, %v446
    %v601 = vpack.c.b16 %v449, %v447
    %v602 = vpack.c.b16 %v452, %v450
    %v603 = vpack.c.b16 %v453, %v451
    %v604 = vpack.c.b16 %v456, %v454
    %v605 = vpack.c.b16 %v457, %v455
    %v606 = vpack.c.b16 %v460, %v458
    %v607 = vpack.c.b16 %v461, %v459
    %v608 = vpack.c.b16 %v464, %v462
    %v609 = vpack.c.b16 %v465, %v463
    %v610 = vpack.c.b16 %v468, %v466
    %v611 = vpack.c.b16 %v469, %v467
    %v612 = vpack.c.b16 %v472, %v470
    %v613 = vpack.c.b16 %v473, %v471
    %v614 = vpack.c.b16 %v476, %v474
    %v615 = vpack.c.b16 %v477, %v475
    %v616 = vpack.c.b16 %v480, %v478
    %v617 = vpack.c.b16 %v481, %v479
    %v618 = vpack.c.b16 %v484, %v482
    %v619 = vpack.c.b16 %v485, %v483
    %v620 = vpack.c.b16 %v488, %v486
    %v621 = vpack.c.b16 %v489, %v487
    %v622 = vpack.c.b16 %v492, %v490
    %v623 = vpack.c.b16 %v493, %v491
    %v624 = vpack.c.b16 %v496, %v494
    %v625 = vpack.c.b16 %v497, %v495
    %v626 = vpack.c.b16 %v500, %v498
    %v627 = vpack.c.b16 %v501, %v499
    %v628 = vpack.c.b16 %v504, %v502
    %v629 = vpack.c.b16 %v505, %v503
    %v630 = vpack.c.b16 %v508, %v506
    %v631 = vpack.c.b16 %v509, %v507
    %v632 = vpack.c.b16 %v512, %v510
    %v633 = vpack.c.b16 %v513, %v511
    %v634 = vpack.c.b16 %v516, %v514
    %v635 = vpack.c.b16 %v517, %v515
    %v636 = vpack.c.b16 %v520, %v518
    %v637 = vpack.c.b16 %v521, %v519
    %v638 = vpack.c.b16 %v524, %v522
    %v639 = vpack.c.b16 %v525, %v523
    %v640 = vpack.c.b16 %v528, %v526
    %v641 = vpack.c.b16 %v529, %v527
    %v642 = vpack.c.b16 %v532, %v530
    %v643 = vpack.c.b16 %v533, %v531
    %v644 = vpack.c.b16 %v536, %v534
    %v645 = vpack.c.b16 %v537, %v535
    %v646 = vpack.c.b16 %v540, %v538
    %v647 = vpack.c.b16 %v541, %v539
    %v648 = vpack.c.b16 %v544, %v542
    %v649 = vpack.c.b16 %v545, %v543
    %v650 = vpack.c.b16 %v548, %v546
    %v651 = vpack.c.b16 %v549, %v547
    %v652 = vpack.c.b16 %v552, %v550
    %v653 = vpack.c.b16 %v553, %v551
    %v654 = vpack.c.b16 %v556, %v554
    %v655 = vpack.c.b16 %v557, %v555
    %v656 = vpack.c.b16 %v560, %v558
    %v657 = vpack.c.b16 %v561, %v559
    %754 = vmatpush.bf16.msra.mxu0 %v576
    %755 = vmatpush.bf16.msra.mxu0 %v574
    %756 = vmatpush.bf16.msra.mxu0 %v572
    %757 = vmatpush.bf16.msra.mxu0 %v570
    %758 = vmatpush.bf16.msra.mxu0 %v568
    %759 = vmatpush.bf16.msra.mxu0 %v566
    %760 = vmatpush.bf16.msra.mxu0 %v564
    %761 = vmatpush.bf16.msra.mxu0 %v562
    %762 = vmatmul.bf16.gmra.mxu0 %v263
    %v763 = vpop.f32.mrf.mxu0
    %v764 = vadd.f32 %v270, %v763
    %v765 = vpop.f32.mrf.mxu0
    %766 = vdwg.mxu0
    %767 = vmatpush.bf16.msra.mxu0 %v592
    %768 = vmatpush.bf16.msra.mxu0 %v590
    %769 = vmatpush.bf16.msra.mxu0 %v588
    %770 = vmatpush.bf16.msra.mxu0 %v586
    %771 = vmatpush.bf16.msra.mxu0 %v584
    %772 = vmatpush.bf16.msra.mxu0 %v582
    %773 = vmatpush.bf16.msra.mxu0 %v580
    %774 = vmatpush.bf16.msra.mxu0 %v578
    %775 = vmatmul.bf16.gmra.mxu0 %v264
    %v776 = vpop.f32.mrf.mxu0
    %v777 = vadd.f32 %v764, %v776
    %v778 = vpop.f32.mrf.mxu0
    %779 = vdwg.mxu0
    %780 = vmatpush.bf16.msra.mxu0 %v608
    %781 = vmatpush.bf16.msra.mxu0 %v606
    %782 = vmatpush.bf16.msra.mxu0 %v604
    %783 = vmatpush.bf16.msra.mxu0 %v602
    %784 = vmatpush.bf16.msra.mxu0 %v600
    %785 = vmatpush.bf16.msra.mxu0 %v598
    %786 = vmatpush.bf16.msra.mxu0 %v596
    %787 = vmatpush.bf16.msra.mxu0 %v594
    %788 = vmatmul.bf16.gmra.mxu0 %v265
    %v789 = vpop.f32.mrf.mxu0
    %v790 = vadd.f32 %v777, %v789
    %v791 = vpop.f32.mrf.mxu0
    %792 = vdwg.mxu0
    %793 = vmatpush.bf16.msra.mxu0 %v624
    %794 = vmatpush.bf16.msra.mxu0 %v622
    %795 = vmatpush.bf16.msra.mxu0 %v620
    %796 = vmatpush.bf16.msra.mxu0 %v618
    %797 = vmatpush.bf16.msra.mxu0 %v616
    %798 = vmatpush.bf16.msra.mxu0 %v614
    %799 = vmatpush.bf16.msra.mxu0 %v612
    %800 = vmatpush.bf16.msra.mxu0 %v610
    %801 = vmatmul.bf16.gmra.mxu0 %v266
    %v802 = vpop.f32.mrf.mxu0
    %v803 = vadd.f32 %v790, %v802
    %v804 = vpop.f32.mrf.mxu0
    %805 = vdwg.mxu0
    %806 = vmatpush.bf16.msra.mxu0 %v640
    %807 = vmatpush.bf16.msra.mxu0 %v638
    %808 = vmatpush.bf16.msra.mxu0 %v636
    %809 = vmatpush.bf16.msra.mxu0 %v634
    %810 = vmatpush.bf16.msra.mxu0 %v632
    %811 = vmatpush.bf16.msra.mxu0 %v630
    %812 = vmatpush.bf16.msra.mxu0 %v628
    %813 = vmatpush.bf16.msra.mxu0 %v626
    %814 = vmatmul.bf16.gmra.mxu0 %v267
    %v815 = vpop.f32.mrf.mxu0
    %v816 = vadd.f32 %v803, %v815
    %v817 = vpop.f32.mrf.mxu0
    %818 = vdwg.mxu0
    %819 = vmatpush.bf16.msra.mxu0 %v656
    %820 = vmatpush.bf16.msra.mxu0 %v654
    %821 = vmatpush.bf16.msra.mxu0 %v652
    %822 = vmatpush.bf16.msra.mxu0 %v650
    %823 = vmatpush.bf16.msra.mxu0 %v648
    %824 = vmatpush.bf16.msra.mxu0 %v646
    %825 = vmatpush.bf16.msra.mxu0 %v644
    %826 = vmatpush.bf16.msra.mxu0 %v642
    %827 = vmatmul.bf16.gmra.mxu0 %v268
    %v828 = vpop.f32.mrf.mxu0
    %v829 = vadd.f32 %v816, %v828
    %v830 = vpop.f32.mrf.mxu0
    %831 = vdwg.mxu0
    %832 = vmatpush.bf16.msra.mxu0 %v577
    %833 = vmatpush.bf16.msra.mxu0 %v575
    %834 = vmatpush.bf16.msra.mxu0 %v573
    %835 = vmatpush.bf16.msra.mxu0 %v571
    %836 = vmatpush.bf16.msra.mxu0 %v569
    %837 = vmatpush.bf16.msra.mxu0 %v567
    %838 = vmatpush.bf16.msra.mxu0 %v565
    %839 = vmatpush.bf16.msra.mxu0 %v563
    %840 = vmatmul.bf16.gmra.mxu0 %v263
    %v841 = vpop.f32.mrf.mxu0
    %v842 = vadd.f32 %v271, %v841
    %v843 = vpop.f32.mrf.mxu0
    %844 = vdwg.mxu0
    %845 = vmatpush.bf16.msra.mxu0 %v593
    %846 = vmatpush.bf16.msra.mxu0 %v591
    %847 = vmatpush.bf16.msra.mxu0 %v589
    %848 = vmatpush.bf16.msra.mxu0 %v587
    %849 = vmatpush.bf16.msra.mxu0 %v585
    %850 = vmatpush.bf16.msra.mxu0 %v583
    %851 = vmatpush.bf16.msra.mxu0 %v581
    %852 = vmatpush.bf16.msra.mxu0 %v579
    %853 = vmatmul.bf16.gmra.mxu0 %v264
    %v854 = vpop.f32.mrf.mxu0
    %v855 = vadd.f32 %v842, %v854
    %v856 = vpop.f32.mrf.mxu0
    %857 = vdwg.mxu0
    %858 = vmatpush.bf16.msra.mxu0 %v609
    %859 = vmatpush.bf16.msra.mxu0 %v607
    %860 = vmatpush.bf16.msra.mxu0 %v605
    %861 = vmatpush.bf16.msra.mxu0 %v603
    %862 = vmatpush.bf16.msra.mxu0 %v601
    %863 = vmatpush.bf16.msra.mxu0 %v599
    %864 = vmatpush.bf16.msra.mxu0 %v597
    %865 = vmatpush.bf16.msra.mxu0 %v595
    %866 = vmatmul.bf16.gmra.mxu0 %v265
    %v867 = vpop.f32.mrf.mxu0
    %v868 = vadd.f32 %v855, %v867
    %v869 = vpop.f32.mrf.mxu0
    %870 = vdwg.mxu0
    %871 = vmatpush.bf16.msra.mxu0 %v625
    %872 = vmatpush.bf16.msra.mxu0 %v623
    %873 = vmatpush.bf16.msra.mxu0 %v621
    %874 = vmatpush.bf16.msra.mxu0 %v619
    %875 = vmatpush.bf16.msra.mxu0 %v617
    %876 = vmatpush.bf16.msra.mxu0 %v615
    %877 = vmatpush.bf16.msra.mxu0 %v613
    %878 = vmatpush.bf16.msra.mxu0 %v611
    %879 = vmatmul.bf16.gmra.mxu0 %v266
    %v880 = vpop.f32.mrf.mxu0
    %v881 = vadd.f32 %v868, %v880
    %v882 = vpop.f32.mrf.mxu0
    %883 = vdwg.mxu0
    %884 = vmatpush.bf16.msra.mxu0 %v641
    %885 = vmatpush.bf16.msra.mxu0 %v639
    %886 = vmatpush.bf16.msra.mxu0 %v637
    %887 = vmatpush.bf16.msra.mxu0 %v635
    %888 = vmatpush.bf16.msra.mxu0 %v633
    %889 = vmatpush.bf16.msra.mxu0 %v631
    %890 = vmatpush.bf16.msra.mxu0 %v629
    %891 = vmatpush.bf16.msra.mxu0 %v627
    %892 = vmatmul.bf16.gmra.mxu0 %v267
    %v893 = vpop.f32.mrf.mxu0
    %v894 = vadd.f32 %v881, %v893
    %v895 = vpop.f32.mrf.mxu0
    %896 = vdwg.mxu0
    %897 = vmatpush.bf16.msra.mxu0 %v657
    %898 = vmatpush.bf16.msra.mxu0 %v655
    %899 = vmatpush.bf16.msra.mxu0 %v653
    %900 = vmatpush.bf16.msra.mxu0 %v651
    %901 = vmatpush.bf16.msra.mxu0 %v649
    %902 = vmatpush.bf16.msra.mxu0 %v647
    %903 = vmatpush.bf16.msra.mxu0 %v645
    %904 = vmatpush.bf16.msra.mxu0 %v643
    %905 = vmatmul.bf16.gmra.mxu0 %v268
    %v906 = vpop.f32.mrf.mxu0
    %v907 = vadd.f32 %v894, %v906
    %v908 = vpop.f32.mrf.mxu0
    %909 = vdwg.mxu0
    %v910 = vmax.f32 %v829, 0.0
    %v911 = vmax.f32 %v907, 0.0
    %v912 = vld [vmem:[#allocation4] sm:$0xff]
    %v913 = vld [vmem:[#allocation4 + $0x8] sm:$0xff]
    %v914 = vld [vmem:[#allocation4 + $0x10] sm:$0xff]
    %v915 = vld [vmem:[#allocation4 + $0x18] sm:$0xff]
    %v916 = vld [vmem:[#allocation4 + $0x20] sm:$0xff]
    %v917 = vld [vmem:[#allocation4 + $0x28] sm:$0xff]
    %v918 = vld [vmem:[#allocation4 + $0x30] sm:$0xff]
    %v919 = vld [vmem:[#allocation4 + $0x38] sm:$0xff]
    %v920 = vld [vmem:[#allocation4 + $0x40] sm:$0xff]
    %v921 = vld [vmem:[#allocation4 + $0x48] sm:$0xff]
    %v922 = vld [vmem:[#allocation4 + $0x50] sm:$0xff]
    %v923 = vld [vmem:[#allocation4 + $0x58] sm:$0xff]
    %v924 = vld [vmem:[#allocation4 + $0x60] sm:$0xff]
    %v925 = vld [vmem:[#allocation4 + $0x68] sm:$0xff]
    %v926 = vld [vmem:[#allocation4 + $0x70] sm:$0xff]
    %v927 = vld [vmem:[#allocation4 + $0x78] sm:$0xff]
    %v928 = vld [vmem:[#allocation4 + $0x80] sm:$0xff]
    %v929 = vld [vmem:[#allocation4 + $0x88] sm:$0xff]
    %v930 = vld [vmem:[#allocation4 + $0x90] sm:$0xff]
    %v931 = vld [vmem:[#allocation4 + $0x98] sm:$0xff]
    %v932 = vld [vmem:[#allocation4 + $0xa0] sm:$0xff]
    %v933 = vld [vmem:[#allocation4 + $0xa8] sm:$0xff]
    %v934 = vld [vmem:[#allocation4 + $0xb0] sm:$0xff]
    %v935 = vld [vmem:[#allocation4 + $0xb8] sm:$0xff]
    %v936 = vld [vmem:[#allocation4 + $0xc0] sm:$0xff]
    %v937 = vld [vmem:[#allocation4 + $0xc8] sm:$0xff]
    %v938 = vld [vmem:[#allocation4 + $0xd0] sm:$0xff]
    %v939 = vld [vmem:[#allocation4 + $0xd8] sm:$0xff]
    %v940 = vld [vmem:[#allocation4 + $0xe0] sm:$0xff]
    %v941 = vld [vmem:[#allocation4 + $0xe8] sm:$0xff]
    %v942 = vld [vmem:[#allocation4 + $0xf0] sm:$0xff]
    %v943 = vld [vmem:[#allocation4 + $0xf8] sm:$0xff]
    %v944 = vld [vmem:[#allocation4 + $0x100] sm:$0xff]
    %v945 = vld [vmem:[#allocation4 + $0x108] sm:$0xff]
    %v946 = vld [vmem:[#allocation4 + $0x110] sm:$0xff]
    %v947 = vld [vmem:[#allocation4 + $0x118] sm:$0xff]
    %v948 = vld [vmem:[#allocation4 + $0x120] sm:$0xff]
    %v949 = vld [vmem:[#allocation4 + $0x128] sm:$0xff]
    %v950 = vld [vmem:[#allocation4 + $0x130] sm:$0xff]
    %v951 = vld [vmem:[#allocation4 + $0x138] sm:$0xff]
    %v952 = vld [vmem:[#allocation4 + $0x140] sm:$0xff]
    %v953 = vld [vmem:[#allocation4 + $0x148] sm:$0xff]
    %v954 = vld [vmem:[#allocation4 + $0x150] sm:$0xff]
    %v955 = vld [vmem:[#allocation4 + $0x158] sm:$0xff]
    %v956 = vld [vmem:[#allocation4 + $0x160] sm:$0xff]
    %v957 = vld [vmem:[#allocation4 + $0x168] sm:$0xff]
    %v958 = vld [vmem:[#allocation4 + $0x170] sm:$0xff]
    %v959 = vld [vmem:[#allocation4 + $0x178] sm:$0xff]
    %v960 = vld [vmem:[#allocation4 + $0x180] sm:$0xff]
    %v961 = vld [vmem:[#allocation4 + $0x188] sm:$0xff]
    %v962 = vld [vmem:[#allocation4 + $0x190] sm:$0xff]
    %v963 = vld [vmem:[#allocation4 + $0x198] sm:$0xff]
    %v964 = vld [vmem:[#allocation4 + $0x1a0] sm:$0xff]
    %v965 = vld [vmem:[#allocation4 + $0x1a8] sm:$0xff]
    %v966 = vld [vmem:[#allocation4 + $0x1b0] sm:$0xff]
    %v967 = vld [vmem:[#allocation4 + $0x1b8] sm:$0xff]
    %v968 = vld [vmem:[#allocation4 + $0x1c0] sm:$0xff]
    %v969 = vld [vmem:[#allocation4 + $0x1c8] sm:$0xff]
    %v970 = vld [vmem:[#allocation4 + $0x1d0] sm:$0xff]
    %v971 = vld [vmem:[#allocation4 + $0x1d8] sm:$0xff]
    %v972 = vld [vmem:[#allocation4 + $0x1e0] sm:$0xff]
    %v973 = vld [vmem:[#allocation4 + $0x1e8] sm:$0xff]
    %v974 = vld [vmem:[#allocation4 + $0x1f0] sm:$0xff]
    %v975 = vld [vmem:[#allocation4 + $0x1f8] sm:$0xff]
    %v976 = vld [vmem:[#allocation4 + $0x200] sm:$0xff]
    %v977 = vld [vmem:[#allocation4 + $0x208] sm:$0xff]
    %v978 = vld [vmem:[#allocation4 + $0x210] sm:$0xff]
    %v979 = vld [vmem:[#allocation4 + $0x218] sm:$0xff]
    %v980 = vld [vmem:[#allocation4 + $0x220] sm:$0xff]
    %v981 = vld [vmem:[#allocation4 + $0x228] sm:$0xff]
    %v982 = vld [vmem:[#allocation4 + $0x230] sm:$0xff]
    %v983 = vld [vmem:[#allocation4 + $0x238] sm:$0xff]
    %v984 = vld [vmem:[#allocation4 + $0x240] sm:$0xff]
    %v985 = vld [vmem:[#allocation4 + $0x248] sm:$0xff]
    %v986 = vld [vmem:[#allocation4 + $0x250] sm:$0xff]
    %v987 = vld [vmem:[#allocation4 + $0x258] sm:$0xff]
    %v988 = vld [vmem:[#allocation4 + $0x260] sm:$0xff]
    %v989 = vld [vmem:[#allocation4 + $0x268] sm:$0xff]
    %v990 = vld [vmem:[#allocation4 + $0x270] sm:$0xff]
    %v991 = vld [vmem:[#allocation4 + $0x278] sm:$0xff]
    %v992 = vld [vmem:[#allocation4 + $0x280] sm:$0xff]
    %v993 = vld [vmem:[#allocation4 + $0x288] sm:$0xff]
    %v994 = vld [vmem:[#allocation4 + $0x290] sm:$0xff]
    %v995 = vld [vmem:[#allocation4 + $0x298] sm:$0xff]
    %v996 = vld [vmem:[#allocation4 + $0x2a0] sm:$0xff]
    %v997 = vld [vmem:[#allocation4 + $0x2a8] sm:$0xff]
    %v998 = vld [vmem:[#allocation4 + $0x2b0] sm:$0xff]
    %v999 = vld [vmem:[#allocation4 + $0x2b8] sm:$0xff]
    %v1000 = vld [vmem:[#allocation4 + $0x2c0] sm:$0xff]
    %v1001 = vld [vmem:[#allocation4 + $0x2c8] sm:$0xff]
    %v1002 = vld [vmem:[#allocation4 + $0x2d0] sm:$0xff]
    %v1003 = vld [vmem:[#allocation4 + $0x2d8] sm:$0xff]
    %v1004 = vld [vmem:[#allocation4 + $0x2e0] sm:$0xff]
    %v1005 = vld [vmem:[#allocation4 + $0x2e8] sm:$0xff]
    %v1006 = vld [vmem:[#allocation4 + $0x2f0] sm:$0xff]
    %v1007 = vld [vmem:[#allocation4 + $0x2f8] sm:$0xff]
    %v1008 = vld [vmem:[#allocation4 + $0x300] sm:$0xff]
    %v1009 = vld [vmem:[#allocation4 + $0x308] sm:$0xff]
    %v1010 = vld [vmem:[#allocation4 + $0x310] sm:$0xff]
    %v1011 = vld [vmem:[#allocation4 + $0x318] sm:$0xff]
    %v1012 = vld [vmem:[#allocation4 + $0x320] sm:$0xff]
    %v1013 = vld [vmem:[#allocation4 + $0x328] sm:$0xff]
    %v1014 = vld [vmem:[#allocation4 + $0x330] sm:$0xff]
    %v1015 = vld [vmem:[#allocation4 + $0x338] sm:$0xff]
    %v1016 = vld [vmem:[#allocation4 + $0x340] sm:$0xff]
    %v1017 = vld [vmem:[#allocation4 + $0x348] sm:$0xff]
    %v1018 = vld [vmem:[#allocation4 + $0x350] sm:$0xff]
    %v1019 = vld [vmem:[#allocation4 + $0x358] sm:$0xff]
    %v1020 = vld [vmem:[#allocation4 + $0x360] sm:$0xff]
    %v1021 = vld [vmem:[#allocation4 + $0x368] sm:$0xff]
    %v1022 = vld [vmem:[#allocation4 + $0x370] sm:$0xff]
    %v1023 = vld [vmem:[#allocation4 + $0x378] sm:$0xff]
    %v1024 = vld [vmem:[#allocation4 + $0x380] sm:$0xff]
    %v1025 = vld [vmem:[#allocation4 + $0x388] sm:$0xff]
    %v1026 = vld [vmem:[#allocation4 + $0x390] sm:$0xff]
    %v1027 = vld [vmem:[#allocation4 + $0x398] sm:$0xff]
    %v1028 = vld [vmem:[#allocation4 + $0x3a0] sm:$0xff]
    %v1029 = vld [vmem:[#allocation4 + $0x3a8] sm:$0xff]
    %v1030 = vld [vmem:[#allocation4 + $0x3b0] sm:$0xff]
    %v1031 = vld [vmem:[#allocation4 + $0x3b8] sm:$0xff]
    %v1032 = vld [vmem:[#allocation4 + $0x3c0] sm:$0xff]
    %v1033 = vld [vmem:[#allocation4 + $0x3c8] sm:$0xff]
    %v1034 = vld [vmem:[#allocation4 + $0x3d0] sm:$0xff]
    %v1035 = vld [vmem:[#allocation4 + $0x3d8] sm:$0xff]
    %v1036 = vld [vmem:[#allocation4 + $0x3e0] sm:$0xff]
    %v1037 = vld [vmem:[#allocation4 + $0x3e8] sm:$0xff]
    %v1038 = vld [vmem:[#allocation4 + $0x3f0] sm:$0xff]
    %v1039 = vld [vmem:[#allocation4 + $0x3f8] sm:$0xff]
    %v1040 = vld [vmem:[#allocation4 + $0x400] sm:$0xff]
    %v1041 = vld [vmem:[#allocation4 + $0x408] sm:$0xff]
    %v1042 = vld [vmem:[#allocation4 + $0x410] sm:$0xff]
    %v1043 = vld [vmem:[#allocation4 + $0x418] sm:$0xff]
    %v1044 = vld [vmem:[#allocation4 + $0x420] sm:$0xff]
    %v1045 = vld [vmem:[#allocation4 + $0x428] sm:$0xff]
    %v1046 = vld [vmem:[#allocation4 + $0x430] sm:$0xff]
    %v1047 = vld [vmem:[#allocation4 + $0x438] sm:$0xff]
    %v1048 = vld [vmem:[#allocation4 + $0x440] sm:$0xff]
    %v1049 = vld [vmem:[#allocation4 + $0x448] sm:$0xff]
    %v1050 = vld [vmem:[#allocation4 + $0x450] sm:$0xff]
    %v1051 = vld [vmem:[#allocation4 + $0x458] sm:$0xff]
    %v1052 = vld [vmem:[#allocation4 + $0x460] sm:$0xff]
    %v1053 = vld [vmem:[#allocation4 + $0x468] sm:$0xff]
    %v1054 = vld [vmem:[#allocation4 + $0x470] sm:$0xff]
    %v1055 = vld [vmem:[#allocation4 + $0x478] sm:$0xff]
    %v1056 = vld [vmem:[#allocation4 + $0x480] sm:$0xff]
    %v1057 = vld [vmem:[#allocation4 + $0x488] sm:$0xff]
    %v1058 = vld [vmem:[#allocation4 + $0x490] sm:$0xff]
    %v1059 = vld [vmem:[#allocation4 + $0x498] sm:$0xff]
    %v1060 = vld [vmem:[#allocation4 + $0x4a0] sm:$0xff]
    %v1061 = vld [vmem:[#allocation4 + $0x4a8] sm:$0xff]
    %v1062 = vld [vmem:[#allocation4 + $0x4b0] sm:$0xff]
    %v1063 = vld [vmem:[#allocation4 + $0x4b8] sm:$0xff]
    %v1064 = vld [vmem:[#allocation4 + $0x4c0] sm:$0xff]
    %v1065 = vld [vmem:[#allocation4 + $0x4c8] sm:$0xff]
    %v1066 = vld [vmem:[#allocation4 + $0x4d0] sm:$0xff]
    %v1067 = vld [vmem:[#allocation4 + $0x4d8] sm:$0xff]
    %v1068 = vld [vmem:[#allocation4 + $0x4e0] sm:$0xff]
    %v1069 = vld [vmem:[#allocation4 + $0x4e8] sm:$0xff]
    %v1070 = vld [vmem:[#allocation4 + $0x4f0] sm:$0xff]
    %v1071 = vld [vmem:[#allocation4 + $0x4f8] sm:$0xff]
    %v1072 = vld [vmem:[#allocation4 + $0x500] sm:$0xff]
    %v1073 = vld [vmem:[#allocation4 + $0x508] sm:$0xff]
    %v1074 = vld [vmem:[#allocation4 + $0x510] sm:$0xff]
    %v1075 = vld [vmem:[#allocation4 + $0x518] sm:$0xff]
    %v1076 = vld [vmem:[#allocation4 + $0x520] sm:$0xff]
    %v1077 = vld [vmem:[#allocation4 + $0x528] sm:$0xff]
    %v1078 = vld [vmem:[#allocation4 + $0x530] sm:$0xff]
    %v1079 = vld [vmem:[#allocation4 + $0x538] sm:$0xff]
    %v1080 = vld [vmem:[#allocation4 + $0x540] sm:$0xff]
    %v1081 = vld [vmem:[#allocation4 + $0x548] sm:$0xff]
    %v1082 = vld [vmem:[#allocation4 + $0x550] sm:$0xff]
    %v1083 = vld [vmem:[#allocation4 + $0x558] sm:$0xff]
    %v1084 = vld [vmem:[#allocation4 + $0x560] sm:$0xff]
    %v1085 = vld [vmem:[#allocation4 + $0x568] sm:$0xff]
    %v1086 = vld [vmem:[#allocation4 + $0x570] sm:$0xff]
    %v1087 = vld [vmem:[#allocation4 + $0x578] sm:$0xff]
    %v1088 = vld [vmem:[#allocation4 + $0x580] sm:$0xff]
    %v1089 = vld [vmem:[#allocation4 + $0x588] sm:$0xff]
    %v1090 = vld [vmem:[#allocation4 + $0x590] sm:$0xff]
    %v1091 = vld [vmem:[#allocation4 + $0x598] sm:$0xff]
    %v1092 = vld [vmem:[#allocation4 + $0x5a0] sm:$0xff]
    %v1093 = vld [vmem:[#allocation4 + $0x5a8] sm:$0xff]
    %v1094 = vld [vmem:[#allocation4 + $0x5b0] sm:$0xff]
    %v1095 = vld [vmem:[#allocation4 + $0x5b8] sm:$0xff]
    %v1096 = vld [vmem:[#allocation4 + $0x5c0] sm:$0xff]
    %v1097 = vld [vmem:[#allocation4 + $0x5c8] sm:$0xff]
    %v1098 = vld [vmem:[#allocation4 + $0x5d0] sm:$0xff]
    %v1099 = vld [vmem:[#allocation4 + $0x5d8] sm:$0xff]
    %v1100 = vld [vmem:[#allocation4 + $0x5e0] sm:$0xff]
    %v1101 = vld [vmem:[#allocation4 + $0x5e8] sm:$0xff]
    %v1102 = vld [vmem:[#allocation4 + $0x5f0] sm:$0xff]
    %v1103 = vld [vmem:[#allocation4 + $0x5f8] sm:$0xff]
    %v1104 = vld [vmem:[#allocation4 + $0x600] sm:$0xff]
    %v1105 = vld [vmem:[#allocation4 + $0x608] sm:$0xff]
    %v1106 = vld [vmem:[#allocation4 + $0x610] sm:$0xff]
    %v1107 = vld [vmem:[#allocation4 + $0x618] sm:$0xff]
    %v1108 = vld [vmem:[#allocation4 + $0x620] sm:$0xff]
    %v1109 = vld [vmem:[#allocation4 + $0x628] sm:$0xff]
    %v1110 = vld [vmem:[#allocation4 + $0x630] sm:$0xff]
    %v1111 = vld [vmem:[#allocation4 + $0x638] sm:$0xff]
    %v1112 = vld [vmem:[#allocation4 + $0x640] sm:$0xff]
    %v1113 = vld [vmem:[#allocation4 + $0x648] sm:$0xff]
    %v1114 = vld [vmem:[#allocation4 + $0x650] sm:$0xff]
    %v1115 = vld [vmem:[#allocation4 + $0x658] sm:$0xff]
    %v1116 = vld [vmem:[#allocation4 + $0x660] sm:$0xff]
    %v1117 = vld [vmem:[#allocation4 + $0x668] sm:$0xff]
    %v1118 = vld [vmem:[#allocation4 + $0x670] sm:$0xff]
    %v1119 = vld [vmem:[#allocation4 + $0x678] sm:$0xff]
    %v1120 = vld [vmem:[#allocation4 + $0x680] sm:$0xff]
    %v1121 = vld [vmem:[#allocation4 + $0x688] sm:$0xff]
    %v1122 = vld [vmem:[#allocation4 + $0x690] sm:$0xff]
    %v1123 = vld [vmem:[#allocation4 + $0x698] sm:$0xff]
    %v1124 = vld [vmem:[#allocation4 + $0x6a0] sm:$0xff]
    %v1125 = vld [vmem:[#allocation4 + $0x6a8] sm:$0xff]
    %v1126 = vld [vmem:[#allocation4 + $0x6b0] sm:$0xff]
    %v1127 = vld [vmem:[#allocation4 + $0x6b8] sm:$0xff]
    %v1128 = vld [vmem:[#allocation4 + $0x6c0] sm:$0xff]
    %v1129 = vld [vmem:[#allocation4 + $0x6c8] sm:$0xff]
    %v1130 = vld [vmem:[#allocation4 + $0x6d0] sm:$0xff]
    %v1131 = vld [vmem:[#allocation4 + $0x6d8] sm:$0xff]
    %v1132 = vld [vmem:[#allocation4 + $0x6e0] sm:$0xff]
    %v1133 = vld [vmem:[#allocation4 + $0x6e8] sm:$0xff]
    %v1134 = vld [vmem:[#allocation4 + $0x6f0] sm:$0xff]
    %v1135 = vld [vmem:[#allocation4 + $0x6f8] sm:$0xff]
    %v1136 = vld [vmem:[#allocation4 + $0x700] sm:$0xff]
    %v1137 = vld [vmem:[#allocation4 + $0x708] sm:$0xff]
    %v1138 = vld [vmem:[#allocation4 + $0x710] sm:$0xff]
    %v1139 = vld [vmem:[#allocation4 + $0x718] sm:$0xff]
    %v1140 = vld [vmem:[#allocation4 + $0x720] sm:$0xff]
    %v1141 = vld [vmem:[#allocation4 + $0x728] sm:$0xff]
    %v1142 = vld [vmem:[#allocation4 + $0x730] sm:$0xff]
    %v1143 = vld [vmem:[#allocation4 + $0x738] sm:$0xff]
    %v1144 = vld [vmem:[#allocation4 + $0x740] sm:$0xff]
    %v1145 = vld [vmem:[#allocation4 + $0x748] sm:$0xff]
    %v1146 = vld [vmem:[#allocation4 + $0x750] sm:$0xff]
    %v1147 = vld [vmem:[#allocation4 + $0x758] sm:$0xff]
    %v1148 = vld [vmem:[#allocation4 + $0x760] sm:$0xff]
    %v1149 = vld [vmem:[#allocation4 + $0x768] sm:$0xff]
    %v1150 = vld [vmem:[#allocation4 + $0x770] sm:$0xff]
    %v1151 = vld [vmem:[#allocation4 + $0x778] sm:$0xff]
    %v1152 = vld [vmem:[#allocation4 + $0x780] sm:$0xff]
    %v1153 = vld [vmem:[#allocation4 + $0x788] sm:$0xff]
    %v1154 = vld [vmem:[#allocation4 + $0x790] sm:$0xff]
    %v1155 = vld [vmem:[#allocation4 + $0x798] sm:$0xff]
    %v1156 = vld [vmem:[#allocation4 + $0x7a0] sm:$0xff]
    %v1157 = vld [vmem:[#allocation4 + $0x7a8] sm:$0xff]
    %v1158 = vld [vmem:[#allocation4 + $0x7b0] sm:$0xff]
    %v1159 = vld [vmem:[#allocation4 + $0x7b8] sm:$0xff]
    %v1160 = vld [vmem:[#allocation4 + $0x7c0] sm:$0xff]
    %v1161 = vld [vmem:[#allocation4 + $0x7c8] sm:$0xff]
    %v1162 = vld [vmem:[#allocation4 + $0x7d0] sm:$0xff]
    %v1163 = vld [vmem:[#allocation4 + $0x7d8] sm:$0xff]
    %v1164 = vld [vmem:[#allocation4 + $0x7e0] sm:$0xff]
    %v1165 = vld [vmem:[#allocation4 + $0x7e8] sm:$0xff]
    %v1166 = vld [vmem:[#allocation4 + $0x7f0] sm:$0xff]
    %v1167 = vld [vmem:[#allocation4 + $0x7f8] sm:$0xff]
    %v1168 = vld [vmem:[#allocation4 + $0x800] sm:$0xff]
    %v1169 = vld [vmem:[#allocation4 + $0x808] sm:$0xff]
    %v1170 = vld [vmem:[#allocation4 + $0x810] sm:$0xff]
    %v1171 = vld [vmem:[#allocation4 + $0x818] sm:$0xff]
    %v1172 = vld [vmem:[#allocation4 + $0x820] sm:$0xff]
    %v1173 = vld [vmem:[#allocation4 + $0x828] sm:$0xff]
    %v1174 = vld [vmem:[#allocation4 + $0x830] sm:$0xff]
    %v1175 = vld [vmem:[#allocation4 + $0x838] sm:$0xff]
    %v1176 = vld [vmem:[#allocation4 + $0x840] sm:$0xff]
    %v1177 = vld [vmem:[#allocation4 + $0x848] sm:$0xff]
    %v1178 = vld [vmem:[#allocation4 + $0x850] sm:$0xff]
    %v1179 = vld [vmem:[#allocation4 + $0x858] sm:$0xff]
    %v1180 = vld [vmem:[#allocation4 + $0x860] sm:$0xff]
    %v1181 = vld [vmem:[#allocation4 + $0x868] sm:$0xff]
    %v1182 = vld [vmem:[#allocation4 + $0x870] sm:$0xff]
    %v1183 = vld [vmem:[#allocation4 + $0x878] sm:$0xff]
    %v1184 = vld [vmem:[#allocation4 + $0x880] sm:$0xff]
    %v1185 = vld [vmem:[#allocation4 + $0x888] sm:$0xff]
    %v1186 = vld [vmem:[#allocation4 + $0x890] sm:$0xff]
    %v1187 = vld [vmem:[#allocation4 + $0x898] sm:$0xff]
    %v1188 = vld [vmem:[#allocation4 + $0x8a0] sm:$0xff]
    %v1189 = vld [vmem:[#allocation4 + $0x8a8] sm:$0xff]
    %v1190 = vld [vmem:[#allocation4 + $0x8b0] sm:$0xff]
    %v1191 = vld [vmem:[#allocation4 + $0x8b8] sm:$0xff]
    %v1192 = vld [vmem:[#allocation4 + $0x8c0] sm:$0xff]
    %v1193 = vld [vmem:[#allocation4 + $0x8c8] sm:$0xff]
    %v1194 = vld [vmem:[#allocation4 + $0x8d0] sm:$0xff]
    %v1195 = vld [vmem:[#allocation4 + $0x8d8] sm:$0xff]
    %v1196 = vld [vmem:[#allocation4 + $0x8e0] sm:$0xff]
    %v1197 = vld [vmem:[#allocation4 + $0x8e8] sm:$0xff]
    %v1198 = vld [vmem:[#allocation4 + $0x8f0] sm:$0xff]
    %v1199 = vld [vmem:[#allocation4 + $0x8f8] sm:$0xff]
    %v1200 = vld [vmem:[#allocation4 + $0x900] sm:$0xff]
    %v1201 = vld [vmem:[#allocation4 + $0x908] sm:$0xff]
    %v1202 = vld [vmem:[#allocation4 + $0x910] sm:$0xff]
    %v1203 = vld [vmem:[#allocation4 + $0x918] sm:$0xff]
    %v1204 = vld [vmem:[#allocation4 + $0x920] sm:$0xff]
    %v1205 = vld [vmem:[#allocation4 + $0x928] sm:$0xff]
    %v1206 = vld [vmem:[#allocation4 + $0x930] sm:$0xff]
    %v1207 = vld [vmem:[#allocation4 + $0x938] sm:$0xff]
    %v1208 = vld [vmem:[#allocation4 + $0x940] sm:$0xff]
    %v1209 = vld [vmem:[#allocation4 + $0x948] sm:$0xff]
    %v1210 = vld [vmem:[#allocation4 + $0x950] sm:$0xff]
    %v1211 = vld [vmem:[#allocation4 + $0x958] sm:$0xff]
    %v1212 = vld [vmem:[#allocation4 + $0x960] sm:$0xff]
    %v1213 = vld [vmem:[#allocation4 + $0x968] sm:$0xff]
    %v1214 = vld [vmem:[#allocation4 + $0x970] sm:$0xff]
    %v1215 = vld [vmem:[#allocation4 + $0x978] sm:$0xff]
    %v1216 = vld [vmem:[#allocation4 + $0x980] sm:$0xff]
    %v1217 = vld [vmem:[#allocation4 + $0x988] sm:$0xff]
    %v1218 = vld [vmem:[#allocation4 + $0x990] sm:$0xff]
    %v1219 = vld [vmem:[#allocation4 + $0x998] sm:$0xff]
    %v1220 = vld [vmem:[#allocation4 + $0x9a0] sm:$0xff]
    %v1221 = vld [vmem:[#allocation4 + $0x9a8] sm:$0xff]
    %v1222 = vld [vmem:[#allocation4 + $0x9b0] sm:$0xff]
    %v1223 = vld [vmem:[#allocation4 + $0x9b8] sm:$0xff]
    %v1224 = vld [vmem:[#allocation4 + $0x9c0] sm:$0xff]
    %v1225 = vld [vmem:[#allocation4 + $0x9c8] sm:$0xff]
    %v1226 = vld [vmem:[#allocation4 + $0x9d0] sm:$0xff]
    %v1227 = vld [vmem:[#allocation4 + $0x9d8] sm:$0xff]
    %v1228 = vld [vmem:[#allocation4 + $0x9e0] sm:$0xff]
    %v1229 = vld [vmem:[#allocation4 + $0x9e8] sm:$0xff]
    %v1230 = vld [vmem:[#allocation4 + $0x9f0] sm:$0xff]
    %v1231 = vld [vmem:[#allocation4 + $0x9f8] sm:$0xff]
    %v1232 = vpack.c.bf16 %v910, %v910
    %v1233 = vpack.c.bf16 %v911, %v911
    %v1237 = vperm.slane %v141, 0
    %v1238 = vperm.slane %v141, 1
    %v1239 = vperm.slane %v141, 2
    %v1240 = vperm.slane %v141, 3
    %v1241 = vperm.slane %v141, 4
    %v1242 = vperm.slane %v141, 5
    %v1243 = vperm.slane %v141, 6
    %v1244 = vperm.slane %v141, 7
    %v1245 = vperm.slane %v142, 0
    %v1246 = vperm.slane %v142, 1
    %v1247 = vperm.slane %v142, 2
    %v1248 = vperm.slane %v142, 3
    %v1249 = vperm.slane %v142, 4
    %v1250 = vperm.slane %v142, 5
    %v1251 = vperm.slane %v142, 6
    %v1252 = vperm.slane %v142, 7
    %v1253 = vperm.slane %v143, 0
    %v1254 = vperm.slane %v143, 1
    %v1255 = vperm.slane %v143, 2
    %v1256 = vperm.slane %v143, 3
    %v1597 = vunpack.c.l.b16 %v912
    %v1598 = vunpack.c.h.b16 %v912
    %v1599 = vunpack.c.l.b16 %v913
    %v1600 = vunpack.c.h.b16 %v913
    %v1601 = vunpack.c.l.b16 %v914
    %v1602 = vunpack.c.h.b16 %v914
    %v1603 = vunpack.c.l.b16 %v915
    %v1604 = vunpack.c.h.b16 %v915
    %v1605 = vunpack.c.l.b16 %v916
    %v1606 = vunpack.c.h.b16 %v916
    %v1607 = vunpack.c.l.b16 %v917
    %v1608 = vunpack.c.h.b16 %v917
    %v1609 = vunpack.c.l.b16 %v918
    %v1610 = vunpack.c.h.b16 %v918
    %v1611 = vunpack.c.l.b16 %v919
    %v1612 = vunpack.c.h.b16 %v919
    %v1613 = vunpack.c.l.b16 %v920
    %v1614 = vunpack.c.h.b16 %v920
    %v1615 = vunpack.c.l.b16 %v921
    %v1616 = vunpack.c.h.b16 %v921
    %v1617 = vunpack.c.l.b16 %v922
    %v1618 = vunpack.c.h.b16 %v922
    %v1619 = vunpack.c.l.b16 %v923
    %v1620 = vunpack.c.h.b16 %v923
    %v1621 = vunpack.c.l.b16 %v924
    %v1622 = vunpack.c.h.b16 %v924
    %v1623 = vunpack.c.l.b16 %v925
    %v1624 = vunpack.c.h.b16 %v925
    %v1625 = vunpack.c.l.b16 %v926
    %v1626 = vunpack.c.h.b16 %v926
    %v1627 = vunpack.c.l.b16 %v927
    %v1628 = vunpack.c.h.b16 %v927
    %v1629 = vunpack.c.l.b16 %v928
    %v1630 = vunpack.c.h.b16 %v928
    %v1631 = vunpack.c.l.b16 %v929
    %v1632 = vunpack.c.h.b16 %v929
    %v1633 = vunpack.c.l.b16 %v930
    %v1634 = vunpack.c.h.b16 %v930
    %v1635 = vunpack.c.l.b16 %v931
    %v1636 = vunpack.c.h.b16 %v931
    %v1637 = vunpack.c.l.b16 %v932
    %v1638 = vunpack.c.h.b16 %v932
    %v1639 = vunpack.c.l.b16 %v933
    %v1640 = vunpack.c.h.b16 %v933
    %v1641 = vunpack.c.l.b16 %v934
    %v1642 = vunpack.c.h.b16 %v934
    %v1643 = vunpack.c.l.b16 %v935
    %v1644 = vunpack.c.h.b16 %v935
    %v1645 = vunpack.c.l.b16 %v936
    %v1646 = vunpack.c.h.b16 %v936
    %v1647 = vunpack.c.l.b16 %v937
    %v1648 = vunpack.c.h.b16 %v937
    %v1649 = vunpack.c.l.b16 %v938
    %v1650 = vunpack.c.h.b16 %v938
    %v1651 = vunpack.c.l.b16 %v939
    %v1652 = vunpack.c.h.b16 %v939
    %v1653 = vunpack.c.l.b16 %v940
    %v1654 = vunpack.c.h.b16 %v940
    %v1655 = vunpack.c.l.b16 %v941
    %v1656 = vunpack.c.h.b16 %v941
    %v1657 = vunpack.c.l.b16 %v942
    %v1658 = vunpack.c.h.b16 %v942
    %v1659 = vunpack.c.l.b16 %v943
    %v1660 = vunpack.c.h.b16 %v943
    %v1661 = vunpack.c.l.b16 %v944
    %v1662 = vunpack.c.h.b16 %v944
    %v1663 = vunpack.c.l.b16 %v945
    %v1664 = vunpack.c.h.b16 %v945
    %v1665 = vunpack.c.l.b16 %v946
    %v1666 = vunpack.c.h.b16 %v946
    %v1667 = vunpack.c.l.b16 %v947
    %v1668 = vunpack.c.h.b16 %v947
    %v1669 = vunpack.c.l.b16 %v948
    %v1670 = vunpack.c.h.b16 %v948
    %v1671 = vunpack.c.l.b16 %v949
    %v1672 = vunpack.c.h.b16 %v949
    %v1673 = vunpack.c.l.b16 %v950
    %v1674 = vunpack.c.h.b16 %v950
    %v1675 = vunpack.c.l.b16 %v951
    %v1676 = vunpack.c.h.b16 %v951
    %v1677 = vunpack.c.l.b16 %v952
    %v1678 = vunpack.c.h.b16 %v952
    %v1679 = vunpack.c.l.b16 %v953
    %v1680 = vunpack.c.h.b16 %v953
    %v1681 = vunpack.c.l.b16 %v954
    %v1682 = vunpack.c.h.b16 %v954
    %v1683 = vunpack.c.l.b16 %v955
    %v1684 = vunpack.c.h.b16 %v955
    %v1685 = vunpack.c.l.b16 %v956
    %v1686 = vunpack.c.h.b16 %v956
    %v1687 = vunpack.c.l.b16 %v957
    %v1688 = vunpack.c.h.b16 %v957
    %v1689 = vunpack.c.l.b16 %v958
    %v1690 = vunpack.c.h.b16 %v958
    %v1691 = vunpack.c.l.b16 %v959
    %v1692 = vunpack.c.h.b16 %v959
    %v1693 = vunpack.c.l.b16 %v960
    %v1694 = vunpack.c.h.b16 %v960
    %v1695 = vunpack.c.l.b16 %v961
    %v1696 = vunpack.c.h.b16 %v961
    %v1697 = vunpack.c.l.b16 %v962
    %v1698 = vunpack.c.h.b16 %v962
    %v1699 = vunpack.c.l.b16 %v963
    %v1700 = vunpack.c.h.b16 %v963
    %v1701 = vunpack.c.l.b16 %v964
    %v1702 = vunpack.c.h.b16 %v964
    %v1703 = vunpack.c.l.b16 %v965
    %v1704 = vunpack.c.h.b16 %v965
    %v1705 = vunpack.c.l.b16 %v966
    %v1706 = vunpack.c.h.b16 %v966
    %v1707 = vunpack.c.l.b16 %v967
    %v1708 = vunpack.c.h.b16 %v967
    %v1709 = vunpack.c.l.b16 %v968
    %v1710 = vunpack.c.h.b16 %v968
    %v1711 = vunpack.c.l.b16 %v969
    %v1712 = vunpack.c.h.b16 %v969
    %v1713 = vunpack.c.l.b16 %v970
    %v1714 = vunpack.c.h.b16 %v970
    %v1715 = vunpack.c.l.b16 %v971
    %v1716 = vunpack.c.h.b16 %v971
    %v1717 = vunpack.c.l.b16 %v972
    %v1718 = vunpack.c.h.b16 %v972
    %v1719 = vunpack.c.l.b16 %v973
    %v1720 = vunpack.c.h.b16 %v973
    %v1721 = vunpack.c.l.b16 %v974
    %v1722 = vunpack.c.h.b16 %v974
    %v1723 = vunpack.c.l.b16 %v975
    %v1724 = vunpack.c.h.b16 %v975
    %v1725 = vunpack.c.l.b16 %v976
    %v1726 = vunpack.c.h.b16 %v976
    %v1727 = vunpack.c.l.b16 %v977
    %v1728 = vunpack.c.h.b16 %v977
    %v1729 = vunpack.c.l.b16 %v978
    %v1730 = vunpack.c.h.b16 %v978
    %v1731 = vunpack.c.l.b16 %v979
    %v1732 = vunpack.c.h.b16 %v979
    %v1733 = vunpack.c.l.b16 %v980
    %v1734 = vunpack.c.h.b16 %v980
    %v1735 = vunpack.c.l.b16 %v981
    %v1736 = vunpack.c.h.b16 %v981
    %v1737 = vunpack.c.l.b16 %v982
    %v1738 = vunpack.c.h.b16 %v982
    %v1739 = vunpack.c.l.b16 %v983
    %v1740 = vunpack.c.h.b16 %v983
    %v1741 = vunpack.c.l.b16 %v984
    %v1742 = vunpack.c.h.b16 %v984
    %v1743 = vunpack.c.l.b16 %v985
    %v1744 = vunpack.c.h.b16 %v985
    %v1745 = vunpack.c.l.b16 %v986
    %v1746 = vunpack.c.h.b16 %v986
    %v1747 = vunpack.c.l.b16 %v987
    %v1748 = vunpack.c.h.b16 %v987
    %v1749 = vunpack.c.l.b16 %v988
    %v1750 = vunpack.c.h.b16 %v988
    %v1751 = vunpack.c.l.b16 %v989
    %v1752 = vunpack.c.h.b16 %v989
    %v1753 = vunpack.c.l.b16 %v990
    %v1754 = vunpack.c.h.b16 %v990
    %v1755 = vunpack.c.l.b16 %v991
    %v1756 = vunpack.c.h.b16 %v991
    %v1757 = vunpack.c.l.b16 %v992
    %v1758 = vunpack.c.h.b16 %v992
    %v1759 = vunpack.c.l.b16 %v993
    %v1760 = vunpack.c.h.b16 %v993
    %v1761 = vunpack.c.l.b16 %v994
    %v1762 = vunpack.c.h.b16 %v994
    %v1763 = vunpack.c.l.b16 %v995
    %v1764 = vunpack.c.h.b16 %v995
    %v1765 = vunpack.c.l.b16 %v996
    %v1766 = vunpack.c.h.b16 %v996
    %v1767 = vunpack.c.l.b16 %v997
    %v1768 = vunpack.c.h.b16 %v997
    %v1769 = vunpack.c.l.b16 %v998
    %v1770 = vunpack.c.h.b16 %v998
    %v1771 = vunpack.c.l.b16 %v999
    %v1772 = vunpack.c.h.b16 %v999
    %v1773 = vunpack.c.l.b16 %v1000
    %v1774 = vunpack.c.h.b16 %v1000
    %v1775 = vunpack.c.l.b16 %v1001
    %v1776 = vunpack.c.h.b16 %v1001
    %v1777 = vunpack.c.l.b16 %v1002
    %v1778 = vunpack.c.h.b16 %v1002
    %v1779 = vunpack.c.l.b16 %v1003
    %v1780 = vunpack.c.h.b16 %v1003
    %v1781 = vunpack.c.l.b16 %v1004
    %v1782 = vunpack.c.h.b16 %v1004
    %v1783 = vunpack.c.l.b16 %v1005
    %v1784 = vunpack.c.h.b16 %v1005
    %v1785 = vunpack.c.l.b16 %v1006
    %v1786 = vunpack.c.h.b16 %v1006
    %v1787 = vunpack.c.l.b16 %v1007
    %v1788 = vunpack.c.h.b16 %v1007
    %v1789 = vunpack.c.l.b16 %v1008
    %v1790 = vunpack.c.h.b16 %v1008
    %v1791 = vunpack.c.l.b16 %v1009
    %v1792 = vunpack.c.h.b16 %v1009
    %v1793 = vunpack.c.l.b16 %v1010
    %v1794 = vunpack.c.h.b16 %v1010
    %v1795 = vunpack.c.l.b16 %v1011
    %v1796 = vunpack.c.h.b16 %v1011
    %v1797 = vunpack.c.l.b16 %v1012
    %v1798 = vunpack.c.h.b16 %v1012
    %v1799 = vunpack.c.l.b16 %v1013
    %v1800 = vunpack.c.h.b16 %v1013
    %v1801 = vunpack.c.l.b16 %v1014
    %v1802 = vunpack.c.h.b16 %v1014
    %v1803 = vunpack.c.l.b16 %v1015
    %v1804 = vunpack.c.h.b16 %v1015
    %v1805 = vunpack.c.l.b16 %v1016
    %v1806 = vunpack.c.h.b16 %v1016
    %v1807 = vunpack.c.l.b16 %v1017
    %v1808 = vunpack.c.h.b16 %v1017
    %v1809 = vunpack.c.l.b16 %v1018
    %v1810 = vunpack.c.h.b16 %v1018
    %v1811 = vunpack.c.l.b16 %v1019
    %v1812 = vunpack.c.h.b16 %v1019
    %v1813 = vunpack.c.l.b16 %v1020
    %v1814 = vunpack.c.h.b16 %v1020
    %v1815 = vunpack.c.l.b16 %v1021
    %v1816 = vunpack.c.h.b16 %v1021
    %v1817 = vunpack.c.l.b16 %v1022
    %v1818 = vunpack.c.h.b16 %v1022
    %v1819 = vunpack.c.l.b16 %v1023
    %v1820 = vunpack.c.h.b16 %v1023
    %v1821 = vunpack.c.l.b16 %v1024
    %v1822 = vunpack.c.h.b16 %v1024
    %v1823 = vunpack.c.l.b16 %v1025
    %v1824 = vunpack.c.h.b16 %v1025
    %v1825 = vunpack.c.l.b16 %v1026
    %v1826 = vunpack.c.h.b16 %v1026
    %v1827 = vunpack.c.l.b16 %v1027
    %v1828 = vunpack.c.h.b16 %v1027
    %v1829 = vunpack.c.l.b16 %v1028
    %v1830 = vunpack.c.h.b16 %v1028
    %v1831 = vunpack.c.l.b16 %v1029
    %v1832 = vunpack.c.h.b16 %v1029
    %v1833 = vunpack.c.l.b16 %v1030
    %v1834 = vunpack.c.h.b16 %v1030
    %v1835 = vunpack.c.l.b16 %v1031
    %v1836 = vunpack.c.h.b16 %v1031
    %v1837 = vunpack.c.l.b16 %v1032
    %v1838 = vunpack.c.h.b16 %v1032
    %v1839 = vunpack.c.l.b16 %v1033
    %v1840 = vunpack.c.h.b16 %v1033
    %v1841 = vunpack.c.l.b16 %v1034
    %v1842 = vunpack.c.h.b16 %v1034
    %v1843 = vunpack.c.l.b16 %v1035
    %v1844 = vunpack.c.h.b16 %v1035
    %v1845 = vunpack.c.l.b16 %v1036
    %v1846 = vunpack.c.h.b16 %v1036
    %v1847 = vunpack.c.l.b16 %v1037
    %v1848 = vunpack.c.h.b16 %v1037
    %v1849 = vunpack.c.l.b16 %v1038
    %v1850 = vunpack.c.h.b16 %v1038
    %v1851 = vunpack.c.l.b16 %v1039
    %v1852 = vunpack.c.h.b16 %v1039
    %v1853 = vunpack.c.l.b16 %v1040
    %v1854 = vunpack.c.h.b16 %v1040
    %v1855 = vunpack.c.l.b16 %v1041
    %v1856 = vunpack.c.h.b16 %v1041
    %v1857 = vunpack.c.l.b16 %v1042
    %v1858 = vunpack.c.h.b16 %v1042
    %v1859 = vunpack.c.l.b16 %v1043
    %v1860 = vunpack.c.h.b16 %v1043
    %v1861 = vunpack.c.l.b16 %v1044
    %v1862 = vunpack.c.h.b16 %v1044
    %v1863 = vunpack.c.l.b16 %v1045
    %v1864 = vunpack.c.h.b16 %v1045
    %v1865 = vunpack.c.l.b16 %v1046
    %v1866 = vunpack.c.h.b16 %v1046
    %v1867 = vunpack.c.l.b16 %v1047
    %v1868 = vunpack.c.h.b16 %v1047
    %v1869 = vunpack.c.l.b16 %v1048
    %v1870 = vunpack.c.h.b16 %v1048
    %v1871 = vunpack.c.l.b16 %v1049
    %v1872 = vunpack.c.h.b16 %v1049
    %v1873 = vunpack.c.l.b16 %v1050
    %v1874 = vunpack.c.h.b16 %v1050
    %v1875 = vunpack.c.l.b16 %v1051
    %v1876 = vunpack.c.h.b16 %v1051
    %v1877 = vunpack.c.l.b16 %v1052
    %v1878 = vunpack.c.h.b16 %v1052
    %v1879 = vunpack.c.l.b16 %v1053
    %v1880 = vunpack.c.h.b16 %v1053
    %v1881 = vunpack.c.l.b16 %v1054
    %v1882 = vunpack.c.h.b16 %v1054
    %v1883 = vunpack.c.l.b16 %v1055
    %v1884 = vunpack.c.h.b16 %v1055
    %v1885 = vunpack.c.l.b16 %v1056
    %v1886 = vunpack.c.h.b16 %v1056
    %v1887 = vunpack.c.l.b16 %v1057
    %v1888 = vunpack.c.h.b16 %v1057
    %v1889 = vunpack.c.l.b16 %v1058
    %v1890 = vunpack.c.h.b16 %v1058
    %v1891 = vunpack.c.l.b16 %v1059
    %v1892 = vunpack.c.h.b16 %v1059
    %v1893 = vunpack.c.l.b16 %v1060
    %v1894 = vunpack.c.h.b16 %v1060
    %v1895 = vunpack.c.l.b16 %v1061
    %v1896 = vunpack.c.h.b16 %v1061
    %v1897 = vunpack.c.l.b16 %v1062
    %v1898 = vunpack.c.h.b16 %v1062
    %v1899 = vunpack.c.l.b16 %v1063
    %v1900 = vunpack.c.h.b16 %v1063
    %v1901 = vunpack.c.l.b16 %v1064
    %v1902 = vunpack.c.h.b16 %v1064
    %v1903 = vunpack.c.l.b16 %v1065
    %v1904 = vunpack.c.h.b16 %v1065
    %v1905 = vunpack.c.l.b16 %v1066
    %v1906 = vunpack.c.h.b16 %v1066
    %v1907 = vunpack.c.l.b16 %v1067
    %v1908 = vunpack.c.h.b16 %v1067
    %v1909 = vunpack.c.l.b16 %v1068
    %v1910 = vunpack.c.h.b16 %v1068
    %v1911 = vunpack.c.l.b16 %v1069
    %v1912 = vunpack.c.h.b16 %v1069
    %v1913 = vunpack.c.l.b16 %v1070
    %v1914 = vunpack.c.h.b16 %v1070
    %v1915 = vunpack.c.l.b16 %v1071
    %v1916 = vunpack.c.h.b16 %v1071
    %v1917 = vunpack.c.l.b16 %v1072
    %v1918 = vunpack.c.h.b16 %v1072
    %v1919 = vunpack.c.l.b16 %v1073
    %v1920 = vunpack.c.h.b16 %v1073
    %v1921 = vunpack.c.l.b16 %v1074
    %v1922 = vunpack.c.h.b16 %v1074
    %v1923 = vunpack.c.l.b16 %v1075
    %v1924 = vunpack.c.h.b16 %v1075
    %v1925 = vunpack.c.l.b16 %v1076
    %v1926 = vunpack.c.h.b16 %v1076
    %v1927 = vunpack.c.l.b16 %v1077
    %v1928 = vunpack.c.h.b16 %v1077
    %v1929 = vunpack.c.l.b16 %v1078
    %v1930 = vunpack.c.h.b16 %v1078
    %v1931 = vunpack.c.l.b16 %v1079
    %v1932 = vunpack.c.h.b16 %v1079
    %v1933 = vunpack.c.l.b16 %v1080
    %v1934 = vunpack.c.h.b16 %v1080
    %v1935 = vunpack.c.l.b16 %v1081
    %v1936 = vunpack.c.h.b16 %v1081
    %v1937 = vunpack.c.l.b16 %v1082
    %v1938 = vunpack.c.h.b16 %v1082
    %v1939 = vunpack.c.l.b16 %v1083
    %v1940 = vunpack.c.h.b16 %v1083
    %v1941 = vunpack.c.l.b16 %v1084
    %v1942 = vunpack.c.h.b16 %v1084
    %v1943 = vunpack.c.l.b16 %v1085
    %v1944 = vunpack.c.h.b16 %v1085
    %v1945 = vunpack.c.l.b16 %v1086
    %v1946 = vunpack.c.h.b16 %v1086
    %v1947 = vunpack.c.l.b16 %v1087
    %v1948 = vunpack.c.h.b16 %v1087
    %v1949 = vunpack.c.l.b16 %v1088
    %v1950 = vunpack.c.h.b16 %v1088
    %v1951 = vunpack.c.l.b16 %v1089
    %v1952 = vunpack.c.h.b16 %v1089
    %v1953 = vunpack.c.l.b16 %v1090
    %v1954 = vunpack.c.h.b16 %v1090
    %v1955 = vunpack.c.l.b16 %v1091
    %v1956 = vunpack.c.h.b16 %v1091
    %v1957 = vunpack.c.l.b16 %v1092
    %v1958 = vunpack.c.h.b16 %v1092
    %v1959 = vunpack.c.l.b16 %v1093
    %v1960 = vunpack.c.h.b16 %v1093
    %v1961 = vunpack.c.l.b16 %v1094
    %v1962 = vunpack.c.h.b16 %v1094
    %v1963 = vunpack.c.l.b16 %v1095
    %v1964 = vunpack.c.h.b16 %v1095
    %v1965 = vunpack.c.l.b16 %v1096
    %v1966 = vunpack.c.h.b16 %v1096
    %v1967 = vunpack.c.l.b16 %v1097
    %v1968 = vunpack.c.h.b16 %v1097
    %v1969 = vunpack.c.l.b16 %v1098
    %v1970 = vunpack.c.h.b16 %v1098
    %v1971 = vunpack.c.l.b16 %v1099
    %v1972 = vunpack.c.h.b16 %v1099
    %v1973 = vunpack.c.l.b16 %v1100
    %v1974 = vunpack.c.h.b16 %v1100
    %v1975 = vunpack.c.l.b16 %v1101
    %v1976 = vunpack.c.h.b16 %v1101
    %v1977 = vunpack.c.l.b16 %v1102
    %v1978 = vunpack.c.h.b16 %v1102
    %v1979 = vunpack.c.l.b16 %v1103
    %v1980 = vunpack.c.h.b16 %v1103
    %v1981 = vunpack.c.l.b16 %v1104
    %v1982 = vunpack.c.h.b16 %v1104
    %v1983 = vunpack.c.l.b16 %v1105
    %v1984 = vunpack.c.h.b16 %v1105
    %v1985 = vunpack.c.l.b16 %v1106
    %v1986 = vunpack.c.h.b16 %v1106
    %v1987 = vunpack.c.l.b16 %v1107
    %v1988 = vunpack.c.h.b16 %v1107
    %v1989 = vunpack.c.l.b16 %v1108
    %v1990 = vunpack.c.h.b16 %v1108
    %v1991 = vunpack.c.l.b16 %v1109
    %v1992 = vunpack.c.h.b16 %v1109
    %v1993 = vunpack.c.l.b16 %v1110
    %v1994 = vunpack.c.h.b16 %v1110
    %v1995 = vunpack.c.l.b16 %v1111
    %v1996 = vunpack.c.h.b16 %v1111
    %v1997 = vunpack.c.l.b16 %v1112
    %v1998 = vunpack.c.h.b16 %v1112
    %v1999 = vunpack.c.l.b16 %v1113
    %v2000 = vunpack.c.h.b16 %v1113
    %v2001 = vunpack.c.l.b16 %v1114
    %v2002 = vunpack.c.h.b16 %v1114
    %v2003 = vunpack.c.l.b16 %v1115
    %v2004 = vunpack.c.h.b16 %v1115
    %v2005 = vunpack.c.l.b16 %v1116
    %v2006 = vunpack.c.h.b16 %v1116
    %v2007 = vunpack.c.l.b16 %v1117
    %v2008 = vunpack.c.h.b16 %v1117
    %v2009 = vunpack.c.l.b16 %v1118
    %v2010 = vunpack.c.h.b16 %v1118
    %v2011 = vunpack.c.l.b16 %v1119
    %v2012 = vunpack.c.h.b16 %v1119
    %v2013 = vunpack.c.l.b16 %v1120
    %v2014 = vunpack.c.h.b16 %v1120
    %v2015 = vunpack.c.l.b16 %v1121
    %v2016 = vunpack.c.h.b16 %v1121
    %v2017 = vunpack.c.l.b16 %v1122
    %v2018 = vunpack.c.h.b16 %v1122
    %v2019 = vunpack.c.l.b16 %v1123
    %v2020 = vunpack.c.h.b16 %v1123
    %v2021 = vunpack.c.l.b16 %v1124
    %v2022 = vunpack.c.h.b16 %v1124
    %v2023 = vunpack.c.l.b16 %v1125
    %v2024 = vunpack.c.h.b16 %v1125
    %v2025 = vunpack.c.l.b16 %v1126
    %v2026 = vunpack.c.h.b16 %v1126
    %v2027 = vunpack.c.l.b16 %v1127
    %v2028 = vunpack.c.h.b16 %v1127
    %v2029 = vunpack.c.l.b16 %v1128
    %v2030 = vunpack.c.h.b16 %v1128
    %v2031 = vunpack.c.l.b16 %v1129
    %v2032 = vunpack.c.h.b16 %v1129
    %v2033 = vunpack.c.l.b16 %v1130
    %v2034 = vunpack.c.h.b16 %v1130
    %v2035 = vunpack.c.l.b16 %v1131
    %v2036 = vunpack.c.h.b16 %v1131
    %v2037 = vunpack.c.l.b16 %v1132
    %v2038 = vunpack.c.h.b16 %v1132
    %v2039 = vunpack.c.l.b16 %v1133
    %v2040 = vunpack.c.h.b16 %v1133
    %v2041 = vunpack.c.l.b16 %v1134
    %v2042 = vunpack.c.h.b16 %v1134
    %v2043 = vunpack.c.l.b16 %v1135
    %v2044 = vunpack.c.h.b16 %v1135
    %v2045 = vunpack.c.l.b16 %v1136
    %v2046 = vunpack.c.h.b16 %v1136
    %v2047 = vunpack.c.l.b16 %v1137
    %v2048 = vunpack.c.h.b16 %v1137
    %v2049 = vunpack.c.l.b16 %v1138
    %v2050 = vunpack.c.h.b16 %v1138
    %v2051 = vunpack.c.l.b16 %v1139
    %v2052 = vunpack.c.h.b16 %v1139
    %v2053 = vunpack.c.l.b16 %v1140
    %v2054 = vunpack.c.h.b16 %v1140
    %v2055 = vunpack.c.l.b16 %v1141
    %v2056 = vunpack.c.h.b16 %v1141
    %v2057 = vunpack.c.l.b16 %v1142
    %v2058 = vunpack.c.h.b16 %v1142
    %v2059 = vunpack.c.l.b16 %v1143
    %v2060 = vunpack.c.h.b16 %v1143
    %v2061 = vunpack.c.l.b16 %v1144
    %v2062 = vunpack.c.h.b16 %v1144
    %v2063 = vunpack.c.l.b16 %v1145
    %v2064 = vunpack.c.h.b16 %v1145
    %v2065 = vunpack.c.l.b16 %v1146
    %v2066 = vunpack.c.h.b16 %v1146
    %v2067 = vunpack.c.l.b16 %v1147
    %v2068 = vunpack.c.h.b16 %v1147
    %v2069 = vunpack.c.l.b16 %v1148
    %v2070 = vunpack.c.h.b16 %v1148
    %v2071 = vunpack.c.l.b16 %v1149
    %v2072 = vunpack.c.h.b16 %v1149
    %v2073 = vunpack.c.l.b16 %v1150
    %v2074 = vunpack.c.h.b16 %v1150
    %v2075 = vunpack.c.l.b16 %v1151
    %v2076 = vunpack.c.h.b16 %v1151
    %v2077 = vunpack.c.l.b16 %v1152
    %v2078 = vunpack.c.h.b16 %v1152
    %v2079 = vunpack.c.l.b16 %v1153
    %v2080 = vunpack.c.h.b16 %v1153
    %v2081 = vunpack.c.l.b16 %v1154
    %v2082 = vunpack.c.h.b16 %v1154
    %v2083 = vunpack.c.l.b16 %v1155
    %v2084 = vunpack.c.h.b16 %v1155
    %v2085 = vunpack.c.l.b16 %v1156
    %v2086 = vunpack.c.h.b16 %v1156
    %v2087 = vunpack.c.l.b16 %v1157
    %v2088 = vunpack.c.h.b16 %v1157
    %v2089 = vunpack.c.l.b16 %v1158
    %v2090 = vunpack.c.h.b16 %v1158
    %v2091 = vunpack.c.l.b16 %v1159
    %v2092 = vunpack.c.h.b16 %v1159
    %v2093 = vunpack.c.l.b16 %v1160
    %v2094 = vunpack.c.h.b16 %v1160
    %v2095 = vunpack.c.l.b16 %v1161
    %v2096 = vunpack.c.h.b16 %v1161
    %v2097 = vunpack.c.l.b16 %v1162
    %v2098 = vunpack.c.h.b16 %v1162
    %v2099 = vunpack.c.l.b16 %v1163
    %v2100 = vunpack.c.h.b16 %v1163
    %v2101 = vunpack.c.l.b16 %v1164
    %v2102 = vunpack.c.h.b16 %v1164
    %v2103 = vunpack.c.l.b16 %v1165
    %v2104 = vunpack.c.h.b16 %v1165
    %v2105 = vunpack.c.l.b16 %v1166
    %v2106 = vunpack.c.h.b16 %v1166
    %v2107 = vunpack.c.l.b16 %v1167
    %v2108 = vunpack.c.h.b16 %v1167
    %v2109 = vunpack.c.l.b16 %v1168
    %v2110 = vunpack.c.h.b16 %v1168
    %v2111 = vunpack.c.l.b16 %v1169
    %v2112 = vunpack.c.h.b16 %v1169
    %v2113 = vunpack.c.l.b16 %v1170
    %v2114 = vunpack.c.h.b16 %v1170
    %v2115 = vunpack.c.l.b16 %v1171
    %v2116 = vunpack.c.h.b16 %v1171
    %v2117 = vunpack.c.l.b16 %v1172
    %v2118 = vunpack.c.h.b16 %v1172
    %v2119 = vunpack.c.l.b16 %v1173
    %v2120 = vunpack.c.h.b16 %v1173
    %v2121 = vunpack.c.l.b16 %v1174
    %v2122 = vunpack.c.h.b16 %v1174
    %v2123 = vunpack.c.l.b16 %v1175
    %v2124 = vunpack.c.h.b16 %v1175
    %v2125 = vunpack.c.l.b16 %v1176
    %v2126 = vunpack.c.h.b16 %v1176
    %v2127 = vunpack.c.l.b16 %v1177
    %v2128 = vunpack.c.h.b16 %v1177
    %v2129 = vunpack.c.l.b16 %v1178
    %v2130 = vunpack.c.h.b16 %v1178
    %v2131 = vunpack.c.l.b16 %v1179
    %v2132 = vunpack.c.h.b16 %v1179
    %v2133 = vunpack.c.l.b16 %v1180
    %v2134 = vunpack.c.h.b16 %v1180
    %v2135 = vunpack.c.l.b16 %v1181
    %v2136 = vunpack.c.h.b16 %v1181
    %v2137 = vunpack.c.l.b16 %v1182
    %v2138 = vunpack.c.h.b16 %v1182
    %v2139 = vunpack.c.l.b16 %v1183
    %v2140 = vunpack.c.h.b16 %v1183
    %v2141 = vunpack.c.l.b16 %v1184
    %v2142 = vunpack.c.h.b16 %v1184
    %v2143 = vunpack.c.l.b16 %v1185
    %v2144 = vunpack.c.h.b16 %v1185
    %v2145 = vunpack.c.l.b16 %v1186
    %v2146 = vunpack.c.h.b16 %v1186
    %v2147 = vunpack.c.l.b16 %v1187
    %v2148 = vunpack.c.h.b16 %v1187
    %v2149 = vunpack.c.l.b16 %v1188
    %v2150 = vunpack.c.h.b16 %v1188
    %v2151 = vunpack.c.l.b16 %v1189
    %v2152 = vunpack.c.h.b16 %v1189
    %v2153 = vunpack.c.l.b16 %v1190
    %v2154 = vunpack.c.h.b16 %v1190
    %v2155 = vunpack.c.l.b16 %v1191
    %v2156 = vunpack.c.h.b16 %v1191
    %v2157 = vunpack.c.l.b16 %v1192
    %v2158 = vunpack.c.h.b16 %v1192
    %v2159 = vunpack.c.l.b16 %v1193
    %v2160 = vunpack.c.h.b16 %v1193
    %v2161 = vunpack.c.l.b16 %v1194
    %v2162 = vunpack.c.h.b16 %v1194
    %v2163 = vunpack.c.l.b16 %v1195
    %v2164 = vunpack.c.h.b16 %v1195
    %v2165 = vunpack.c.l.b16 %v1196
    %v2166 = vunpack.c.h.b16 %v1196
    %v2167 = vunpack.c.l.b16 %v1197
    %v2168 = vunpack.c.h.b16 %v1197
    %v2169 = vunpack.c.l.b16 %v1198
    %v2170 = vunpack.c.h.b16 %v1198
    %v2171 = vunpack.c.l.b16 %v1199
    %v2172 = vunpack.c.h.b16 %v1199
    %v2173 = vunpack.c.l.b16 %v1200
    %v2174 = vunpack.c.h.b16 %v1200
    %v2175 = vunpack.c.l.b16 %v1201
    %v2176 = vunpack.c.h.b16 %v1201
    %v2177 = vunpack.c.l.b16 %v1202
    %v2178 = vunpack.c.h.b16 %v1202
    %v2179 = vunpack.c.l.b16 %v1203
    %v2180 = vunpack.c.h.b16 %v1203
    %v2181 = vunpack.c.l.b16 %v1204
    %v2182 = vunpack.c.h.b16 %v1204
    %v2183 = vunpack.c.l.b16 %v1205
    %v2184 = vunpack.c.h.b16 %v1205
    %v2185 = vunpack.c.l.b16 %v1206
    %v2186 = vunpack.c.h.b16 %v1206
    %v2187 = vunpack.c.l.b16 %v1207
    %v2188 = vunpack.c.h.b16 %v1207
    %v2189 = vunpack.c.l.b16 %v1208
    %v2190 = vunpack.c.h.b16 %v1208
    %v2191 = vunpack.c.l.b16 %v1209
    %v2192 = vunpack.c.h.b16 %v1209
    %v2193 = vunpack.c.l.b16 %v1210
    %v2194 = vunpack.c.h.b16 %v1210
    %v2195 = vunpack.c.l.b16 %v1211
    %v2196 = vunpack.c.h.b16 %v1211
    %v2197 = vunpack.c.l.b16 %v1212
    %v2198 = vunpack.c.h.b16 %v1212
    %v2199 = vunpack.c.l.b16 %v1213
    %v2200 = vunpack.c.h.b16 %v1213
    %v2201 = vunpack.c.l.b16 %v1214
    %v2202 = vunpack.c.h.b16 %v1214
    %v2203 = vunpack.c.l.b16 %v1215
    %v2204 = vunpack.c.h.b16 %v1215
    %v2205 = vunpack.c.l.b16 %v1216
    %v2206 = vunpack.c.h.b16 %v1216
    %v2207 = vunpack.c.l.b16 %v1217
    %v2208 = vunpack.c.h.b16 %v1217
    %v2209 = vunpack.c.l.b16 %v1218
    %v2210 = vunpack.c.h.b16 %v1218
    %v2211 = vunpack.c.l.b16 %v1219
    %v2212 = vunpack.c.h.b16 %v1219
    %v2213 = vunpack.c.l.b16 %v1220
    %v2214 = vunpack.c.h.b16 %v1220
    %v2215 = vunpack.c.l.b16 %v1221
    %v2216 = vunpack.c.h.b16 %v1221
    %v2217 = vunpack.c.l.b16 %v1222
    %v2218 = vunpack.c.h.b16 %v1222
    %v2219 = vunpack.c.l.b16 %v1223
    %v2220 = vunpack.c.h.b16 %v1223
    %v2221 = vunpack.c.l.b16 %v1224
    %v2222 = vunpack.c.h.b16 %v1224
    %v2223 = vunpack.c.l.b16 %v1225
    %v2224 = vunpack.c.h.b16 %v1225
    %v2225 = vunpack.c.l.b16 %v1226
    %v2226 = vunpack.c.h.b16 %v1226
    %v2227 = vunpack.c.l.b16 %v1227
    %v2228 = vunpack.c.h.b16 %v1227
    %v2229 = vunpack.c.l.b16 %v1228
    %v2230 = vunpack.c.h.b16 %v1228
    %v2231 = vunpack.c.l.b16 %v1229
    %v2232 = vunpack.c.h.b16 %v1229
    %v2233 = vunpack.c.l.b16 %v1230
    %v2234 = vunpack.c.h.b16 %v1230
    %v2235 = vunpack.c.l.b16 %v1231
    %v2236 = vunpack.c.h.b16 %v1231
    %v2237 = vpack.c.b16 %v1617, %v1597
    %v2238 = vpack.c.b16 %v1618, %v1598
    %v2239 = vpack.c.b16 %v1619, %v1599
    %v2240 = vpack.c.b16 %v1620, %v1600
    %v2241 = vpack.c.b16 %v1621, %v1601
    %v2242 = vpack.c.b16 %v1622, %v1602
    %v2243 = vpack.c.b16 %v1623, %v1603
    %v2244 = vpack.c.b16 %v1624, %v1604
    %v2245 = vpack.c.b16 %v1625, %v1605
    %v2246 = vpack.c.b16 %v1626, %v1606
    %v2247 = vpack.c.b16 %v1627, %v1607
    %v2248 = vpack.c.b16 %v1628, %v1608
    %v2249 = vpack.c.b16 %v1629, %v1609
    %v2250 = vpack.c.b16 %v1630, %v1610
    %v2251 = vpack.c.b16 %v1631, %v1611
    %v2252 = vpack.c.b16 %v1632, %v1612
    %v2253 = vpack.c.b16 %v1633, %v1613
    %v2254 = vpack.c.b16 %v1634, %v1614
    %v2255 = vpack.c.b16 %v1635, %v1615
    %v2256 = vpack.c.b16 %v1636, %v1616
    %v2257 = vpack.c.b16 %v1657, %v1637
    %v2258 = vpack.c.b16 %v1658, %v1638
    %v2259 = vpack.c.b16 %v1659, %v1639
    %v2260 = vpack.c.b16 %v1660, %v1640
    %v2261 = vpack.c.b16 %v1661, %v1641
    %v2262 = vpack.c.b16 %v1662, %v1642
    %v2263 = vpack.c.b16 %v1663, %v1643
    %v2264 = vpack.c.b16 %v1664, %v1644
    %v2265 = vpack.c.b16 %v1665, %v1645
    %v2266 = vpack.c.b16 %v1666, %v1646
    %v2267 = vpack.c.b16 %v1667, %v1647
    %v2268 = vpack.c.b16 %v1668, %v1648
    %v2269 = vpack.c.b16 %v1669, %v1649
    %v2270 = vpack.c.b16 %v1670, %v1650
    %v2271 = vpack.c.b16 %v1671, %v1651
    %v2272 = vpack.c.b16 %v1672, %v1652
    %v2273 = vpack.c.b16 %v1673, %v1653
    %v2274 = vpack.c.b16 %v1674, %v1654
    %v2275 = vpack.c.b16 %v1675, %v1655
    %v2276 = vpack.c.b16 %v1676, %v1656
    %v2277 = vpack.c.b16 %v1697, %v1677
    %v2278 = vpack.c.b16 %v1698, %v1678
    %v2279 = vpack.c.b16 %v1699, %v1679
    %v2280 = vpack.c.b16 %v1700, %v1680
    %v2281 = vpack.c.b16 %v1701, %v1681
    %v2282 = vpack.c.b16 %v1702, %v1682
    %v2283 = vpack.c.b16 %v1703, %v1683
    %v2284 = vpack.c.b16 %v1704, %v1684
    %v2285 = vpack.c.b16 %v1705, %v1685
    %v2286 = vpack.c.b16 %v1706, %v1686
    %v2287 = vpack.c.b16 %v1707, %v1687
    %v2288 = vpack.c.b16 %v1708, %v1688
    %v2289 = vpack.c.b16 %v1709, %v1689
    %v2290 = vpack.c.b16 %v1710, %v1690
    %v2291 = vpack.c.b16 %v1711, %v1691
    %v2292 = vpack.c.b16 %v1712, %v1692
    %v2293 = vpack.c.b16 %v1713, %v1693
    %v2294 = vpack.c.b16 %v1714, %v1694
    %v2295 = vpack.c.b16 %v1715, %v1695
    %v2296 = vpack.c.b16 %v1716, %v1696
    %v2297 = vpack.c.b16 %v1737, %v1717
    %v2298 = vpack.c.b16 %v1738, %v1718
    %v2299 = vpack.c.b16 %v1739, %v1719
    %v2300 = vpack.c.b16 %v1740, %v1720
    %v2301 = vpack.c.b16 %v1741, %v1721
    %v2302 = vpack.c.b16 %v1742, %v1722
    %v2303 = vpack.c.b16 %v1743, %v1723
    %v2304 = vpack.c.b16 %v1744, %v1724
    %v2305 = vpack.c.b16 %v1745, %v1725
    %v2306 = vpack.c.b16 %v1746, %v1726
    %v2307 = vpack.c.b16 %v1747, %v1727
    %v2308 = vpack.c.b16 %v1748, %v1728
    %v2309 = vpack.c.b16 %v1749, %v1729
    %v2310 = vpack.c.b16 %v1750, %v1730
    %v2311 = vpack.c.b16 %v1751, %v1731
    %v2312 = vpack.c.b16 %v1752, %v1732
    %v2313 = vpack.c.b16 %v1753, %v1733
    %v2314 = vpack.c.b16 %v1754, %v1734
    %v2315 = vpack.c.b16 %v1755, %v1735
    %v2316 = vpack.c.b16 %v1756, %v1736
    %v2317 = vpack.c.b16 %v1777, %v1757
    %v2318 = vpack.c.b16 %v1778, %v1758
    %v2319 = vpack.c.b16 %v1779, %v1759
    %v2320 = vpack.c.b16 %v1780, %v1760
    %v2321 = vpack.c.b16 %v1781, %v1761
    %v2322 = vpack.c.b16 %v1782, %v1762
    %v2323 = vpack.c.b16 %v1783, %v1763
    %v2324 = vpack.c.b16 %v1784, %v1764
    %v2325 = vpack.c.b16 %v1785, %v1765
    %v2326 = vpack.c.b16 %v1786, %v1766
    %v2327 = vpack.c.b16 %v1787, %v1767
    %v2328 = vpack.c.b16 %v1788, %v1768
    %v2329 = vpack.c.b16 %v1789, %v1769
    %v2330 = vpack.c.b16 %v1790, %v1770
    %v2331 = vpack.c.b16 %v1791, %v1771
    %v2332 = vpack.c.b16 %v1792, %v1772
    %v2333 = vpack.c.b16 %v1793, %v1773
    %v2334 = vpack.c.b16 %v1794, %v1774
    %v2335 = vpack.c.b16 %v1795, %v1775
    %v2336 = vpack.c.b16 %v1796, %v1776
    %v2337 = vpack.c.b16 %v1817, %v1797
    %v2338 = vpack.c.b16 %v1818, %v1798
    %v2339 = vpack.c.b16 %v1819, %v1799
    %v2340 = vpack.c.b16 %v1820, %v1800
    %v2341 = vpack.c.b16 %v1821, %v1801
    %v2342 = vpack.c.b16 %v1822, %v1802
    %v2343 = vpack.c.b16 %v1823, %v1803
    %v2344 = vpack.c.b16 %v1824, %v1804
    %v2345 = vpack.c.b16 %v1825, %v1805
    %v2346 = vpack.c.b16 %v1826, %v1806
    %v2347 = vpack.c.b16 %v1827, %v1807
    %v2348 = vpack.c.b16 %v1828, %v1808
    %v2349 = vpack.c.b16 %v1829, %v1809
    %v2350 = vpack.c.b16 %v1830, %v1810
    %v2351 = vpack.c.b16 %v1831, %v1811
    %v2352 = vpack.c.b16 %v1832, %v1812
    %v2353 = vpack.c.b16 %v1833, %v1813
    %v2354 = vpack.c.b16 %v1834, %v1814
    %v2355 = vpack.c.b16 %v1835, %v1815
    %v2356 = vpack.c.b16 %v1836, %v1816
    %v2357 = vpack.c.b16 %v1857, %v1837
    %v2358 = vpack.c.b16 %v1858, %v1838
    %v2359 = vpack.c.b16 %v1859, %v1839
    %v2360 = vpack.c.b16 %v1860, %v1840
    %v2361 = vpack.c.b16 %v1861, %v1841
    %v2362 = vpack.c.b16 %v1862, %v1842
    %v2363 = vpack.c.b16 %v1863, %v1843
    %v2364 = vpack.c.b16 %v1864, %v1844
    %v2365 = vpack.c.b16 %v1865, %v1845
    %v2366 = vpack.c.b16 %v1866, %v1846
    %v2367 = vpack.c.b16 %v1867, %v1847
    %v2368 = vpack.c.b16 %v1868, %v1848
    %v2369 = vpack.c.b16 %v1869, %v1849
    %v2370 = vpack.c.b16 %v1870, %v1850
    %v2371 = vpack.c.b16 %v1871, %v1851
    %v2372 = vpack.c.b16 %v1872, %v1852
    %v2373 = vpack.c.b16 %v1873, %v1853
    %v2374 = vpack.c.b16 %v1874, %v1854
    %v2375 = vpack.c.b16 %v1875, %v1855
    %v2376 = vpack.c.b16 %v1876, %v1856
    %v2377 = vpack.c.b16 %v1897, %v1877
    %v2378 = vpack.c.b16 %v1898, %v1878
    %v2379 = vpack.c.b16 %v1899, %v1879
    %v2380 = vpack.c.b16 %v1900, %v1880
    %v2381 = vpack.c.b16 %v1901, %v1881
    %v2382 = vpack.c.b16 %v1902, %v1882
    %v2383 = vpack.c.b16 %v1903, %v1883
    %v2384 = vpack.c.b16 %v1904, %v1884
    %v2385 = vpack.c.b16 %v1905, %v1885
    %v2386 = vpack.c.b16 %v1906, %v1886
    %v2387 = vpack.c.b16 %v1907, %v1887
    %v2388 = vpack.c.b16 %v1908, %v1888
    %v2389 = vpack.c.b16 %v1909, %v1889
    %v2390 = vpack.c.b16 %v1910, %v1890
    %v2391 = vpack.c.b16 %v1911, %v1891
    %v2392 = vpack.c.b16 %v1912, %v1892
    %v2393 = vpack.c.b16 %v1913, %v1893
    %v2394 = vpack.c.b16 %v1914, %v1894
    %v2395 = vpack.c.b16 %v1915, %v1895
    %v2396 = vpack.c.b16 %v1916, %v1896
    %v2397 = vpack.c.b16 %v1937, %v1917
    %v2398 = vpack.c.b16 %v1938, %v1918
    %v2399 = vpack.c.b16 %v1939, %v1919
    %v2400 = vpack.c.b16 %v1940, %v1920
    %v2401 = vpack.c.b16 %v1941, %v1921
    %v2402 = vpack.c.b16 %v1942, %v1922
    %v2403 = vpack.c.b16 %v1943, %v1923
    %v2404 = vpack.c.b16 %v1944, %v1924
    %v2405 = vpack.c.b16 %v1945, %v1925
    %v2406 = vpack.c.b16 %v1946, %v1926
    %v2407 = vpack.c.b16 %v1947, %v1927
    %v2408 = vpack.c.b16 %v1948, %v1928
    %v2409 = vpack.c.b16 %v1949, %v1929
    %v2410 = vpack.c.b16 %v1950, %v1930
    %v2411 = vpack.c.b16 %v1951, %v1931
    %v2412 = vpack.c.b16 %v1952, %v1932
    %v2413 = vpack.c.b16 %v1953, %v1933
    %v2414 = vpack.c.b16 %v1954, %v1934
    %v2415 = vpack.c.b16 %v1955, %v1935
    %v2416 = vpack.c.b16 %v1956, %v1936
    %v2417 = vpack.c.b16 %v1977, %v1957
    %v2418 = vpack.c.b16 %v1978, %v1958
    %v2419 = vpack.c.b16 %v1979, %v1959
    %v2420 = vpack.c.b16 %v1980, %v1960
    %v2421 = vpack.c.b16 %v1981, %v1961
    %v2422 = vpack.c.b16 %v1982, %v1962
    %v2423 = vpack.c.b16 %v1983, %v1963
    %v2424 = vpack.c.b16 %v1984, %v1964
    %v2425 = vpack.c.b16 %v1985, %v1965
    %v2426 = vpack.c.b16 %v1986, %v1966
    %v2427 = vpack.c.b16 %v1987, %v1967
    %v2428 = vpack.c.b16 %v1988, %v1968
    %v2429 = vpack.c.b16 %v1989, %v1969
    %v2430 = vpack.c.b16 %v1990, %v1970
    %v2431 = vpack.c.b16 %v1991, %v1971
    %v2432 = vpack.c.b16 %v1992, %v1972
    %v2433 = vpack.c.b16 %v1993, %v1973
    %v2434 = vpack.c.b16 %v1994, %v1974
    %v2435 = vpack.c.b16 %v1995, %v1975
    %v2436 = vpack.c.b16 %v1996, %v1976
    %v2437 = vpack.c.b16 %v2017, %v1997
    %v2438 = vpack.c.b16 %v2018, %v1998
    %v2439 = vpack.c.b16 %v2019, %v1999
    %v2440 = vpack.c.b16 %v2020, %v2000
    %v2441 = vpack.c.b16 %v2021, %v2001
    %v2442 = vpack.c.b16 %v2022, %v2002
    %v2443 = vpack.c.b16 %v2023, %v2003
    %v2444 = vpack.c.b16 %v2024, %v2004
    %v2445 = vpack.c.b16 %v2025, %v2005
    %v2446 = vpack.c.b16 %v2026, %v2006
    %v2447 = vpack.c.b16 %v2027, %v2007
    %v2448 = vpack.c.b16 %v2028, %v2008
    %v2449 = vpack.c.b16 %v2029, %v2009
    %v2450 = vpack.c.b16 %v2030, %v2010
    %v2451 = vpack.c.b16 %v2031, %v2011
    %v2452 = vpack.c.b16 %v2032, %v2012
    %v2453 = vpack.c.b16 %v2033, %v2013
    %v2454 = vpack.c.b16 %v2034, %v2014
    %v2455 = vpack.c.b16 %v2035, %v2015
    %v2456 = vpack.c.b16 %v2036, %v2016
    %v2457 = vpack.c.b16 %v2057, %v2037
    %v2458 = vpack.c.b16 %v2058, %v2038
    %v2459 = vpack.c.b16 %v2059, %v2039
    %v2460 = vpack.c.b16 %v2060, %v2040
    %v2461 = vpack.c.b16 %v2061, %v2041
    %v2462 = vpack.c.b16 %v2062, %v2042
    %v2463 = vpack.c.b16 %v2063, %v2043
    %v2464 = vpack.c.b16 %v2064, %v2044
    %v2465 = vpack.c.b16 %v2065, %v2045
    %v2466 = vpack.c.b16 %v2066, %v2046
    %v2467 = vpack.c.b16 %v2067, %v2047
    %v2468 = vpack.c.b16 %v2068, %v2048
    %v2469 = vpack.c.b16 %v2069, %v2049
    %v2470 = vpack.c.b16 %v2070, %v2050
    %v2471 = vpack.c.b16 %v2071, %v2051
    %v2472 = vpack.c.b16 %v2072, %v2052
    %v2473 = vpack.c.b16 %v2073, %v2053
    %v2474 = vpack.c.b16 %v2074, %v2054
    %v2475 = vpack.c.b16 %v2075, %v2055
    %v2476 = vpack.c.b16 %v2076, %v2056
    %v2477 = vpack.c.b16 %v2097, %v2077
    %v2478 = vpack.c.b16 %v2098, %v2078
    %v2479 = vpack.c.b16 %v2099, %v2079
    %v2480 = vpack.c.b16 %v2100, %v2080
    %v2481 = vpack.c.b16 %v2101, %v2081
    %v2482 = vpack.c.b16 %v2102, %v2082
    %v2483 = vpack.c.b16 %v2103, %v2083
    %v2484 = vpack.c.b16 %v2104, %v2084
    %v2485 = vpack.c.b16 %v2105, %v2085
    %v2486 = vpack.c.b16 %v2106, %v2086
    %v2487 = vpack.c.b16 %v2107, %v2087
    %v2488 = vpack.c.b16 %v2108, %v2088
    %v2489 = vpack.c.b16 %v2109, %v2089
    %v2490 = vpack.c.b16 %v2110, %v2090
    %v2491 = vpack.c.b16 %v2111, %v2091
    %v2492 = vpack.c.b16 %v2112, %v2092
    %v2493 = vpack.c.b16 %v2113, %v2093
    %v2494 = vpack.c.b16 %v2114, %v2094
    %v2495 = vpack.c.b16 %v2115, %v2095
    %v2496 = vpack.c.b16 %v2116, %v2096
    %v2497 = vpack.c.b16 %v2137, %v2117
    %v2498 = vpack.c.b16 %v2138, %v2118
    %v2499 = vpack.c.b16 %v2139, %v2119
    %v2500 = vpack.c.b16 %v2140, %v2120
    %v2501 = vpack.c.b16 %v2141, %v2121
    %v2502 = vpack.c.b16 %v2142, %v2122
    %v2503 = vpack.c.b16 %v2143, %v2123
    %v2504 = vpack.c.b16 %v2144, %v2124
    %v2505 = vpack.c.b16 %v2145, %v2125
    %v2506 = vpack.c.b16 %v2146, %v2126
    %v2507 = vpack.c.b16 %v2147, %v2127
    %v2508 = vpack.c.b16 %v2148, %v2128
    %v2509 = vpack.c.b16 %v2149, %v2129
    %v2510 = vpack.c.b16 %v2150, %v2130
    %v2511 = vpack.c.b16 %v2151, %v2131
    %v2512 = vpack.c.b16 %v2152, %v2132
    %v2513 = vpack.c.b16 %v2153, %v2133
    %v2514 = vpack.c.b16 %v2154, %v2134
    %v2515 = vpack.c.b16 %v2155, %v2135
    %v2516 = vpack.c.b16 %v2156, %v2136
    %v2517 = vpack.c.b16 %v2177, %v2157
    %v2518 = vpack.c.b16 %v2178, %v2158
    %v2519 = vpack.c.b16 %v2179, %v2159
    %v2520 = vpack.c.b16 %v2180, %v2160
    %v2521 = vpack.c.b16 %v2181, %v2161
    %v2522 = vpack.c.b16 %v2182, %v2162
    %v2523 = vpack.c.b16 %v2183, %v2163
    %v2524 = vpack.c.b16 %v2184, %v2164
    %v2525 = vpack.c.b16 %v2185, %v2165
    %v2526 = vpack.c.b16 %v2186, %v2166
    %v2527 = vpack.c.b16 %v2187, %v2167
    %v2528 = vpack.c.b16 %v2188, %v2168
    %v2529 = vpack.c.b16 %v2189, %v2169
    %v2530 = vpack.c.b16 %v2190, %v2170
    %v2531 = vpack.c.b16 %v2191, %v2171
    %v2532 = vpack.c.b16 %v2192, %v2172
    %v2533 = vpack.c.b16 %v2193, %v2173
    %v2534 = vpack.c.b16 %v2194, %v2174
    %v2535 = vpack.c.b16 %v2195, %v2175
    %v2536 = vpack.c.b16 %v2196, %v2176
    %v2537 = vpack.c.b16 %v2217, %v2197
    %v2538 = vpack.c.b16 %v2218, %v2198
    %v2539 = vpack.c.b16 %v2219, %v2199
    %v2540 = vpack.c.b16 %v2220, %v2200
    %v2541 = vpack.c.b16 %v2221, %v2201
    %v2542 = vpack.c.b16 %v2222, %v2202
    %v2543 = vpack.c.b16 %v2223, %v2203
    %v2544 = vpack.c.b16 %v2224, %v2204
    %v2545 = vpack.c.b16 %v2225, %v2205
    %v2546 = vpack.c.b16 %v2226, %v2206
    %v2547 = vpack.c.b16 %v2227, %v2207
    %v2548 = vpack.c.b16 %v2228, %v2208
    %v2549 = vpack.c.b16 %v2229, %v2209
    %v2550 = vpack.c.b16 %v2230, %v2210
    %v2551 = vpack.c.b16 %v2231, %v2211
    %v2552 = vpack.c.b16 %v2232, %v2212
    %v2553 = vpack.c.b16 %v2233, %v2213
    %v2554 = vpack.c.b16 %v2234, %v2214
    %v2555 = vpack.c.b16 %v2235, %v2215
    %v2556 = vpack.c.b16 %v2236, %v2216
    %2877 = vmatpush.bf16.msra.mxu0 %v2377
    %2878 = vmatpush.bf16.msra.mxu0 %v2357
    %2879 = vmatpush.bf16.msra.mxu0 %v2337
    %2880 = vmatpush.bf16.msra.mxu0 %v2317
    %2881 = vmatpush.bf16.msra.mxu0 %v2297
    %2882 = vmatpush.bf16.msra.mxu0 %v2277
    %2883 = vmatpush.bf16.msra.mxu0 %v2257
    %2884 = vmatpush.bf16.msra.mxu0 %v2237
    %2885 = vmatmul.bf16.gmra.mxu0 %v1232
    %v2886 = vpop.f32.mrf.mxu0
    %v2887 = vadd.f32 %v1237, %v2886
    %v2888 = vpop.f32.mrf.mxu0
    %2889 = vdwg.mxu0
    %2890 = vmatpush.bf16.msra.mxu0 %v2537
    %2891 = vmatpush.bf16.msra.mxu0 %v2517
    %2892 = vmatpush.bf16.msra.mxu0 %v2497
    %2893 = vmatpush.bf16.msra.mxu0 %v2477
    %2894 = vmatpush.bf16.msra.mxu0 %v2457
    %2895 = vmatpush.bf16.msra.mxu0 %v2437
    %2896 = vmatpush.bf16.msra.mxu0 %v2417
    %2897 = vmatpush.bf16.msra.mxu0 %v2397
    %2898 = vmatmul.bf16.gmra.mxu0 %v1233
    %v2899 = vpop.f32.mrf.mxu0
    %v2900 = vadd.f32 %v2887, %v2899
    %v2901 = vpop.f32.mrf.mxu0
    %2902 = vdwg.mxu0
    %2903 = vmatpush.bf16.msra.mxu0 %v2378
    %2904 = vmatpush.bf16.msra.mxu0 %v2358
    %2905 = vmatpush.bf16.msra.mxu0 %v2338
    %2906 = vmatpush.bf16.msra.mxu0 %v2318
    %2907 = vmatpush.bf16.msra.mxu0 %v2298
    %2908 = vmatpush.bf16.msra.mxu0 %v2278
    %2909 = vmatpush.bf16.msra.mxu0 %v2258
    %2910 = vmatpush.bf16.msra.mxu0 %v2238
    %2911 = vmatmul.bf16.gmra.mxu0 %v1232
    %v2912 = vpop.f32.mrf.mxu0
    %v2913 = vadd.f32 %v1238, %v2912
    %v2914 = vpop.f32.mrf.mxu0
    %2915 = vdwg.mxu0
    %2916 = vmatpush.bf16.msra.mxu0 %v2538
    %2917 = vmatpush.bf16.msra.mxu0 %v2518
    %2918 = vmatpush.bf16.msra.mxu0 %v2498
    %2919 = vmatpush.bf16.msra.mxu0 %v2478
    %2920 = vmatpush.bf16.msra.mxu0 %v2458
    %2921 = vmatpush.bf16.msra.mxu0 %v2438
    %2922 = vmatpush.bf16.msra.mxu0 %v2418
    %2923 = vmatpush.bf16.msra.mxu0 %v2398
    %2924 = vmatmul.bf16.gmra.mxu0 %v1233
    %v2925 = vpop.f32.mrf.mxu0
    %v2926 = vadd.f32 %v2913, %v2925
    %v2927 = vpop.f32.mrf.mxu0
    %2928 = vdwg.mxu0
    %2929 = vmatpush.bf16.msra.mxu0 %v2379
    %2930 = vmatpush.bf16.msra.mxu0 %v2359
    %2931 = vmatpush.bf16.msra.mxu0 %v2339
    %2932 = vmatpush.bf16.msra.mxu0 %v2319
    %2933 = vmatpush.bf16.msra.mxu0 %v2299
    %2934 = vmatpush.bf16.msra.mxu0 %v2279
    %2935 = vmatpush.bf16.msra.mxu0 %v2259
    %2936 = vmatpush.bf16.msra.mxu0 %v2239
    %2937 = vmatmul.bf16.gmra.mxu0 %v1232
    %v2938 = vpop.f32.mrf.mxu0
    %v2939 = vadd.f32 %v1239, %v2938
    %v2940 = vpop.f32.mrf.mxu0
    %2941 = vdwg.mxu0
    %2942 = vmatpush.bf16.msra.mxu0 %v2539
    %2943 = vmatpush.bf16.msra.mxu0 %v2519
    %2944 = vmatpush.bf16.msra.mxu0 %v2499
    %2945 = vmatpush.bf16.msra.mxu0 %v2479
    %2946 = vmatpush.bf16.msra.mxu0 %v2459
    %2947 = vmatpush.bf16.msra.mxu0 %v2439
    %2948 = vmatpush.bf16.msra.mxu0 %v2419
    %2949 = vmatpush.bf16.msra.mxu0 %v2399
    %2950 = vmatmul.bf16.gmra.mxu0 %v1233
    %v2951 = vpop.f32.mrf.mxu0
    %v2952 = vadd.f32 %v2939, %v2951
    %v2953 = vpop.f32.mrf.mxu0
    %2954 = vdwg.mxu0
    %2955 = vmatpush.bf16.msra.mxu0 %v2380
    %2956 = vmatpush.bf16.msra.mxu0 %v2360
    %2957 = vmatpush.bf16.msra.mxu0 %v2340
    %2958 = vmatpush.bf16.msra.mxu0 %v2320
    %2959 = vmatpush.bf16.msra.mxu0 %v2300
    %2960 = vmatpush.bf16.msra.mxu0 %v2280
    %2961 = vmatpush.bf16.msra.mxu0 %v2260
    %2962 = vmatpush.bf16.msra.mxu0 %v2240
    %2963 = vmatmul.bf16.gmra.mxu0 %v1232
    %v2964 = vpop.f32.mrf.mxu0
    %v2965 = vadd.f32 %v1240, %v2964
    %v2966 = vpop.f32.mrf.mxu0
    %2967 = vdwg.mxu0
    %2968 = vmatpush.bf16.msra.mxu0 %v2540
    %2969 = vmatpush.bf16.msra.mxu0 %v2520
    %2970 = vmatpush.bf16.msra.mxu0 %v2500
    %2971 = vmatpush.bf16.msra.mxu0 %v2480
    %2972 = vmatpush.bf16.msra.mxu0 %v2460
    %2973 = vmatpush.bf16.msra.mxu0 %v2440
    %2974 = vmatpush.bf16.msra.mxu0 %v2420
    %2975 = vmatpush.bf16.msra.mxu0 %v2400
    %2976 = vmatmul.bf16.gmra.mxu0 %v1233
    %v2977 = vpop.f32.mrf.mxu0
    %v2978 = vadd.f32 %v2965, %v2977
    %v2979 = vpop.f32.mrf.mxu0
    %2980 = vdwg.mxu0
    %2981 = vmatpush.bf16.msra.mxu0 %v2381
    %2982 = vmatpush.bf16.msra.mxu0 %v2361
    %2983 = vmatpush.bf16.msra.mxu0 %v2341
    %2984 = vmatpush.bf16.msra.mxu0 %v2321
    %2985 = vmatpush.bf16.msra.mxu0 %v2301
    %2986 = vmatpush.bf16.msra.mxu0 %v2281
    %2987 = vmatpush.bf16.msra.mxu0 %v2261
    %2988 = vmatpush.bf16.msra.mxu0 %v2241
    %2989 = vmatmul.bf16.gmra.mxu0 %v1232
    %v2990 = vpop.f32.mrf.mxu0
    %v2991 = vadd.f32 %v1241, %v2990
    %v2992 = vpop.f32.mrf.mxu0
    %2993 = vdwg.mxu0
    %2994 = vmatpush.bf16.msra.mxu0 %v2541
    %2995 = vmatpush.bf16.msra.mxu0 %v2521
    %2996 = vmatpush.bf16.msra.mxu0 %v2501
    %2997 = vmatpush.bf16.msra.mxu0 %v2481
    %2998 = vmatpush.bf16.msra.mxu0 %v2461
    %2999 = vmatpush.bf16.msra.mxu0 %v2441
    %3000 = vmatpush.bf16.msra.mxu0 %v2421
    %3001 = vmatpush.bf16.msra.mxu0 %v2401
    %3002 = vmatmul.bf16.gmra.mxu0 %v1233
    %v3003 = vpop.f32.mrf.mxu0
    %v3004 = vadd.f32 %v2991, %v3003
    %v3005 = vpop.f32.mrf.mxu0
    %3006 = vdwg.mxu0
    %3007 = vmatpush.bf16.msra.mxu0 %v2382
    %3008 = vmatpush.bf16.msra.mxu0 %v2362
    %3009 = vmatpush.bf16.msra.mxu0 %v2342
    %3010 = vmatpush.bf16.msra.mxu0 %v2322
    %3011 = vmatpush.bf16.msra.mxu0 %v2302
    %3012 = vmatpush.bf16.msra.mxu0 %v2282
    %3013 = vmatpush.bf16.msra.mxu0 %v2262
    %3014 = vmatpush.bf16.msra.mxu0 %v2242
    %3015 = vmatmul.bf16.gmra.mxu0 %v1232
    %v3016 = vpop.f32.mrf.mxu0
    %v3017 = vadd.f32 %v1242, %v3016
    %v3018 = vpop.f32.mrf.mxu0
    %3019 = vdwg.mxu0
    %3020 = vmatpush.bf16.msra.mxu0 %v2542
    %3021 = vmatpush.bf16.msra.mxu0 %v2522
    %3022 = vmatpush.bf16.msra.mxu0 %v2502
    %3023 = vmatpush.bf16.msra.mxu0 %v2482
    %3024 = vmatpush.bf16.msra.mxu0 %v2462
    %3025 = vmatpush.bf16.msra.mxu0 %v2442
    %3026 = vmatpush.bf16.msra.mxu0 %v2422
    %3027 = vmatpush.bf16.msra.mxu0 %v2402
    %3028 = vmatmul.bf16.gmra.mxu0 %v1233
    %v3029 = vpop.f32.mrf.mxu0
    %v3030 = vadd.f32 %v3017, %v3029
    %v3031 = vpop.f32.mrf.mxu0
    %3032 = vdwg.mxu0
    %3033 = vmatpush.bf16.msra.mxu0 %v2383
    %3034 = vmatpush.bf16.msra.mxu0 %v2363
    %3035 = vmatpush.bf16.msra.mxu0 %v2343
    %3036 = vmatpush.bf16.msra.mxu0 %v2323
    %3037 = vmatpush.bf16.msra.mxu0 %v2303
    %3038 = vmatpush.bf16.msra.mxu0 %v2283
    %3039 = vmatpush.bf16.msra.mxu0 %v2263
    %3040 = vmatpush.bf16.msra.mxu0 %v2243
    %3041 = vmatmul.bf16.gmra.mxu0 %v1232
    %v3042 = vpop.f32.mrf.mxu0
    %v3043 = vadd.f32 %v1243, %v3042
    %v3044 = vpop.f32.mrf.mxu0
    %3045 = vdwg.mxu0
    %3046 = vmatpush.bf16.msra.mxu0 %v2543
    %3047 = vmatpush.bf16.msra.mxu0 %v2523
    %3048 = vmatpush.bf16.msra.mxu0 %v2503
    %3049 = vmatpush.bf16.msra.mxu0 %v2483
    %3050 = vmatpush.bf16.msra.mxu0 %v2463
    %3051 = vmatpush.bf16.msra.mxu0 %v2443
    %3052 = vmatpush.bf16.msra.mxu0 %v2423
    %3053 = vmatpush.bf16.msra.mxu0 %v2403
    %3054 = vmatmul.bf16.gmra.mxu0 %v1233
    %v3055 = vpop.f32.mrf.mxu0
    %v3056 = vadd.f32 %v3043, %v3055
    %v3057 = vpop.f32.mrf.mxu0
    %3058 = vdwg.mxu0
    %3059 = vmatpush.bf16.msra.mxu0 %v2384
    %3060 = vmatpush.bf16.msra.mxu0 %v2364
    %3061 = vmatpush.bf16.msra.mxu0 %v2344
    %3062 = vmatpush.bf16.msra.mxu0 %v2324
    %3063 = vmatpush.bf16.msra.mxu0 %v2304
    %3064 = vmatpush.bf16.msra.mxu0 %v2284
    %3065 = vmatpush.bf16.msra.mxu0 %v2264
    %3066 = vmatpush.bf16.msra.mxu0 %v2244
    %3067 = vmatmul.bf16.gmra.mxu0 %v1232
    %v3068 = vpop.f32.mrf.mxu0
    %v3069 = vadd.f32 %v1244, %v3068
    %v3070 = vpop.f32.mrf.mxu0
    %3071 = vdwg.mxu0
    %3072 = vmatpush.bf16.msra.mxu0 %v2544
    %3073 = vmatpush.bf16.msra.mxu0 %v2524
    %3074 = vmatpush.bf16.msra.mxu0 %v2504
    %3075 = vmatpush.bf16.msra.mxu0 %v2484
    %3076 = vmatpush.bf16.msra.mxu0 %v2464
    %3077 = vmatpush.bf16.msra.mxu0 %v2444
    %3078 = vmatpush.bf16.msra.mxu0 %v2424
    %3079 = vmatpush.bf16.msra.mxu0 %v2404
    %3080 = vmatmul.bf16.gmra.mxu0 %v1233
    %v3081 = vpop.f32.mrf.mxu0
    %v3082 = vadd.f32 %v3069, %v3081
    %v3083 = vpop.f32.mrf.mxu0
    %3084 = vdwg.mxu0
    %3085 = vmatpush.bf16.msra.mxu0 %v2385
    %3086 = vmatpush.bf16.msra.mxu0 %v2365
    %3087 = vmatpush.bf16.msra.mxu0 %v2345
    %3088 = vmatpush.bf16.msra.mxu0 %v2325
    %3089 = vmatpush.bf16.msra.mxu0 %v2305
    %3090 = vmatpush.bf16.msra.mxu0 %v2285
    %3091 = vmatpush.bf16.msra.mxu0 %v2265
    %3092 = vmatpush.bf16.msra.mxu0 %v2245
    %3093 = vmatmul.bf16.gmra.mxu0 %v1232
    %v3094 = vpop.f32.mrf.mxu0
    %v3095 = vadd.f32 %v1245, %v3094
    %v3096 = vpop.f32.mrf.mxu0
    %3097 = vdwg.mxu0
    %3098 = vmatpush.bf16.msra.mxu0 %v2545
    %3099 = vmatpush.bf16.msra.mxu0 %v2525
    %3100 = vmatpush.bf16.msra.mxu0 %v2505
    %3101 = vmatpush.bf16.msra.mxu0 %v2485
    %3102 = vmatpush.bf16.msra.mxu0 %v2465
    %3103 = vmatpush.bf16.msra.mxu0 %v2445
    %3104 = vmatpush.bf16.msra.mxu0 %v2425
    %3105 = vmatpush.bf16.msra.mxu0 %v2405
    %3106 = vmatmul.bf16.gmra.mxu0 %v1233
    %v3107 = vpop.f32.mrf.mxu0
    %v3108 = vadd.f32 %v3095, %v3107
    %v3109 = vpop.f32.mrf.mxu0
    %3110 = vdwg.mxu0
    %3111 = vmatpush.bf16.msra.mxu0 %v2386
    %3112 = vmatpush.bf16.msra.mxu0 %v2366
    %3113 = vmatpush.bf16.msra.mxu0 %v2346
    %3114 = vmatpush.bf16.msra.mxu0 %v2326
    %3115 = vmatpush.bf16.msra.mxu0 %v2306
    %3116 = vmatpush.bf16.msra.mxu0 %v2286
    %3117 = vmatpush.bf16.msra.mxu0 %v2266
    %3118 = vmatpush.bf16.msra.mxu0 %v2246
    %3119 = vmatmul.bf16.gmra.mxu0 %v1232
    %v3120 = vpop.f32.mrf.mxu0
    %v3121 = vadd.f32 %v1246, %v3120
    %v3122 = vpop.f32.mrf.mxu0
    %3123 = vdwg.mxu0
    %3124 = vmatpush.bf16.msra.mxu0 %v2546
    %3125 = vmatpush.bf16.msra.mxu0 %v2526
    %3126 = vmatpush.bf16.msra.mxu0 %v2506
    %3127 = vmatpush.bf16.msra.mxu0 %v2486
    %3128 = vmatpush.bf16.msra.mxu0 %v2466
    %3129 = vmatpush.bf16.msra.mxu0 %v2446
    %3130 = vmatpush.bf16.msra.mxu0 %v2426
    %3131 = vmatpush.bf16.msra.mxu0 %v2406
    %3132 = vmatmul.bf16.gmra.mxu0 %v1233
    %v3133 = vpop.f32.mrf.mxu0
    %v3134 = vadd.f32 %v3121, %v3133
    %v3135 = vpop.f32.mrf.mxu0
    %3136 = vdwg.mxu0
    %3137 = vmatpush.bf16.msra.mxu0 %v2387
    %3138 = vmatpush.bf16.msra.mxu0 %v2367
    %3139 = vmatpush.bf16.msra.mxu0 %v2347
    %3140 = vmatpush.bf16.msra.mxu0 %v2327
    %3141 = vmatpush.bf16.msra.mxu0 %v2307
    %3142 = vmatpush.bf16.msra.mxu0 %v2287
    %3143 = vmatpush.bf16.msra.mxu0 %v2267
    %3144 = vmatpush.bf16.msra.mxu0 %v2247
    %3145 = vmatmul.bf16.gmra.mxu0 %v1232
    %v3146 = vpop.f32.mrf.mxu0
    %v3147 = vadd.f32 %v1247, %v3146
    %v3148 = vpop.f32.mrf.mxu0
    %3149 = vdwg.mxu0
    %3150 = vmatpush.bf16.msra.mxu0 %v2547
    %3151 = vmatpush.bf16.msra.mxu0 %v2527
    %3152 = vmatpush.bf16.msra.mxu0 %v2507
    %3153 = vmatpush.bf16.msra.mxu0 %v2487
    %3154 = vmatpush.bf16.msra.mxu0 %v2467
    %3155 = vmatpush.bf16.msra.mxu0 %v2447
    %3156 = vmatpush.bf16.msra.mxu0 %v2427
    %3157 = vmatpush.bf16.msra.mxu0 %v2407
    %3158 = vmatmul.bf16.gmra.mxu0 %v1233
    %v3159 = vpop.f32.mrf.mxu0
    %v3160 = vadd.f32 %v3147, %v3159
    %v3161 = vpop.f32.mrf.mxu0
    %3162 = vdwg.mxu0
    %3163 = vmatpush.bf16.msra.mxu0 %v2388
    %3164 = vmatpush.bf16.msra.mxu0 %v2368
    %3165 = vmatpush.bf16.msra.mxu0 %v2348
    %3166 = vmatpush.bf16.msra.mxu0 %v2328
    %3167 = vmatpush.bf16.msra.mxu0 %v2308
    %3168 = vmatpush.bf16.msra.mxu0 %v2288
    %3169 = vmatpush.bf16.msra.mxu0 %v2268
    %3170 = vmatpush.bf16.msra.mxu0 %v2248
    %3171 = vmatmul.bf16.gmra.mxu0 %v1232
    %v3172 = vpop.f32.mrf.mxu0
    %v3173 = vadd.f32 %v1248, %v3172
    %v3174 = vpop.f32.mrf.mxu0
    %3175 = vdwg.mxu0
    %3176 = vmatpush.bf16.msra.mxu0 %v2548
    %3177 = vmatpush.bf16.msra.mxu0 %v2528
    %3178 = vmatpush.bf16.msra.mxu0 %v2508
    %3179 = vmatpush.bf16.msra.mxu0 %v2488
    %3180 = vmatpush.bf16.msra.mxu0 %v2468
    %3181 = vmatpush.bf16.msra.mxu0 %v2448
    %3182 = vmatpush.bf16.msra.mxu0 %v2428
    %3183 = vmatpush.bf16.msra.mxu0 %v2408
    %3184 = vmatmul.bf16.gmra.mxu0 %v1233
    %v3185 = vpop.f32.mrf.mxu0
    %v3186 = vadd.f32 %v3173, %v3185
    %v3187 = vpop.f32.mrf.mxu0
    %3188 = vdwg.mxu0
    %3189 = vmatpush.bf16.msra.mxu0 %v2389
    %3190 = vmatpush.bf16.msra.mxu0 %v2369
    %3191 = vmatpush.bf16.msra.mxu0 %v2349
    %3192 = vmatpush.bf16.msra.mxu0 %v2329
    %3193 = vmatpush.bf16.msra.mxu0 %v2309
    %3194 = vmatpush.bf16.msra.mxu0 %v2289
    %3195 = vmatpush.bf16.msra.mxu0 %v2269
    %3196 = vmatpush.bf16.msra.mxu0 %v2249
    %3197 = vmatmul.bf16.gmra.mxu0 %v1232
    %v3198 = vpop.f32.mrf.mxu0
    %v3199 = vadd.f32 %v1249, %v3198
    %v3200 = vpop.f32.mrf.mxu0
    %3201 = vdwg.mxu0
    %3202 = vmatpush.bf16.msra.mxu0 %v2549
    %3203 = vmatpush.bf16.msra.mxu0 %v2529
    %3204 = vmatpush.bf16.msra.mxu0 %v2509
    %3205 = vmatpush.bf16.msra.mxu0 %v2489
    %3206 = vmatpush.bf16.msra.mxu0 %v2469
    %3207 = vmatpush.bf16.msra.mxu0 %v2449
    %3208 = vmatpush.bf16.msra.mxu0 %v2429
    %3209 = vmatpush.bf16.msra.mxu0 %v2409
    %3210 = vmatmul.bf16.gmra.mxu0 %v1233
    %v3211 = vpop.f32.mrf.mxu0
    %v3212 = vadd.f32 %v3199, %v3211
    %v3213 = vpop.f32.mrf.mxu0
    %3214 = vdwg.mxu0
    %3215 = vmatpush.bf16.msra.mxu0 %v2390
    %3216 = vmatpush.bf16.msra.mxu0 %v2370
    %3217 = vmatpush.bf16.msra.mxu0 %v2350
    %3218 = vmatpush.bf16.msra.mxu0 %v2330
    %3219 = vmatpush.bf16.msra.mxu0 %v2310
    %3220 = vmatpush.bf16.msra.mxu0 %v2290
    %3221 = vmatpush.bf16.msra.mxu0 %v2270
    %3222 = vmatpush.bf16.msra.mxu0 %v2250
    %3223 = vmatmul.bf16.gmra.mxu0 %v1232
    %v3224 = vpop.f32.mrf.mxu0
    %v3225 = vadd.f32 %v1250, %v3224
    %v3226 = vpop.f32.mrf.mxu0
    %3227 = vdwg.mxu0
    %3228 = vmatpush.bf16.msra.mxu0 %v2550
    %3229 = vmatpush.bf16.msra.mxu0 %v2530
    %3230 = vmatpush.bf16.msra.mxu0 %v2510
    %3231 = vmatpush.bf16.msra.mxu0 %v2490
    %3232 = vmatpush.bf16.msra.mxu0 %v2470
    %3233 = vmatpush.bf16.msra.mxu0 %v2450
    %3234 = vmatpush.bf16.msra.mxu0 %v2430
    %3235 = vmatpush.bf16.msra.mxu0 %v2410
    %3236 = vmatmul.bf16.gmra.mxu0 %v1233
    %v3237 = vpop.f32.mrf.mxu0
    %v3238 = vadd.f32 %v3225, %v3237
    %v3239 = vpop.f32.mrf.mxu0
    %3240 = vdwg.mxu0
    %3241 = vmatpush.bf16.msra.mxu0 %v2391
    %3242 = vmatpush.bf16.msra.mxu0 %v2371
    %3243 = vmatpush.bf16.msra.mxu0 %v2351
    %3244 = vmatpush.bf16.msra.mxu0 %v2331
    %3245 = vmatpush.bf16.msra.mxu0 %v2311
    %3246 = vmatpush.bf16.msra.mxu0 %v2291
    %3247 = vmatpush.bf16.msra.mxu0 %v2271
    %3248 = vmatpush.bf16.msra.mxu0 %v2251
    %3249 = vmatmul.bf16.gmra.mxu0 %v1232
    %v3250 = vpop.f32.mrf.mxu0
    %v3251 = vadd.f32 %v1251, %v3250
    %v3252 = vpop.f32.mrf.mxu0
    %3253 = vdwg.mxu0
    %3254 = vmatpush.bf16.msra.mxu0 %v2551
    %3255 = vmatpush.bf16.msra.mxu0 %v2531
    %3256 = vmatpush.bf16.msra.mxu0 %v2511
    %3257 = vmatpush.bf16.msra.mxu0 %v2491
    %3258 = vmatpush.bf16.msra.mxu0 %v2471
    %3259 = vmatpush.bf16.msra.mxu0 %v2451
    %3260 = vmatpush.bf16.msra.mxu0 %v2431
    %3261 = vmatpush.bf16.msra.mxu0 %v2411
    %3262 = vmatmul.bf16.gmra.mxu0 %v1233
    %v3263 = vpop.f32.mrf.mxu0
    %v3264 = vadd.f32 %v3251, %v3263
    %v3265 = vpop.f32.mrf.mxu0
    %3266 = vdwg.mxu0
    %3267 = vmatpush.bf16.msra.mxu0 %v2392
    %3268 = vmatpush.bf16.msra.mxu0 %v2372
    %3269 = vmatpush.bf16.msra.mxu0 %v2352
    %3270 = vmatpush.bf16.msra.mxu0 %v2332
    %3271 = vmatpush.bf16.msra.mxu0 %v2312
    %3272 = vmatpush.bf16.msra.mxu0 %v2292
    %3273 = vmatpush.bf16.msra.mxu0 %v2272
    %3274 = vmatpush.bf16.msra.mxu0 %v2252
    %3275 = vmatmul.bf16.gmra.mxu0 %v1232
    %v3276 = vpop.f32.mrf.mxu0
    %v3277 = vadd.f32 %v1252, %v3276
    %v3278 = vpop.f32.mrf.mxu0
    %3279 = vdwg.mxu0
    %3280 = vmatpush.bf16.msra.mxu0 %v2552
    %3281 = vmatpush.bf16.msra.mxu0 %v2532
    %3282 = vmatpush.bf16.msra.mxu0 %v2512
    %3283 = vmatpush.bf16.msra.mxu0 %v2492
    %3284 = vmatpush.bf16.msra.mxu0 %v2472
    %3285 = vmatpush.bf16.msra.mxu0 %v2452
    %3286 = vmatpush.bf16.msra.mxu0 %v2432
    %3287 = vmatpush.bf16.msra.mxu0 %v2412
    %3288 = vmatmul.bf16.gmra.mxu0 %v1233
    %v3289 = vpop.f32.mrf.mxu0
    %v3290 = vadd.f32 %v3277, %v3289
    %v3291 = vpop.f32.mrf.mxu0
    %3292 = vdwg.mxu0
    %3293 = vmatpush.bf16.msra.mxu0 %v2393
    %3294 = vmatpush.bf16.msra.mxu0 %v2373
    %3295 = vmatpush.bf16.msra.mxu0 %v2353
    %3296 = vmatpush.bf16.msra.mxu0 %v2333
    %3297 = vmatpush.bf16.msra.mxu0 %v2313
    %3298 = vmatpush.bf16.msra.mxu0 %v2293
    %3299 = vmatpush.bf16.msra.mxu0 %v2273
    %3300 = vmatpush.bf16.msra.mxu0 %v2253
    %3301 = vmatmul.bf16.gmra.mxu0 %v1232
    %v3302 = vpop.f32.mrf.mxu0
    %v3303 = vadd.f32 %v1253, %v3302
    %v3304 = vpop.f32.mrf.mxu0
    %3305 = vdwg.mxu0
    %3306 = vmatpush.bf16.msra.mxu0 %v2553
    %3307 = vmatpush.bf16.msra.mxu0 %v2533
    %3308 = vmatpush.bf16.msra.mxu0 %v2513
    %3309 = vmatpush.bf16.msra.mxu0 %v2493
    %3310 = vmatpush.bf16.msra.mxu0 %v2473
    %3311 = vmatpush.bf16.msra.mxu0 %v2453
    %3312 = vmatpush.bf16.msra.mxu0 %v2433
    %3313 = vmatpush.bf16.msra.mxu0 %v2413
    %3314 = vmatmul.bf16.gmra.mxu0 %v1233
    %v3315 = vpop.f32.mrf.mxu0
    %v3316 = vadd.f32 %v3303, %v3315
    %v3317 = vpop.f32.mrf.mxu0
    %3318 = vdwg.mxu0
    %3319 = vmatpush.bf16.msra.mxu0 %v2394
    %3320 = vmatpush.bf16.msra.mxu0 %v2374
    %3321 = vmatpush.bf16.msra.mxu0 %v2354
    %3322 = vmatpush.bf16.msra.mxu0 %v2334
    %3323 = vmatpush.bf16.msra.mxu0 %v2314
    %3324 = vmatpush.bf16.msra.mxu0 %v2294
    %3325 = vmatpush.bf16.msra.mxu0 %v2274
    %3326 = vmatpush.bf16.msra.mxu0 %v2254
    %3327 = vmatmul.bf16.gmra.mxu0 %v1232
    %v3328 = vpop.f32.mrf.mxu0
    %v3329 = vadd.f32 %v1254, %v3328
    %v3330 = vpop.f32.mrf.mxu0
    %3331 = vdwg.mxu0
    %3332 = vmatpush.bf16.msra.mxu0 %v2554
    %3333 = vmatpush.bf16.msra.mxu0 %v2534
    %3334 = vmatpush.bf16.msra.mxu0 %v2514
    %3335 = vmatpush.bf16.msra.mxu0 %v2494
    %3336 = vmatpush.bf16.msra.mxu0 %v2474
    %3337 = vmatpush.bf16.msra.mxu0 %v2454
    %3338 = vmatpush.bf16.msra.mxu0 %v2434
    %3339 = vmatpush.bf16.msra.mxu0 %v2414
    %3340 = vmatmul.bf16.gmra.mxu0 %v1233
    %v3341 = vpop.f32.mrf.mxu0
    %v3342 = vadd.f32 %v3329, %v3341
    %v3343 = vpop.f32.mrf.mxu0
    %3344 = vdwg.mxu0
    %3345 = vmatpush.bf16.msra.mxu0 %v2395
    %3346 = vmatpush.bf16.msra.mxu0 %v2375
    %3347 = vmatpush.bf16.msra.mxu0 %v2355
    %3348 = vmatpush.bf16.msra.mxu0 %v2335
    %3349 = vmatpush.bf16.msra.mxu0 %v2315
    %3350 = vmatpush.bf16.msra.mxu0 %v2295
    %3351 = vmatpush.bf16.msra.mxu0 %v2275
    %3352 = vmatpush.bf16.msra.mxu0 %v2255
    %3353 = vmatmul.bf16.gmra.mxu0 %v1232
    %v3354 = vpop.f32.mrf.mxu0
    %v3355 = vadd.f32 %v1255, %v3354
    %v3356 = vpop.f32.mrf.mxu0
    %3357 = vdwg.mxu0
    %3358 = vmatpush.bf16.msra.mxu0 %v2555
    %3359 = vmatpush.bf16.msra.mxu0 %v2535
    %3360 = vmatpush.bf16.msra.mxu0 %v2515
    %3361 = vmatpush.bf16.msra.mxu0 %v2495
    %3362 = vmatpush.bf16.msra.mxu0 %v2475
    %3363 = vmatpush.bf16.msra.mxu0 %v2455
    %3364 = vmatpush.bf16.msra.mxu0 %v2435
    %3365 = vmatpush.bf16.msra.mxu0 %v2415
    %3366 = vmatmul.bf16.gmra.mxu0 %v1233
    %v3367 = vpop.f32.mrf.mxu0
    %v3368 = vadd.f32 %v3355, %v3367
    %v3369 = vpop.f32.mrf.mxu0
    %3370 = vdwg.mxu0
    %3371 = vmatpush.bf16.msra.mxu0 %v2396
    %3372 = vmatpush.bf16.msra.mxu0 %v2376
    %3373 = vmatpush.bf16.msra.mxu0 %v2356
    %3374 = vmatpush.bf16.msra.mxu0 %v2336
    %3375 = vmatpush.bf16.msra.mxu0 %v2316
    %3376 = vmatpush.bf16.msra.mxu0 %v2296
    %3377 = vmatpush.bf16.msra.mxu0 %v2276
    %3378 = vmatpush.bf16.msra.mxu0 %v2256
    %3379 = vmatmul.bf16.gmra.mxu0 %v1232
    %v3380 = vpop.f32.mrf.mxu0
    %v3381 = vadd.f32 %v1256, %v3380
    %v3382 = vpop.f32.mrf.mxu0
    %3383 = vdwg.mxu0
    %3384 = vmatpush.bf16.msra.mxu0 %v2556
    %3385 = vmatpush.bf16.msra.mxu0 %v2536
    %3386 = vmatpush.bf16.msra.mxu0 %v2516
    %3387 = vmatpush.bf16.msra.mxu0 %v2496
    %3388 = vmatpush.bf16.msra.mxu0 %v2476
    %3389 = vmatpush.bf16.msra.mxu0 %v2456
    %3390 = vmatpush.bf16.msra.mxu0 %v2436
    %3391 = vmatpush.bf16.msra.mxu0 %v2416
    %3392 = vmatmul.bf16.gmra.mxu0 %v1233
    %v3393 = vpop.f32.mrf.mxu0
    %v3394 = vadd.f32 %v3381, %v3393
    %v3395 = vpop.f32.mrf.mxu0
    %3396 = vdwg.mxu0
    %v3397 = vmax.f32 %v2900, 0.0
    %v3398 = vmax.f32 %v2926, 0.0
    %v3399 = vmax.f32 %v2952, 0.0
    %v3400 = vmax.f32 %v2978, 0.0
    %v3401 = vmax.f32 %v3004, 0.0
    %v3402 = vmax.f32 %v3030, 0.0
    %v3403 = vmax.f32 %v3056, 0.0
    %v3404 = vmax.f32 %v3082, 0.0
    %v3405 = vmax.f32 %v3108, 0.0
    %v3406 = vmax.f32 %v3134, 0.0
    %v3407 = vmax.f32 %v3160, 0.0
    %v3408 = vmax.f32 %v3186, 0.0
    %v3409 = vmax.f32 %v3212, 0.0
    %v3410 = vmax.f32 %v3238, 0.0
    %v3411 = vmax.f32 %v3264, 0.0
    %v3412 = vmax.f32 %v3290, 0.0
    %v3413 = vmax.f32 %v3316, 0.0
    %v3414 = vmax.f32 %v3342, 0.0
    %v3415 = vmax.f32 %v3368, 0.0
    %v3416 = vmax.f32 %v3394, 0.0
    %v3417 = vld [vmem:[#allocation6] sm:$0xff]
    %v3418 = vld [vmem:[#allocation6 + $0x8] sm:$0xff]
    %v3419 = vld [vmem:[#allocation6 + $0x10] sm:$0xff]
    %v3420 = vld [vmem:[#allocation6 + $0x18] sm:$0xff]
    %v3421 = vld [vmem:[#allocation6 + $0x20] sm:$0xff]
    %v3422 = vld [vmem:[#allocation6 + $0x28] sm:$0xff]
    %v3423 = vld [vmem:[#allocation6 + $0x30] sm:$0xff]
    %v3424 = vld [vmem:[#allocation6 + $0x38] sm:$0xff]
    %v3425 = vld [vmem:[#allocation6 + $0x40] sm:$0xff]
    %v3426 = vld [vmem:[#allocation6 + $0x48] sm:$0xff]
    %v3427 = vld [vmem:[#allocation6 + $0x50] sm:$0xff]
    %v3428 = vld [vmem:[#allocation6 + $0x58] sm:$0xff]
    %v3429 = vld [vmem:[#allocation6 + $0x60] sm:$0xff]
    %v3430 = vld [vmem:[#allocation6 + $0x68] sm:$0xff]
    %v3431 = vld [vmem:[#allocation6 + $0x70] sm:$0xff]
    %v3432 = vld [vmem:[#allocation6 + $0x78] sm:$0xff]
    %v3433 = vld [vmem:[#allocation6 + $0x80] sm:$0xff]
    %v3434 = vld [vmem:[#allocation6 + $0x88] sm:$0xff]
    %v3435 = vld [vmem:[#allocation6 + $0x90] sm:$0xff]
    %v3436 = vld [vmem:[#allocation6 + $0x98] sm:$0xff]
    %v3437 = vld [vmem:[#allocation6 + $0xa0] sm:$0xff]
    %v3438 = vld [vmem:[#allocation6 + $0xa8] sm:$0xff]
    %v3439 = vld [vmem:[#allocation6 + $0xb0] sm:$0xff]
    %v3440 = vld [vmem:[#allocation6 + $0xb8] sm:$0xff]
    %v3441 = vld [vmem:[#allocation6 + $0xc0] sm:$0xff]
    %v3442 = vld [vmem:[#allocation6 + $0xc8] sm:$0xff]
    %v3443 = vld [vmem:[#allocation6 + $0xd0] sm:$0xff]
    %v3444 = vld [vmem:[#allocation6 + $0xd8] sm:$0xff]
    %v3445 = vld [vmem:[#allocation6 + $0xe0] sm:$0xff]
    %v3446 = vld [vmem:[#allocation6 + $0xe8] sm:$0xff]
    %v3447 = vld [vmem:[#allocation6 + $0xf0] sm:$0xff]
    %v3448 = vld [vmem:[#allocation6 + $0xf8] sm:$0xff]
    %v3449 = vld [vmem:[#allocation6 + $0x100] sm:$0xff]
    %v3450 = vld [vmem:[#allocation6 + $0x108] sm:$0xff]
    %v3451 = vld [vmem:[#allocation6 + $0x110] sm:$0xff]
    %v3452 = vld [vmem:[#allocation6 + $0x118] sm:$0xff]
    %v3453 = vld [vmem:[#allocation6 + $0x120] sm:$0xff]
    %v3454 = vld [vmem:[#allocation6 + $0x128] sm:$0xff]
    %v3455 = vld [vmem:[#allocation6 + $0x130] sm:$0xff]
    %v3456 = vld [vmem:[#allocation6 + $0x138] sm:$0xff]
    %v3457 = vld [vmem:[#allocation6 + $0x140] sm:$0xff]
    %v3458 = vld [vmem:[#allocation6 + $0x148] sm:$0xff]
    %v3459 = vld [vmem:[#allocation6 + $0x150] sm:$0xff]
    %v3460 = vld [vmem:[#allocation6 + $0x158] sm:$0xff]
    %v3461 = vld [vmem:[#allocation6 + $0x160] sm:$0xff]
    %v3462 = vld [vmem:[#allocation6 + $0x168] sm:$0xff]
    %v3463 = vld [vmem:[#allocation6 + $0x170] sm:$0xff]
    %v3464 = vld [vmem:[#allocation6 + $0x178] sm:$0xff]
    %v3465 = vld [vmem:[#allocation6 + $0x180] sm:$0xff]
    %v3466 = vld [vmem:[#allocation6 + $0x188] sm:$0xff]
    %v3467 = vld [vmem:[#allocation6 + $0x190] sm:$0xff]
    %v3468 = vld [vmem:[#allocation6 + $0x198] sm:$0xff]
    %v3469 = vld [vmem:[#allocation6 + $0x1a0] sm:$0xff]
    %v3470 = vld [vmem:[#allocation6 + $0x1a8] sm:$0xff]
    %v3471 = vld [vmem:[#allocation6 + $0x1b0] sm:$0xff]
    %v3472 = vld [vmem:[#allocation6 + $0x1b8] sm:$0xff]
    %v3473 = vld [vmem:[#allocation6 + $0x1c0] sm:$0xff]
    %v3474 = vld [vmem:[#allocation6 + $0x1c8] sm:$0xff]
    %v3475 = vld [vmem:[#allocation6 + $0x1d0] sm:$0xff]
    %v3476 = vld [vmem:[#allocation6 + $0x1d8] sm:$0xff]
    %v3477 = vld [vmem:[#allocation6 + $0x1e0] sm:$0xff]
    %v3478 = vld [vmem:[#allocation6 + $0x1e8] sm:$0xff]
    %v3479 = vld [vmem:[#allocation6 + $0x1f0] sm:$0xff]
    %v3480 = vld [vmem:[#allocation6 + $0x1f8] sm:$0xff]
    %v3482 = vperm.slane %v144, 0
    %3484 = vmatpush.msra.mxu0 %v3432
    %3485 = vmatpush.msra.mxu0 %v3431
    %3486 = vmatpush.msra.mxu0 %v3430
    %3487 = vmatpush.msra.mxu0 %v3429
    %3488 = vmatpush.msra.mxu0 %v3428
    %3489 = vmatpush.msra.mxu0 %v3427
    %3490 = vmatpush.msra.mxu0 %v3426
    %3491 = vmatpush.msra.mxu0 %v3425
    %3492 = vmatpush.msra.mxu0 %v3424
    %3493 = vmatpush.msra.mxu0 %v3423
    %3494 = vmatpush.msra.mxu0 %v3422
    %3495 = vmatpush.msra.mxu0 %v3421
    %3496 = vmatpush.msra.mxu0 %v3420
    %3497 = vmatpush.msra.mxu0 %v3419
    %3498 = vmatpush.msra.mxu0 %v3418
    %3499 = vmatpush.msra.mxu0 %v3417
    %3500 = vmatmul.f32.gmra.mxu0 %v3397
    %v3501 = vpop.f32.mrf.mxu0
    %v3502 = vadd.f32 %v3482, %v3501
    %3503 = vdwg.mxu0
    %3504 = vmatpush.msra.mxu0 %v3448
    %3505 = vmatpush.msra.mxu0 %v3447
    %3506 = vmatpush.msra.mxu0 %v3446
    %3507 = vmatpush.msra.mxu0 %v3445
    %3508 = vmatpush.msra.mxu0 %v3444
    %3509 = vmatpush.msra.mxu0 %v3443
    %3510 = vmatpush.msra.mxu0 %v3442
    %3511 = vmatpush.msra.mxu0 %v3441
    %3512 = vmatpush.msra.mxu0 %v3440
    %3513 = vmatpush.msra.mxu0 %v3439
    %3514 = vmatpush.msra.mxu0 %v3438
    %3515 = vmatpush.msra.mxu0 %v3437
    %3516 = vmatpush.msra.mxu0 %v3436
    %3517 = vmatpush.msra.mxu0 %v3435
    %3518 = vmatpush.msra.mxu0 %v3434
    %3519 = vmatpush.msra.mxu0 %v3433
    %3520 = vmatmul.f32.gmra.mxu0 %v3398
    %v3521 = vpop.f32.mrf.mxu0
    %v3522 = vadd.f32 %v3502, %v3521
    %3523 = vdwg.mxu0
    %3524 = vmatpush.msra.mxu0 %v3464
    %3525 = vmatpush.msra.mxu0 %v3463
    %3526 = vmatpush.msra.mxu0 %v3462
    %3527 = vmatpush.msra.mxu0 %v3461
    %3528 = vmatpush.msra.mxu0 %v3460
    %3529 = vmatpush.msra.mxu0 %v3459
    %3530 = vmatpush.msra.mxu0 %v3458
    %3531 = vmatpush.msra.mxu0 %v3457
    %3532 = vmatpush.msra.mxu0 %v3456
    %3533 = vmatpush.msra.mxu0 %v3455
    %3534 = vmatpush.msra.mxu0 %v3454
    %3535 = vmatpush.msra.mxu0 %v3453
    %3536 = vmatpush.msra.mxu0 %v3452
    %3537 = vmatpush.msra.mxu0 %v3451
    %3538 = vmatpush.msra.mxu0 %v3450
    %3539 = vmatpush.msra.mxu0 %v3449
    %3540 = vmatmul.f32.gmra.mxu0 %v3399
    %v3541 = vpop.f32.mrf.mxu0
    %v3542 = vadd.f32 %v3522, %v3541
    %3543 = vdwg.mxu0
    %3544 = vmatpush.msra.mxu0 %v3480
    %3545 = vmatpush.msra.mxu0 %v3479
    %3546 = vmatpush.msra.mxu0 %v3478
    %3547 = vmatpush.msra.mxu0 %v3477
    %3548 = vmatpush.msra.mxu0 %v3476
    %3549 = vmatpush.msra.mxu0 %v3475
    %3550 = vmatpush.msra.mxu0 %v3474
    %3551 = vmatpush.msra.mxu0 %v3473
    %3552 = vmatpush.msra.mxu0 %v3472
    %3553 = vmatpush.msra.mxu0 %v3471
    %3554 = vmatpush.msra.mxu0 %v3470
    %3555 = vmatpush.msra.mxu0 %v3469
    %3556 = vmatpush.msra.mxu0 %v3468
    %3557 = vmatpush.msra.mxu0 %v3467
    %3558 = vmatpush.msra.mxu0 %v3466
    %3559 = vmatpush.msra.mxu0 %v3465
    %3560 = vmatmul.f32.gmra.mxu0 %v3400
    %v3561 = vpop.f32.mrf.mxu0
    %v3562 = vadd.f32 %v3542, %v3561
    %3563 = vdwg.mxu0
    %v3564 = vmax.f32 %v3562, 0.0
    %v3565 = vld [vmem:[%s4] sm:$0xff]
    %v3566 = vld [vmem:[%s4 + $0x8] sm:$0xff]
    %v3567 = vld [vmem:[%s4 + $0x10] sm:$0xff]
    %v3568 = vld [vmem:[%s4 + $0x18] sm:$0xff]
    %v3569 = vld [vmem:[%s4 + $0x20] sm:$0xff]
    %v3570 = vld [vmem:[%s4 + $0x28] sm:$0xff]
    %v3571 = vld [vmem:[%s4 + $0x30] sm:$0xff]
    %v3572 = vld [vmem:[%s4 + $0x38] sm:$0xff]
    %v3573 = vld [vmem:[%s4 + $0x40] sm:$0xff]
    %v3574 = vld [vmem:[%s4 + $0x48] sm:$0xff]
    %v3575 = vld [vmem:[%s4 + $0x50] sm:$0xff]
    %v3576 = vld [vmem:[%s4 + $0x58] sm:$0xff]
    %v3577 = vld [vmem:[%s4 + $0x60] sm:$0xff]
    %v3578 = vld [vmem:[%s4 + $0x68] sm:$0xff]
    %v3579 = vld [vmem:[%s4 + $0x70] sm:$0xff]
    %v3580 = vld [vmem:[%s4 + $0x78] sm:$0xff]
    %v3582 = vperm.slane %v145, 0
    %3584 = vmatpush.msra.mxu0 %v3580
    %3585 = vmatpush.msra.mxu0 %v3579
    %3586 = vmatpush.msra.mxu0 %v3578
    %3587 = vmatpush.msra.mxu0 %v3577
    %3588 = vmatpush.msra.mxu0 %v3576
    %3589 = vmatpush.msra.mxu0 %v3575
    %3590 = vmatpush.msra.mxu0 %v3574
    %3591 = vmatpush.msra.mxu0 %v3573
    %3592 = vmatpush.msra.mxu0 %v3572
    %3593 = vmatpush.msra.mxu0 %v3571
    %3594 = vmatpush.msra.mxu0 %v3570
    %3595 = vmatpush.msra.mxu0 %v3569
    %3596 = vmatpush.msra.mxu0 %v3568
    %3597 = vmatpush.msra.mxu0 %v3567
    %3598 = vmatpush.msra.mxu0 %v3566
    %3599 = vmatpush.msra.mxu0 %v3565
    %3600 = vmatmul.f32.gmra.mxu0 %v3564
    %v3601 = vpop.f32.mrf.mxu0
    %v3602 = vadd.f32 %v3582, %v3601
    %3603 = vdwg.mxu0
    %v3604 = vmax.f32 %v3602, 0.0
    %v3605 = vld [vmem:[#allocation7] sm:$0xff]
    %v3606 = vld [vmem:[#allocation7 + $0x8] sm:$0xff]
    %v3607 = vld [vmem:[#allocation7 + $0x10] sm:$0xff]
    %v3608 = vld [vmem:[#allocation7 + $0x18] sm:$0xff]
    %v3609 = vld [vmem:[#allocation7 + $0x20] sm:$0xff]
    %v3610 = vld [vmem:[#allocation7 + $0x28] sm:$0xff]
    %v3611 = vld [vmem:[#allocation7 + $0x30] sm:$0xff]
    %v3612 = vld [vmem:[#allocation7 + $0x38] sm:$0xff]
    %v3613 = vld [vmem:[#allocation7 + $0x40] sm:$0xff]
    %v3614 = vld [vmem:[#allocation7 + $0x48] sm:$0xff]
    %v3615 = vld [vmem:[#allocation7 + $0x50] sm:$0xff]
    %v3616 = vld [vmem:[#allocation7 + $0x58] sm:$0xff]
    %v3617 = vld [vmem:[#allocation7 + $0x60] sm:$0xff]
    %v3618 = vld [vmem:[#allocation7 + $0x68] sm:$0xff]
    %v3619 = vld [vmem:[#allocation7 + $0x70] sm:$0xff]
    %v3620 = vld [vmem:[#allocation7 + $0x78] sm:$0xff]
    %v3622 = vperm.slane %v146, 0
    %v3623 = vperm.slane %v146, 1
    %vm3626 = vcmask 523264
    %v3628 = vsel %vm3626, %v3604, 0
    %3630 = vmatpush.msra.mxu0 0.0
    %3631 = vmatpush.msra.mxu0 0.0
    %3632 = vmatpush.msra.mxu0 0.0
    %3633 = vmatpush.msra.mxu0 0.0
    %3634 = vmatpush.msra.mxu0 0.0
    %3635 = vmatpush.msra.mxu0 0.0
    %3636 = vmatpush.msra.mxu0 0.0
    %3637 = vmatpush.msra.mxu0 0.0
    %3638 = vmatpush.msra.mxu0 %v3619
    %3639 = vmatpush.msra.mxu0 %v3617
    %3640 = vmatpush.msra.mxu0 %v3615
    %3641 = vmatpush.msra.mxu0 %v3613
    %3642 = vmatpush.msra.mxu0 %v3611
    %3643 = vmatpush.msra.mxu0 %v3609
    %3644 = vmatpush.msra.mxu0 %v3607
    %3645 = vmatpush.msra.mxu0 %v3605
    %3646 = vmatmul.f32.gmra.mxu0 %v3628
    %v3647 = vpop.f32.mrf.mxu0
    %v3648 = vadd.f32 %v3622, %v3647
    %3649 = vdwg.mxu0
    %3650 = vmatpush.msra.mxu0 0.0
    %3651 = vmatpush.msra.mxu0 0.0
    %3652 = vmatpush.msra.mxu0 0.0
    %3653 = vmatpush.msra.mxu0 0.0
    %3654 = vmatpush.msra.mxu0 0.0
    %3655 = vmatpush.msra.mxu0 0.0
    %3656 = vmatpush.msra.mxu0 0.0
    %3657 = vmatpush.msra.mxu0 0.0
    %3658 = vmatpush.msra.mxu0 %v3620
    %3659 = vmatpush.msra.mxu0 %v3618
    %3660 = vmatpush.msra.mxu0 %v3616
    %3661 = vmatpush.msra.mxu0 %v3614
    %3662 = vmatpush.msra.mxu0 %v3612
    %3663 = vmatpush.msra.mxu0 %v3610
    %3664 = vmatpush.msra.mxu0 %v3608
    %3665 = vmatpush.msra.mxu0 %v3606
    %3666 = vmatmul.f32.gmra.mxu0 %v3628
    %v3667 = vpop.f32.mrf.mxu0
    %v3668 = vadd.f32 %v3623, %v3667
    %3669 = vdwg.mxu0
    %v3670 = vpack.c.bf16 %v3402, %v3401
    %v3671 = vpack.c.bf16 %v3404, %v3403
    %v3672 = vpack.c.bf16 %v3406, %v3405
    %v3673 = vpack.c.bf16 %v3408, %v3407
    %v3674 = vpack.c.bf16 %v3410, %v3409
    %v3675 = vpack.c.bf16 %v3412, %v3411
    %v3676 = vpack.c.bf16 %v3414, %v3413
    %v3677 = vpack.c.bf16 %v3416, %v3415
    %v3679 = vunpack.c.l.b16 %v3670
    %v3680 = vunpack.c.h.b16 %v3670
    %v3681 = vpack.c.b16 %v3679, %v3679
    %v3682 = vpack.c.b16 %v3680, %v3680
    %v3684 = vunpack.c.l.b16 %v3671
    %v3685 = vunpack.c.h.b16 %v3671
    %v3686 = vpack.c.b16 %v3684, %v3684
    %v3687 = vpack.c.b16 %v3685, %v3685
    %v3689 = vunpack.c.l.b16 %v3672
    %v3690 = vunpack.c.h.b16 %v3672
    %v3691 = vpack.c.b16 %v3689, %v3689
    %v3692 = vpack.c.b16 %v3690, %v3690
    %v3694 = vunpack.c.l.b16 %v3673
    %v3695 = vunpack.c.h.b16 %v3673
    %v3696 = vpack.c.b16 %v3694, %v3694
    %v3697 = vpack.c.b16 %v3695, %v3695
    %v3699 = vunpack.c.l.b16 %v3674
    %v3700 = vunpack.c.h.b16 %v3674
    %v3701 = vpack.c.b16 %v3699, %v3699
    %v3702 = vpack.c.b16 %v3700, %v3700
    %v3704 = vunpack.c.l.b16 %v3675
    %v3705 = vunpack.c.h.b16 %v3675
    %v3706 = vpack.c.b16 %v3704, %v3704
    %v3707 = vpack.c.b16 %v3705, %v3705
    %v3709 = vunpack.c.l.b16 %v3676
    %v3710 = vunpack.c.h.b16 %v3676
    %v3711 = vpack.c.b16 %v3709, %v3709
    %v3712 = vpack.c.b16 %v3710, %v3710
    %v3714 = vunpack.c.l.b16 %v3677
    %v3715 = vunpack.c.h.b16 %v3677
    %v3716 = vpack.c.b16 %v3714, %v3714
    %v3717 = vpack.c.b16 %v3715, %v3715
    %v3718 = vrot.slane %v3681, 7
    %v3719 = vrot.slane %v3682, 7
    %v3720 = vrot.slane %v3686, 7
    %v3721 = vrot.slane %v3687, 7
    %v3722 = vrot.slane %v3691, 7
    %v3723 = vrot.slane %v3692, 7
    %v3724 = vrot.slane %v3686, 6
    %v3725 = vrot.slane %v3687, 6
    %v3726 = vrot.slane %v3691, 6
    %v3727 = vrot.slane %v3692, 6
    %v3728 = vrot.slane %v3696, 6
    %v3729 = vrot.slane %v3697, 6
    %v3730 = vrot.slane %v3691, 5
    %v3731 = vrot.slane %v3692, 5
    %v3732 = vrot.slane %v3696, 5
    %v3733 = vrot.slane %v3697, 5
    %v3734 = vrot.slane %v3701, 5
    %v3735 = vrot.slane %v3702, 5
    %v3736 = vrot.slane %v3696, 4
    %v3737 = vrot.slane %v3697, 4
    %v3738 = vrot.slane %v3701, 4
    %v3739 = vrot.slane %v3702, 4
    %v3740 = vrot.slane %v3706, 4
    %v3741 = vrot.slane %v3707, 4
    %v3742 = vrot.slane %v3701, 3
    %v3743 = vrot.slane %v3702, 3
    %v3744 = vrot.slane %v3706, 3
    %v3745 = vrot.slane %v3707, 3
    %v3746 = vrot.slane %v3711, 3
    %v3747 = vrot.slane %v3712, 3
    %v3748 = vrot.slane %v3706, 2
    %v3749 = vrot.slane %v3707, 2
    %v3750 = vrot.slane %v3711, 2
    %v3751 = vrot.slane %v3712, 2
    %v3752 = vrot.slane %v3716, 2
    %v3753 = vrot.slane %v3717, 2
    %v3755 = vrot.slane %v3711, 1
    %v3756 = vrot.slane %v3712, 1
    %v3757 = vrot.slane %v3716, 1
    %v3758 = vrot.slane %v3717, 1
    %v3759 = vrot.slane 0, 1
    %vm3760 = vcmask 1040384
    %v3763 = vsel %vm3760, 0, %v3718
    %v3765 = vsel %vm3760, 0, %v3719
    %v3768 = vsel %vm3760, %v3681, %v3720
    %v3771 = vsel %vm3760, %v3682, %v3721
    %v3774 = vsel %vm3760, %v3686, %v3722
    %v3777 = vsel %vm3760, %v3687, %v3723
    %vm3778 = vcmask 1041408
    %v3780 = vsel %vm3778, %v3763, %v3724
    %v3782 = vsel %vm3778, %v3765, %v3725
    %v3784 = vsel %vm3778, %v3768, %v3726
    %v3786 = vsel %vm3778, %v3771, %v3727
    %v3788 = vsel %vm3778, %v3774, %v3728
    %v3790 = vsel %vm3778, %v3777, %v3729
    %vm3791 = vcmask 1042432
    %v3793 = vsel %vm3791, %v3780, %v3730
    %v3795 = vsel %vm3791, %v3782, %v3731
    %v3797 = vsel %vm3791, %v3784, %v3732
    %v3799 = vsel %vm3791, %v3786, %v3733
    %v3801 = vsel %vm3791, %v3788, %v3734
    %v3803 = vsel %vm3791, %v3790, %v3735
    %vm3804 = vcmask 1043456
    %v3806 = vsel %vm3804, %v3793, %v3736
    %v3808 = vsel %vm3804, %v3795, %v3737
    %v3810 = vsel %vm3804, %v3797, %v3738
    %v3812 = vsel %vm3804, %v3799, %v3739
    %v3814 = vsel %vm3804, %v3801, %v3740
    %v3816 = vsel %vm3804, %v3803, %v3741
    %vm3817 = vcmask 1044480
    %v3819 = vsel %vm3817, %v3806, %v3742
    %v3821 = vsel %vm3817, %v3808, %v3743
    %v3823 = vsel %vm3817, %v3810, %v3744
    %v3825 = vsel %vm3817, %v3812, %v3745
    %v3827 = vsel %vm3817, %v3814, %v3746
    %v3829 = vsel %vm3817, %v3816, %v3747
    %vm3830 = vcmask 1045504
    %v3832 = vsel %vm3830, %v3819, %v3748
    %v3834 = vsel %vm3830, %v3821, %v3749
    %v3836 = vsel %vm3830, %v3823, %v3750
    %v3838 = vsel %vm3830, %v3825, %v3751
    %v3840 = vsel %vm3830, %v3827, %v3752
    %v3842 = vsel %vm3830, %v3829, %v3753
    %vm3843 = vcmask 1046528
    %v3845 = vsel %vm3843, %v3832, %v3755
    %v3848 = vsel %vm3843, %v3834, %v3756
    %v3851 = vsel %vm3843, %v3836, %v3757
    %v3854 = vsel %vm3843, %v3838, %v3758
    %v3857 = vsel %vm3843, %v3840, %v3759
    %v3859 = vsel %vm3843, %v3842, %v3759
    %v3861 = vld [vmem:[#allocation9] sm:$0xff]
    %v3862 = vld [vmem:[#allocation9 + $0x8] sm:$0xff]
    %v3863 = vld [vmem:[#allocation9 + $0x10] sm:$0xff]
    %v3864 = vld [vmem:[#allocation9 + $0x18] sm:$0xff]
    %v3865 = vld [vmem:[#allocation9 + $0x20] sm:$0xff]
    %v3866 = vld [vmem:[#allocation9 + $0x28] sm:$0xff]
    %v3867 = vld [vmem:[#allocation9 + $0x30] sm:$0xff]
    %v3868 = vld [vmem:[#allocation9 + $0x38] sm:$0xff]
    %v3869 = vld [vmem:[#allocation9 + $0x40] sm:$0xff]
    %v3870 = vld [vmem:[#allocation9 + $0x48] sm:$0xff]
    %v3871 = vld [vmem:[#allocation9 + $0x50] sm:$0xff]
    %v3872 = vld [vmem:[#allocation9 + $0x58] sm:$0xff]
    %v3873 = vld [vmem:[#allocation9 + $0x60] sm:$0xff]
    %v3874 = vld [vmem:[#allocation9 + $0x68] sm:$0xff]
    %v3875 = vld [vmem:[#allocation9 + $0x70] sm:$0xff]
    %v3876 = vld [vmem:[#allocation9 + $0x78] sm:$0xff]
    %v3877 = vld [vmem:[#allocation9 + $0x80] sm:$0xff]
    %v3878 = vld [vmem:[#allocation9 + $0x88] sm:$0xff]
    %v3879 = vld [vmem:[#allocation9 + $0x90] sm:$0xff]
    %v3880 = vld [vmem:[#allocation9 + $0x98] sm:$0xff]
    %v3881 = vld [vmem:[#allocation9 + $0xa0] sm:$0xff]
    %v3882 = vld [vmem:[#allocation9 + $0xa8] sm:$0xff]
    %v3883 = vld [vmem:[#allocation9 + $0xb0] sm:$0xff]
    %v3884 = vld [vmem:[#allocation9 + $0xb8] sm:$0xff]
    %v3885 = vld [vmem:[#allocation9 + $0xc0] sm:$0xff]
    %v3886 = vld [vmem:[#allocation9 + $0xc8] sm:$0xff]
    %v3887 = vld [vmem:[#allocation9 + $0xd0] sm:$0xff]
    %v3888 = vld [vmem:[#allocation9 + $0xd8] sm:$0xff]
    %v3889 = vld [vmem:[#allocation9 + $0xe0] sm:$0xff]
    %v3890 = vld [vmem:[#allocation9 + $0xe8] sm:$0xff]
    %v3891 = vld [vmem:[#allocation9 + $0xf0] sm:$0xff]
    %v3892 = vld [vmem:[#allocation9 + $0xf8] sm:$0xff]
    %v3893 = vld [vmem:[#allocation9 + $0x100] sm:$0xff]
    %v3894 = vld [vmem:[#allocation9 + $0x108] sm:$0xff]
    %v3895 = vld [vmem:[#allocation9 + $0x110] sm:$0xff]
    %v3896 = vld [vmem:[#allocation9 + $0x118] sm:$0xff]
    %v3897 = vld [vmem:[#allocation9 + $0x120] sm:$0xff]
    %v3898 = vld [vmem:[#allocation9 + $0x128] sm:$0xff]
    %v3899 = vld [vmem:[#allocation9 + $0x130] sm:$0xff]
    %v3900 = vld [vmem:[#allocation9 + $0x138] sm:$0xff]
    %v3901 = vld [vmem:[#allocation9 + $0x140] sm:$0xff]
    %v3902 = vld [vmem:[#allocation9 + $0x148] sm:$0xff]
    %v3903 = vld [vmem:[#allocation9 + $0x150] sm:$0xff]
    %v3904 = vld [vmem:[#allocation9 + $0x158] sm:$0xff]
    %v3905 = vld [vmem:[#allocation9 + $0x160] sm:$0xff]
    %v3906 = vld [vmem:[#allocation9 + $0x168] sm:$0xff]
    %v3907 = vld [vmem:[#allocation9 + $0x170] sm:$0xff]
    %v3908 = vld [vmem:[#allocation9 + $0x178] sm:$0xff]
    %v3909 = vld [vmem:[#allocation9 + $0x180] sm:$0xff]
    %v3910 = vld [vmem:[#allocation9 + $0x188] sm:$0xff]
    %v3911 = vld [vmem:[#allocation9 + $0x190] sm:$0xff]
    %v3912 = vld [vmem:[#allocation9 + $0x198] sm:$0xff]
    %v3913 = vld [vmem:[#allocation9 + $0x1a0] sm:$0xff]
    %v3914 = vld [vmem:[#allocation9 + $0x1a8] sm:$0xff]
    %v3915 = vld [vmem:[#allocation9 + $0x1b0] sm:$0xff]
    %v3916 = vld [vmem:[#allocation9 + $0x1b8] sm:$0xff]
    %v3917 = vld [vmem:[#allocation9 + $0x1c0] sm:$0xff]
    %v3918 = vld [vmem:[#allocation9 + $0x1c8] sm:$0xff]
    %v3919 = vld [vmem:[#allocation9 + $0x1d0] sm:$0xff]
    %v3920 = vld [vmem:[#allocation9 + $0x1d8] sm:$0xff]
    %v3921 = vld [vmem:[#allocation9 + $0x1e0] sm:$0xff]
    %v3922 = vld [vmem:[#allocation9 + $0x1e8] sm:$0xff]
    %v3923 = vld [vmem:[#allocation9 + $0x1f0] sm:$0xff]
    %v3924 = vld [vmem:[#allocation9 + $0x1f8] sm:$0xff]
    %v3925 = vld [vmem:[#allocation9 + $0x200] sm:$0xff]
    %v3926 = vld [vmem:[#allocation9 + $0x208] sm:$0xff]
    %v3927 = vld [vmem:[#allocation9 + $0x210] sm:$0xff]
    %v3928 = vld [vmem:[#allocation9 + $0x218] sm:$0xff]
    %v3929 = vld [vmem:[#allocation9 + $0x220] sm:$0xff]
    %v3930 = vld [vmem:[#allocation9 + $0x228] sm:$0xff]
    %v3931 = vld [vmem:[#allocation9 + $0x230] sm:$0xff]
    %v3932 = vld [vmem:[#allocation9 + $0x238] sm:$0xff]
    %v3933 = vld [vmem:[#allocation9 + $0x240] sm:$0xff]
    %v3934 = vld [vmem:[#allocation9 + $0x248] sm:$0xff]
    %v3935 = vld [vmem:[#allocation9 + $0x250] sm:$0xff]
    %v3936 = vld [vmem:[#allocation9 + $0x258] sm:$0xff]
    %v3937 = vld [vmem:[#allocation9 + $0x260] sm:$0xff]
    %v3938 = vld [vmem:[#allocation9 + $0x268] sm:$0xff]
    %v3939 = vld [vmem:[#allocation9 + $0x270] sm:$0xff]
    %v3940 = vld [vmem:[#allocation9 + $0x278] sm:$0xff]
    %v3941 = vld [vmem:[#allocation9 + $0x280] sm:$0xff]
    %v3942 = vld [vmem:[#allocation9 + $0x288] sm:$0xff]
    %v3943 = vld [vmem:[#allocation9 + $0x290] sm:$0xff]
    %v3944 = vld [vmem:[#allocation9 + $0x298] sm:$0xff]
    %v3945 = vld [vmem:[#allocation9 + $0x2a0] sm:$0xff]
    %v3946 = vld [vmem:[#allocation9 + $0x2a8] sm:$0xff]
    %v3947 = vld [vmem:[#allocation9 + $0x2b0] sm:$0xff]
    %v3948 = vld [vmem:[#allocation9 + $0x2b8] sm:$0xff]
    %v3949 = vld [vmem:[#allocation9 + $0x2c0] sm:$0xff]
    %v3950 = vld [vmem:[#allocation9 + $0x2c8] sm:$0xff]
    %v3951 = vld [vmem:[#allocation9 + $0x2d0] sm:$0xff]
    %v3952 = vld [vmem:[#allocation9 + $0x2d8] sm:$0xff]
    %v3953 = vld [vmem:[#allocation9 + $0x2e0] sm:$0xff]
    %v3954 = vld [vmem:[#allocation9 + $0x2e8] sm:$0xff]
    %v3955 = vld [vmem:[#allocation9 + $0x2f0] sm:$0xff]
    %v3956 = vld [vmem:[#allocation9 + $0x2f8] sm:$0xff]
    %v3959 = vrot.slane %v3648, 6
    %v3960 = vrot.slane %v3668, 6
    %v3963 = vrot.slane %v3648, 4
    %v3964 = vrot.slane %v3668, 4
    %v3967 = vrot.slane %v3648, 2
    %v3968 = vrot.slane %v3668, 2
    %v3971 = vsel %vm3778, %v3648, %v3959
    %v3972 = vsel %vm3778, %v3668, %v3960
    %v3973 = vsel %vm3804, %v3971, %v3963
    %v3974 = vsel %vm3804, %v3972, %v3964
    %v3975 = vsel %vm3830, %v3973, %v3967
    %v3976 = vsel %vm3830, %v3974, %v3968
    %v4073 = vunpack.c.l.b16 %v3861
    %v4074 = vunpack.c.h.b16 %v3861
    %v4075 = vunpack.c.l.b16 %v3862
    %v4076 = vunpack.c.h.b16 %v3862
    %v4077 = vunpack.c.l.b16 %v3863
    %v4078 = vunpack.c.h.b16 %v3863
    %v4079 = vunpack.c.l.b16 %v3864
    %v4080 = vunpack.c.h.b16 %v3864
    %v4081 = vunpack.c.l.b16 %v3865
    %v4082 = vunpack.c.h.b16 %v3865
    %v4083 = vunpack.c.l.b16 %v3866
    %v4084 = vunpack.c.h.b16 %v3866
    %v4085 = vunpack.c.l.b16 %v3867
    %v4086 = vunpack.c.h.b16 %v3867
    %v4087 = vunpack.c.l.b16 %v3868
    %v4088 = vunpack.c.h.b16 %v3868
    %v4089 = vunpack.c.l.b16 %v3869
    %v4090 = vunpack.c.h.b16 %v3869
    %v4091 = vunpack.c.l.b16 %v3870
    %v4092 = vunpack.c.h.b16 %v3870
    %v4093 = vunpack.c.l.b16 %v3871
    %v4094 = vunpack.c.h.b16 %v3871
    %v4095 = vunpack.c.l.b16 %v3872
    %v4096 = vunpack.c.h.b16 %v3872
    %v4097 = vunpack.c.l.b16 %v3873
    %v4098 = vunpack.c.h.b16 %v3873
    %v4099 = vunpack.c.l.b16 %v3874
    %v4100 = vunpack.c.h.b16 %v3874
    %v4101 = vunpack.c.l.b16 %v3875
    %v4102 = vunpack.c.h.b16 %v3875
    %v4103 = vunpack.c.l.b16 %v3876
    %v4104 = vunpack.c.h.b16 %v3876
    %v4105 = vunpack.c.l.b16 %v3877
    %v4106 = vunpack.c.h.b16 %v3877
    %v4107 = vunpack.c.l.b16 %v3878
    %v4108 = vunpack.c.h.b16 %v3878
    %v4109 = vunpack.c.l.b16 %v3879
    %v4110 = vunpack.c.h.b16 %v3879
    %v4111 = vunpack.c.l.b16 %v3880
    %v4112 = vunpack.c.h.b16 %v3880
    %v4113 = vunpack.c.l.b16 %v3881
    %v4114 = vunpack.c.h.b16 %v3881
    %v4115 = vunpack.c.l.b16 %v3882
    %v4116 = vunpack.c.h.b16 %v3882
    %v4117 = vunpack.c.l.b16 %v3883
    %v4118 = vunpack.c.h.b16 %v3883
    %v4119 = vunpack.c.l.b16 %v3884
    %v4120 = vunpack.c.h.b16 %v3884
    %v4121 = vunpack.c.l.b16 %v3885
    %v4122 = vunpack.c.h.b16 %v3885
    %v4123 = vunpack.c.l.b16 %v3886
    %v4124 = vunpack.c.h.b16 %v3886
    %v4125 = vunpack.c.l.b16 %v3887
    %v4126 = vunpack.c.h.b16 %v3887
    %v4127 = vunpack.c.l.b16 %v3888
    %v4128 = vunpack.c.h.b16 %v3888
    %v4129 = vunpack.c.l.b16 %v3889
    %v4130 = vunpack.c.h.b16 %v3889
    %v4131 = vunpack.c.l.b16 %v3890
    %v4132 = vunpack.c.h.b16 %v3890
    %v4133 = vunpack.c.l.b16 %v3891
    %v4134 = vunpack.c.h.b16 %v3891
    %v4135 = vunpack.c.l.b16 %v3892
    %v4136 = vunpack.c.h.b16 %v3892
    %v4137 = vunpack.c.l.b16 %v3893
    %v4138 = vunpack.c.h.b16 %v3893
    %v4139 = vunpack.c.l.b16 %v3894
    %v4140 = vunpack.c.h.b16 %v3894
    %v4141 = vunpack.c.l.b16 %v3895
    %v4142 = vunpack.c.h.b16 %v3895
    %v4143 = vunpack.c.l.b16 %v3896
    %v4144 = vunpack.c.h.b16 %v3896
    %v4145 = vunpack.c.l.b16 %v3897
    %v4146 = vunpack.c.h.b16 %v3897
    %v4147 = vunpack.c.l.b16 %v3898
    %v4148 = vunpack.c.h.b16 %v3898
    %v4149 = vunpack.c.l.b16 %v3899
    %v4150 = vunpack.c.h.b16 %v3899
    %v4151 = vunpack.c.l.b16 %v3900
    %v4152 = vunpack.c.h.b16 %v3900
    %v4153 = vunpack.c.l.b16 %v3901
    %v4154 = vunpack.c.h.b16 %v3901
    %v4155 = vunpack.c.l.b16 %v3902
    %v4156 = vunpack.c.h.b16 %v3902
    %v4157 = vunpack.c.l.b16 %v3903
    %v4158 = vunpack.c.h.b16 %v3903
    %v4159 = vunpack.c.l.b16 %v3904
    %v4160 = vunpack.c.h.b16 %v3904
    %v4161 = vunpack.c.l.b16 %v3905
    %v4162 = vunpack.c.h.b16 %v3905
    %v4163 = vunpack.c.l.b16 %v3906
    %v4164 = vunpack.c.h.b16 %v3906
    %v4165 = vunpack.c.l.b16 %v3907
    %v4166 = vunpack.c.h.b16 %v3907
    %v4167 = vunpack.c.l.b16 %v3908
    %v4168 = vunpack.c.h.b16 %v3908
    %v4169 = vunpack.c.l.b16 %v3909
    %v4170 = vunpack.c.h.b16 %v3909
    %v4171 = vunpack.c.l.b16 %v3910
    %v4172 = vunpack.c.h.b16 %v3910
    %v4173 = vunpack.c.l.b16 %v3911
    %v4174 = vunpack.c.h.b16 %v3911
    %v4175 = vunpack.c.l.b16 %v3912
    %v4176 = vunpack.c.h.b16 %v3912
    %v4177 = vunpack.c.l.b16 %v3913
    %v4178 = vunpack.c.h.b16 %v3913
    %v4179 = vunpack.c.l.b16 %v3914
    %v4180 = vunpack.c.h.b16 %v3914
    %v4181 = vunpack.c.l.b16 %v3915
    %v4182 = vunpack.c.h.b16 %v3915
    %v4183 = vunpack.c.l.b16 %v3916
    %v4184 = vunpack.c.h.b16 %v3916
    %v4185 = vunpack.c.l.b16 %v3917
    %v4186 = vunpack.c.h.b16 %v3917
    %v4187 = vunpack.c.l.b16 %v3918
    %v4188 = vunpack.c.h.b16 %v3918
    %v4189 = vunpack.c.l.b16 %v3919
    %v4190 = vunpack.c.h.b16 %v3919
    %v4191 = vunpack.c.l.b16 %v3920
    %v4192 = vunpack.c.h.b16 %v3920
    %v4193 = vunpack.c.l.b16 %v3921
    %v4194 = vunpack.c.h.b16 %v3921
    %v4195 = vunpack.c.l.b16 %v3922
    %v4196 = vunpack.c.h.b16 %v3922
    %v4197 = vunpack.c.l.b16 %v3923
    %v4198 = vunpack.c.h.b16 %v3923
    %v4199 = vunpack.c.l.b16 %v3924
    %v4200 = vunpack.c.h.b16 %v3924
    %v4201 = vunpack.c.l.b16 %v3925
    %v4202 = vunpack.c.h.b16 %v3925
    %v4203 = vunpack.c.l.b16 %v3926
    %v4204 = vunpack.c.h.b16 %v3926
    %v4205 = vunpack.c.l.b16 %v3927
    %v4206 = vunpack.c.h.b16 %v3927
    %v4207 = vunpack.c.l.b16 %v3928
    %v4208 = vunpack.c.h.b16 %v3928
    %v4209 = vunpack.c.l.b16 %v3929
    %v4210 = vunpack.c.h.b16 %v3929
    %v4211 = vunpack.c.l.b16 %v3930
    %v4212 = vunpack.c.h.b16 %v3930
    %v4213 = vunpack.c.l.b16 %v3931
    %v4214 = vunpack.c.h.b16 %v3931
    %v4215 = vunpack.c.l.b16 %v3932
    %v4216 = vunpack.c.h.b16 %v3932
    %v4217 = vunpack.c.l.b16 %v3933
    %v4218 = vunpack.c.h.b16 %v3933
    %v4219 = vunpack.c.l.b16 %v3934
    %v4220 = vunpack.c.h.b16 %v3934
    %v4221 = vunpack.c.l.b16 %v3935
    %v4222 = vunpack.c.h.b16 %v3935
    %v4223 = vunpack.c.l.b16 %v3936
    %v4224 = vunpack.c.h.b16 %v3936
    %v4225 = vunpack.c.l.b16 %v3937
    %v4226 = vunpack.c.h.b16 %v3937
    %v4227 = vunpack.c.l.b16 %v3938
    %v4228 = vunpack.c.h.b16 %v3938
    %v4229 = vunpack.c.l.b16 %v3939
    %v4230 = vunpack.c.h.b16 %v3939
    %v4231 = vunpack.c.l.b16 %v3940
    %v4232 = vunpack.c.h.b16 %v3940
    %v4233 = vunpack.c.l.b16 %v3941
    %v4234 = vunpack.c.h.b16 %v3941
    %v4235 = vunpack.c.l.b16 %v3942
    %v4236 = vunpack.c.h.b16 %v3942
    %v4237 = vunpack.c.l.b16 %v3943
    %v4238 = vunpack.c.h.b16 %v3943
    %v4239 = vunpack.c.l.b16 %v3944
    %v4240 = vunpack.c.h.b16 %v3944
    %v4241 = vunpack.c.l.b16 %v3945
    %v4242 = vunpack.c.h.b16 %v3945
    %v4243 = vunpack.c.l.b16 %v3946
    %v4244 = vunpack.c.h.b16 %v3946
    %v4245 = vunpack.c.l.b16 %v3947
    %v4246 = vunpack.c.h.b16 %v3947
    %v4247 = vunpack.c.l.b16 %v3948
    %v4248 = vunpack.c.h.b16 %v3948
    %v4249 = vunpack.c.l.b16 %v3949
    %v4250 = vunpack.c.h.b16 %v3949
    %v4251 = vunpack.c.l.b16 %v3950
    %v4252 = vunpack.c.h.b16 %v3950
    %v4253 = vunpack.c.l.b16 %v3951
    %v4254 = vunpack.c.h.b16 %v3951
    %v4255 = vunpack.c.l.b16 %v3952
    %v4256 = vunpack.c.h.b16 %v3952
    %v4257 = vunpack.c.l.b16 %v3953
    %v4258 = vunpack.c.h.b16 %v3953
    %v4259 = vunpack.c.l.b16 %v3954
    %v4260 = vunpack.c.h.b16 %v3954
    %v4261 = vunpack.c.l.b16 %v3955
    %v4262 = vunpack.c.h.b16 %v3955
    %v4263 = vunpack.c.l.b16 %v3956
    %v4264 = vunpack.c.h.b16 %v3956
    %v4265 = vpack.c.b16 %v4075, %v4073
    %v4266 = vpack.c.b16 %v4076, %v4074
    %v4267 = vpack.c.b16 %v4079, %v4077
    %v4268 = vpack.c.b16 %v4080, %v4078
    %v4269 = vpack.c.b16 %v4083, %v4081
    %v4270 = vpack.c.b16 %v4084, %v4082
    %v4271 = vpack.c.b16 %v4087, %v4085
    %v4272 = vpack.c.b16 %v4088, %v4086
    %v4273 = vpack.c.b16 %v4091, %v4089
    %v4274 = vpack.c.b16 %v4092, %v4090
    %v4275 = vpack.c.b16 %v4095, %v4093
    %v4276 = vpack.c.b16 %v4096, %v4094
    %v4277 = vpack.c.b16 %v4099, %v4097
    %v4278 = vpack.c.b16 %v4100, %v4098
    %v4279 = vpack.c.b16 %v4103, %v4101
    %v4280 = vpack.c.b16 %v4104, %v4102
    %v4281 = vpack.c.b16 %v4107, %v4105
    %v4282 = vpack.c.b16 %v4108, %v4106
    %v4283 = vpack.c.b16 %v4111, %v4109
    %v4284 = vpack.c.b16 %v4112, %v4110
    %v4285 = vpack.c.b16 %v4115, %v4113
    %v4286 = vpack.c.b16 %v4116, %v4114
    %v4287 = vpack.c.b16 %v4119, %v4117
    %v4288 = vpack.c.b16 %v4120, %v4118
    %v4289 = vpack.c.b16 %v4123, %v4121
    %v4290 = vpack.c.b16 %v4124, %v4122
    %v4291 = vpack.c.b16 %v4127, %v4125
    %v4292 = vpack.c.b16 %v4128, %v4126
    %v4293 = vpack.c.b16 %v4131, %v4129
    %v4294 = vpack.c.b16 %v4132, %v4130
    %v4295 = vpack.c.b16 %v4135, %v4133
    %v4296 = vpack.c.b16 %v4136, %v4134
    %v4297 = vpack.c.b16 %v4139, %v4137
    %v4298 = vpack.c.b16 %v4140, %v4138
    %v4299 = vpack.c.b16 %v4143, %v4141
    %v4300 = vpack.c.b16 %v4144, %v4142
    %v4301 = vpack.c.b16 %v4147, %v4145
    %v4302 = vpack.c.b16 %v4148, %v4146
    %v4303 = vpack.c.b16 %v4151, %v4149
    %v4304 = vpack.c.b16 %v4152, %v4150
    %v4305 = vpack.c.b16 %v4155, %v4153
    %v4306 = vpack.c.b16 %v4156, %v4154
    %v4307 = vpack.c.b16 %v4159, %v4157
    %v4308 = vpack.c.b16 %v4160, %v4158
    %v4309 = vpack.c.b16 %v4163, %v4161
    %v4310 = vpack.c.b16 %v4164, %v4162
    %v4311 = vpack.c.b16 %v4167, %v4165
    %v4312 = vpack.c.b16 %v4168, %v4166
    %v4313 = vpack.c.b16 %v4171, %v4169
    %v4314 = vpack.c.b16 %v4172, %v4170
    %v4315 = vpack.c.b16 %v4175, %v4173
    %v4316 = vpack.c.b16 %v4176, %v4174
    %v4317 = vpack.c.b16 %v4179, %v4177
    %v4318 = vpack.c.b16 %v4180, %v4178
    %v4319 = vpack.c.b16 %v4183, %v4181
    %v4320 = vpack.c.b16 %v4184, %v4182
    %v4321 = vpack.c.b16 %v4187, %v4185
    %v4322 = vpack.c.b16 %v4188, %v4186
    %v4323 = vpack.c.b16 %v4191, %v4189
    %v4324 = vpack.c.b16 %v4192, %v4190
    %v4325 = vpack.c.b16 %v4195, %v4193
    %v4326 = vpack.c.b16 %v4196, %v4194
    %v4327 = vpack.c.b16 %v4199, %v4197
    %v4328 = vpack.c.b16 %v4200, %v4198
    %v4329 = vpack.c.b16 %v4203, %v4201
    %v4330 = vpack.c.b16 %v4204, %v4202
    %v4331 = vpack.c.b16 %v4207, %v4205
    %v4332 = vpack.c.b16 %v4208, %v4206
    %v4333 = vpack.c.b16 %v4211, %v4209
    %v4334 = vpack.c.b16 %v4212, %v4210
    %v4335 = vpack.c.b16 %v4215, %v4213
    %v4336 = vpack.c.b16 %v4216, %v4214
    %v4337 = vpack.c.b16 %v4219, %v4217
    %v4338 = vpack.c.b16 %v4220, %v4218
    %v4339 = vpack.c.b16 %v4223, %v4221
    %v4340 = vpack.c.b16 %v4224, %v4222
    %v4341 = vpack.c.b16 %v4227, %v4225
    %v4342 = vpack.c.b16 %v4228, %v4226
    %v4343 = vpack.c.b16 %v4231, %v4229
    %v4344 = vpack.c.b16 %v4232, %v4230
    %v4345 = vpack.c.b16 %v4235, %v4233
    %v4346 = vpack.c.b16 %v4236, %v4234
    %v4347 = vpack.c.b16 %v4239, %v4237
    %v4348 = vpack.c.b16 %v4240, %v4238
    %v4349 = vpack.c.b16 %v4243, %v4241
    %v4350 = vpack.c.b16 %v4244, %v4242
    %v4351 = vpack.c.b16 %v4247, %v4245
    %v4352 = vpack.c.b16 %v4248, %v4246
    %v4353 = vpack.c.b16 %v4251, %v4249
    %v4354 = vpack.c.b16 %v4252, %v4250
    %v4355 = vpack.c.b16 %v4255, %v4253
    %v4356 = vpack.c.b16 %v4256, %v4254
    %v4357 = vpack.c.b16 %v4259, %v4257
    %v4358 = vpack.c.b16 %v4260, %v4258
    %v4359 = vpack.c.b16 %v4263, %v4261
    %v4360 = vpack.c.b16 %v4264, %v4262
    %4457 = vmatpush.bf16.msra.mxu0 %v4279
    %4458 = vmatpush.bf16.msra.mxu0 %v4277
    %4459 = vmatpush.bf16.msra.mxu0 %v4275
    %4460 = vmatpush.bf16.msra.mxu0 %v4273
    %4461 = vmatpush.bf16.msra.mxu0 %v4271
    %4462 = vmatpush.bf16.msra.mxu0 %v4269
    %4463 = vmatpush.bf16.msra.mxu0 %v4267
    %4464 = vmatpush.bf16.msra.mxu0 %v4265
    %4465 = vmatmul.bf16.gmra.mxu0 %v3845
    %v4466 = vpop.f32.mrf.mxu0
    %v4467 = vadd.f32 %v3975, %v4466
    %v4468 = vpop.f32.mrf.mxu0
    %v4469 = vadd.f32 %v3975, %v4468
    %4470 = vdwg.mxu0
    %4471 = vmatpush.bf16.msra.mxu0 %v4295
    %4472 = vmatpush.bf16.msra.mxu0 %v4293
    %4473 = vmatpush.bf16.msra.mxu0 %v4291
    %4474 = vmatpush.bf16.msra.mxu0 %v4289
    %4475 = vmatpush.bf16.msra.mxu0 %v4287
    %4476 = vmatpush.bf16.msra.mxu0 %v4285
    %4477 = vmatpush.bf16.msra.mxu0 %v4283
    %4478 = vmatpush.bf16.msra.mxu0 %v4281
    %4479 = vmatmul.bf16.gmra.mxu0 %v3848
    %v4480 = vpop.f32.mrf.mxu0
    %v4481 = vadd.f32 %v4467, %v4480
    %v4482 = vpop.f32.mrf.mxu0
    %v4483 = vadd.f32 %v4469, %v4482
    %4484 = vdwg.mxu0
    %4485 = vmatpush.bf16.msra.mxu0 %v4311
    %4486 = vmatpush.bf16.msra.mxu0 %v4309
    %4487 = vmatpush.bf16.msra.mxu0 %v4307
    %4488 = vmatpush.bf16.msra.mxu0 %v4305
    %4489 = vmatpush.bf16.msra.mxu0 %v4303
    %4490 = vmatpush.bf16.msra.mxu0 %v4301
    %4491 = vmatpush.bf16.msra.mxu0 %v4299
    %4492 = vmatpush.bf16.msra.mxu0 %v4297
    %4493 = vmatmul.bf16.gmra.mxu0 %v3851
    %v4494 = vpop.f32.mrf.mxu0
    %v4495 = vadd.f32 %v4481, %v4494
    %v4496 = vpop.f32.mrf.mxu0
    %v4497 = vadd.f32 %v4483, %v4496
    %4498 = vdwg.mxu0
    %4499 = vmatpush.bf16.msra.mxu0 %v4327
    %4500 = vmatpush.bf16.msra.mxu0 %v4325
    %4501 = vmatpush.bf16.msra.mxu0 %v4323
    %4502 = vmatpush.bf16.msra.mxu0 %v4321
    %4503 = vmatpush.bf16.msra.mxu0 %v4319
    %4504 = vmatpush.bf16.msra.mxu0 %v4317
    %4505 = vmatpush.bf16.msra.mxu0 %v4315
    %4506 = vmatpush.bf16.msra.mxu0 %v4313
    %4507 = vmatmul.bf16.gmra.mxu0 %v3854
    %v4508 = vpop.f32.mrf.mxu0
    %v4509 = vadd.f32 %v4495, %v4508
    %v4510 = vpop.f32.mrf.mxu0
    %v4511 = vadd.f32 %v4497, %v4510
    %4512 = vdwg.mxu0
    %4513 = vmatpush.bf16.msra.mxu0 %v4343
    %4514 = vmatpush.bf16.msra.mxu0 %v4341
    %4515 = vmatpush.bf16.msra.mxu0 %v4339
    %4516 = vmatpush.bf16.msra.mxu0 %v4337
    %4517 = vmatpush.bf16.msra.mxu0 %v4335
    %4518 = vmatpush.bf16.msra.mxu0 %v4333
    %4519 = vmatpush.bf16.msra.mxu0 %v4331
    %4520 = vmatpush.bf16.msra.mxu0 %v4329
    %4521 = vmatmul.bf16.gmra.mxu0 %v3857
    %v4522 = vpop.f32.mrf.mxu0
    %v4523 = vadd.f32 %v4509, %v4522
    %v4524 = vpop.f32.mrf.mxu0
    %v4525 = vadd.f32 %v4511, %v4524
    %4526 = vdwg.mxu0
    %4527 = vmatpush.bf16.msra.mxu0 %v4359
    %4528 = vmatpush.bf16.msra.mxu0 %v4357
    %4529 = vmatpush.bf16.msra.mxu0 %v4355
    %4530 = vmatpush.bf16.msra.mxu0 %v4353
    %4531 = vmatpush.bf16.msra.mxu0 %v4351
    %4532 = vmatpush.bf16.msra.mxu0 %v4349
    %4533 = vmatpush.bf16.msra.mxu0 %v4347
    %4534 = vmatpush.bf16.msra.mxu0 %v4345
    %4535 = vmatmul.bf16.gmra.mxu0 %v3859
    %v4536 = vpop.f32.mrf.mxu0
    %v4537 = vadd.f32 %v4523, %v4536
    %v4538 = vpop.f32.mrf.mxu0
    %v4539 = vadd.f32 %v4525, %v4538
    %4540 = vdwg.mxu0
    %4541 = vmatpush.bf16.msra.mxu0 %v4280
    %4542 = vmatpush.bf16.msra.mxu0 %v4278
    %4543 = vmatpush.bf16.msra.mxu0 %v4276
    %4544 = vmatpush.bf16.msra.mxu0 %v4274
    %4545 = vmatpush.bf16.msra.mxu0 %v4272
    %4546 = vmatpush.bf16.msra.mxu0 %v4270
    %4547 = vmatpush.bf16.msra.mxu0 %v4268
    %4548 = vmatpush.bf16.msra.mxu0 %v4266
    %4549 = vmatmul.bf16.gmra.mxu0 %v3845
    %v4550 = vpop.f32.mrf.mxu0
    %v4551 = vadd.f32 %v3976, %v4550
    %v4552 = vpop.f32.mrf.mxu0
    %v4553 = vadd.f32 %v3976, %v4552
    %4554 = vdwg.mxu0
    %4555 = vmatpush.bf16.msra.mxu0 %v4296
    %4556 = vmatpush.bf16.msra.mxu0 %v4294
    %4557 = vmatpush.bf16.msra.mxu0 %v4292
    %4558 = vmatpush.bf16.msra.mxu0 %v4290
    %4559 = vmatpush.bf16.msra.mxu0 %v4288
    %4560 = vmatpush.bf16.msra.mxu0 %v4286
    %4561 = vmatpush.bf16.msra.mxu0 %v4284
    %4562 = vmatpush.bf16.msra.mxu0 %v4282
    %4563 = vmatmul.bf16.gmra.mxu0 %v3848
    %v4564 = vpop.f32.mrf.mxu0
    %v4565 = vadd.f32 %v4551, %v4564
    %v4566 = vpop.f32.mrf.mxu0
    %v4567 = vadd.f32 %v4553, %v4566
    %4568 = vdwg.mxu0
    %4569 = vmatpush.bf16.msra.mxu0 %v4312
    %4570 = vmatpush.bf16.msra.mxu0 %v4310
    %4571 = vmatpush.bf16.msra.mxu0 %v4308
    %4572 = vmatpush.bf16.msra.mxu0 %v4306
    %4573 = vmatpush.bf16.msra.mxu0 %v4304
    %4574 = vmatpush.bf16.msra.mxu0 %v4302
    %4575 = vmatpush.bf16.msra.mxu0 %v4300
    %4576 = vmatpush.bf16.msra.mxu0 %v4298
    %4577 = vmatmul.bf16.gmra.mxu0 %v3851
    %v4578 = vpop.f32.mrf.mxu0
    %v4579 = vadd.f32 %v4565, %v4578
    %v4580 = vpop.f32.mrf.mxu0
    %v4581 = vadd.f32 %v4567, %v4580
    %4582 = vdwg.mxu0
    %4583 = vmatpush.bf16.msra.mxu0 %v4328
    %4584 = vmatpush.bf16.msra.mxu0 %v4326
    %4585 = vmatpush.bf16.msra.mxu0 %v4324
    %4586 = vmatpush.bf16.msra.mxu0 %v4322
    %4587 = vmatpush.bf16.msra.mxu0 %v4320
    %4588 = vmatpush.bf16.msra.mxu0 %v4318
    %4589 = vmatpush.bf16.msra.mxu0 %v4316
    %4590 = vmatpush.bf16.msra.mxu0 %v4314
    %4591 = vmatmul.bf16.gmra.mxu0 %v3854
    %v4592 = vpop.f32.mrf.mxu0
    %v4593 = vadd.f32 %v4579, %v4592
    %v4594 = vpop.f32.mrf.mxu0
    %v4595 = vadd.f32 %v4581, %v4594
    %4596 = vdwg.mxu0
    %4597 = vmatpush.bf16.msra.mxu0 %v4344
    %4598 = vmatpush.bf16.msra.mxu0 %v4342
    %4599 = vmatpush.bf16.msra.mxu0 %v4340
    %4600 = vmatpush.bf16.msra.mxu0 %v4338
    %4601 = vmatpush.bf16.msra.mxu0 %v4336
    %4602 = vmatpush.bf16.msra.mxu0 %v4334
    %4603 = vmatpush.bf16.msra.mxu0 %v4332
    %4604 = vmatpush.bf16.msra.mxu0 %v4330
    %4605 = vmatmul.bf16.gmra.mxu0 %v3857
    %v4606 = vpop.f32.mrf.mxu0
    %v4607 = vadd.f32 %v4593, %v4606
    %v4608 = vpop.f32.mrf.mxu0
    %v4609 = vadd.f32 %v4595, %v4608
    %4610 = vdwg.mxu0
    %4611 = vmatpush.bf16.msra.mxu0 %v4360
    %4612 = vmatpush.bf16.msra.mxu0 %v4358
    %4613 = vmatpush.bf16.msra.mxu0 %v4356
    %4614 = vmatpush.bf16.msra.mxu0 %v4354
    %4615 = vmatpush.bf16.msra.mxu0 %v4352
    %4616 = vmatpush.bf16.msra.mxu0 %v4350
    %4617 = vmatpush.bf16.msra.mxu0 %v4348
    %4618 = vmatpush.bf16.msra.mxu0 %v4346
    %4619 = vmatmul.bf16.gmra.mxu0 %v3859
    %v4620 = vpop.f32.mrf.mxu0
    %v4621 = vadd.f32 %v4607, %v4620
    %v4622 = vpop.f32.mrf.mxu0
    %v4623 = vadd.f32 %v4609, %v4622
    %4624 = vdwg.mxu0
    %v4625 = vmax.f32 %v4537, 0.0
    %v4626 = vmax.f32 %v4621, 0.0
    %v4627 = vmax.f32 %v4539, 0.0
    %v4628 = vmax.f32 %v4623, 0.0
    %v4629 = vld [vmem:[#allocation10] sm:$0xff]
    %v4630 = vld [vmem:[#allocation10 + $0x8] sm:$0xf]
    %v4631 = vld [vmem:[#allocation10 + $0xc] sm:$0xff]
    %v4632 = vld [vmem:[#allocation10 + $0x14] sm:$0xf]
    %v4633 = vld [vmem:[#allocation10 + $0x18] sm:$0xff]
    %v4634 = vld [vmem:[#allocation10 + $0x20] sm:$0xf]
    %v4635 = vld [vmem:[#allocation10 + $0x24] sm:$0xff]
    %v4636 = vld [vmem:[#allocation10 + $0x2c] sm:$0xf]
    %v4637 = vld [vmem:[#allocation10 + $0x30] sm:$0xff]
    %v4638 = vld [vmem:[#allocation10 + $0x38] sm:$0xf]
    %v4639 = vld [vmem:[#allocation10 + $0x3c] sm:$0xff]
    %v4640 = vld [vmem:[#allocation10 + $0x44] sm:$0xf]
    %v4641 = vld [vmem:[#allocation10 + $0x48] sm:$0xff]
    %v4642 = vld [vmem:[#allocation10 + $0x50] sm:$0xf]
    %v4643 = vld [vmem:[#allocation10 + $0x54] sm:$0xff]
    %v4644 = vld [vmem:[#allocation10 + $0x5c] sm:$0xf]
    %v4645 = vld [vmem:[#allocation10 + $0x60] sm:$0xff]
    %v4646 = vld [vmem:[#allocation10 + $0x68] sm:$0xf]
    %v4647 = vld [vmem:[#allocation10 + $0x6c] sm:$0xff]
    %v4648 = vld [vmem:[#allocation10 + $0x74] sm:$0xf]
    %v4649 = vld [vmem:[#allocation10 + $0x78] sm:$0xff]
    %v4650 = vld [vmem:[#allocation10 + $0x80] sm:$0xf]
    %v4651 = vld [vmem:[#allocation10 + $0x84] sm:$0xff]
    %v4652 = vld [vmem:[#allocation10 + $0x8c] sm:$0xf]
    %v4653 = vld [vmem:[#allocation10 + $0x90] sm:$0xff]
    %v4654 = vld [vmem:[#allocation10 + $0x98] sm:$0xf]
    %v4655 = vld [vmem:[#allocation10 + $0x9c] sm:$0xff]
    %v4656 = vld [vmem:[#allocation10 + $0xa4] sm:$0xf]
    %v4657 = vld [vmem:[#allocation10 + $0xa8] sm:$0xff]
    %v4658 = vld [vmem:[#allocation10 + $0xb0] sm:$0xf]
    %v4659 = vld [vmem:[#allocation10 + $0xb4] sm:$0xff]
    %v4660 = vld [vmem:[#allocation10 + $0xbc] sm:$0xf]
    %v4661 = vld [vmem:[#allocation10 + $0xc0] sm:$0xff]
    %v4662 = vld [vmem:[#allocation10 + $0xc8] sm:$0xf]
    %v4663 = vld [vmem:[#allocation10 + $0xcc] sm:$0xff]
    %v4664 = vld [vmem:[#allocation10 + $0xd4] sm:$0xf]
    %v4665 = vld [vmem:[#allocation10 + $0xd8] sm:$0xff]
    %v4666 = vld [vmem:[#allocation10 + $0xe0] sm:$0xf]
    %v4667 = vld [vmem:[#allocation10 + $0xe4] sm:$0xff]
    %v4668 = vld [vmem:[#allocation10 + $0xec] sm:$0xf]
    %v4669 = vld [vmem:[#allocation10 + $0xf0] sm:$0xff]
    %v4670 = vld [vmem:[#allocation10 + $0xf8] sm:$0xf]
    %v4671 = vld [vmem:[#allocation10 + $0xfc] sm:$0xff]
    %v4672 = vld [vmem:[#allocation10 + $0x104] sm:$0xf]
    %v4673 = vld [vmem:[#allocation10 + $0x108] sm:$0xff]
    %v4674 = vld [vmem:[#allocation10 + $0x110] sm:$0xf]
    %v4675 = vld [vmem:[#allocation10 + $0x114] sm:$0xff]
    %v4676 = vld [vmem:[#allocation10 + $0x11c] sm:$0xf]
    %v4677 = vld [vmem:[#allocation10 + $0x120] sm:$0xff]
    %v4678 = vld [vmem:[#allocation10 + $0x128] sm:$0xf]
    %v4679 = vld [vmem:[#allocation10 + $0x12c] sm:$0xff]
    %v4680 = vld [vmem:[#allocation10 + $0x134] sm:$0xf]
    %v4681 = vld [vmem:[#allocation10 + $0x138] sm:$0xff]
    %v4682 = vld [vmem:[#allocation10 + $0x140] sm:$0xf]
    %v4683 = vld [vmem:[#allocation10 + $0x144] sm:$0xff]
    %v4684 = vld [vmem:[#allocation10 + $0x14c] sm:$0xf]
    %v4685 = vld [vmem:[#allocation10 + $0x150] sm:$0xff]
    %v4686 = vld [vmem:[#allocation10 + $0x158] sm:$0xf]
    %v4687 = vld [vmem:[#allocation10 + $0x15c] sm:$0xff]
    %v4688 = vld [vmem:[#allocation10 + $0x164] sm:$0xf]
    %v4689 = vld [vmem:[#allocation10 + $0x168] sm:$0xff]
    %v4690 = vld [vmem:[#allocation10 + $0x170] sm:$0xf]
    %v4691 = vld [vmem:[#allocation10 + $0x174] sm:$0xff]
    %v4692 = vld [vmem:[#allocation10 + $0x17c] sm:$0xf]
    %v4693 = vpack.c.bf16 %v4627, %v4625
    %v4694 = vpack.c.bf16 %v4628, %v4626
    %v4696 = vperm.slane %v147, 0
    %v4697 = vperm.slane %v147, 1
    %v4698 = vperm.slane %v147, 2
    %v4766 = vunpack.c.l.b16 %v4629
    %v4767 = vunpack.c.h.b16 %v4629
    %v4768 = vunpack.c.l.b16 %v4630
    %v4769 = vunpack.c.l.b16 %v4631
    %v4770 = vunpack.c.h.b16 %v4631
    %v4771 = vunpack.c.l.b16 %v4632
    %v4772 = vunpack.c.l.b16 %v4633
    %v4773 = vunpack.c.h.b16 %v4633
    %v4774 = vunpack.c.l.b16 %v4634
    %v4775 = vunpack.c.l.b16 %v4635
    %v4776 = vunpack.c.h.b16 %v4635
    %v4777 = vunpack.c.l.b16 %v4636
    %v4778 = vunpack.c.l.b16 %v4637
    %v4779 = vunpack.c.h.b16 %v4637
    %v4780 = vunpack.c.l.b16 %v4638
    %v4781 = vunpack.c.l.b16 %v4639
    %v4782 = vunpack.c.h.b16 %v4639
    %v4783 = vunpack.c.l.b16 %v4640
    %v4784 = vunpack.c.l.b16 %v4641
    %v4785 = vunpack.c.h.b16 %v4641
    %v4786 = vunpack.c.l.b16 %v4642
    %v4787 = vunpack.c.l.b16 %v4643
    %v4788 = vunpack.c.h.b16 %v4643
    %v4789 = vunpack.c.l.b16 %v4644
    %v4790 = vunpack.c.l.b16 %v4645
    %v4791 = vunpack.c.h.b16 %v4645
    %v4792 = vunpack.c.l.b16 %v4646
    %v4793 = vunpack.c.l.b16 %v4647
    %v4794 = vunpack.c.h.b16 %v4647
    %v4795 = vunpack.c.l.b16 %v4648
    %v4796 = vunpack.c.l.b16 %v4649
    %v4797 = vunpack.c.h.b16 %v4649
    %v4798 = vunpack.c.l.b16 %v4650
    %v4799 = vunpack.c.l.b16 %v4651
    %v4800 = vunpack.c.h.b16 %v4651
    %v4801 = vunpack.c.l.b16 %v4652
    %v4802 = vunpack.c.l.b16 %v4653
    %v4803 = vunpack.c.h.b16 %v4653
    %v4804 = vunpack.c.l.b16 %v4654
    %v4805 = vunpack.c.l.b16 %v4655
    %v4806 = vunpack.c.h.b16 %v4655
    %v4807 = vunpack.c.l.b16 %v4656
    %v4808 = vunpack.c.l.b16 %v4657
    %v4809 = vunpack.c.h.b16 %v4657
    %v4810 = vunpack.c.l.b16 %v4658
    %v4811 = vunpack.c.l.b16 %v4659
    %v4812 = vunpack.c.h.b16 %v4659
    %v4813 = vunpack.c.l.b16 %v4660
    %v4814 = vunpack.c.l.b16 %v4661
    %v4815 = vunpack.c.h.b16 %v4661
    %v4816 = vunpack.c.l.b16 %v4662
    %v4817 = vunpack.c.l.b16 %v4663
    %v4818 = vunpack.c.h.b16 %v4663
    %v4819 = vunpack.c.l.b16 %v4664
    %v4820 = vunpack.c.l.b16 %v4665
    %v4821 = vunpack.c.h.b16 %v4665
    %v4822 = vunpack.c.l.b16 %v4666
    %v4823 = vunpack.c.l.b16 %v4667
    %v4824 = vunpack.c.h.b16 %v4667
    %v4825 = vunpack.c.l.b16 %v4668
    %v4826 = vunpack.c.l.b16 %v4669
    %v4827 = vunpack.c.h.b16 %v4669
    %v4828 = vunpack.c.l.b16 %v4670
    %v4829 = vunpack.c.l.b16 %v4671
    %v4830 = vunpack.c.h.b16 %v4671
    %v4831 = vunpack.c.l.b16 %v4672
    %v4832 = vunpack.c.l.b16 %v4673
    %v4833 = vunpack.c.h.b16 %v4673
    %v4834 = vunpack.c.l.b16 %v4674
    %v4835 = vunpack.c.l.b16 %v4675
    %v4836 = vunpack.c.h.b16 %v4675
    %v4837 = vunpack.c.l.b16 %v4676
    %v4838 = vunpack.c.l.b16 %v4677
    %v4839 = vunpack.c.h.b16 %v4677
    %v4840 = vunpack.c.l.b16 %v4678
    %v4841 = vunpack.c.l.b16 %v4679
    %v4842 = vunpack.c.h.b16 %v4679
    %v4843 = vunpack.c.l.b16 %v4680
    %v4844 = vunpack.c.l.b16 %v4681
    %v4845 = vunpack.c.h.b16 %v4681
    %v4846 = vunpack.c.l.b16 %v4682
    %v4847 = vunpack.c.l.b16 %v4683
    %v4848 = vunpack.c.h.b16 %v4683
    %v4849 = vunpack.c.l.b16 %v4684
    %v4850 = vunpack.c.l.b16 %v4685
    %v4851 = vunpack.c.h.b16 %v4685
    %v4852 = vunpack.c.l.b16 %v4686
    %v4853 = vunpack.c.l.b16 %v4687
    %v4854 = vunpack.c.h.b16 %v4687
    %v4855 = vunpack.c.l.b16 %v4688
    %v4856 = vunpack.c.l.b16 %v4689
    %v4857 = vunpack.c.h.b16 %v4689
    %v4858 = vunpack.c.l.b16 %v4690
    %v4859 = vunpack.c.l.b16 %v4691
    %v4860 = vunpack.c.h.b16 %v4691
    %v4861 = vunpack.c.l.b16 %v4692
    %v4862 = vpack.c.b16 %v4769, %v4766
    %v4863 = vpack.c.b16 %v4770, %v4767
    %v4864 = vpack.c.b16 %v4771, %v4768
    %v4865 = vpack.c.b16 %v4775, %v4772
    %v4866 = vpack.c.b16 %v4776, %v4773
    %v4867 = vpack.c.b16 %v4777, %v4774
    %v4868 = vpack.c.b16 %v4781, %v4778
    %v4869 = vpack.c.b16 %v4782, %v4779
    %v4870 = vpack.c.b16 %v4783, %v4780
    %v4871 = vpack.c.b16 %v4787, %v4784
    %v4872 = vpack.c.b16 %v4788, %v4785
    %v4873 = vpack.c.b16 %v4789, %v4786
    %v4874 = vpack.c.b16 %v4793, %v4790
    %v4875 = vpack.c.b16 %v4794, %v4791
    %v4876 = vpack.c.b16 %v4795, %v4792
    %v4877 = vpack.c.b16 %v4799, %v4796
    %v4878 = vpack.c.b16 %v4800, %v4797
    %v4879 = vpack.c.b16 %v4801, %v4798
    %v4880 = vpack.c.b16 %v4805, %v4802
    %v4881 = vpack.c.b16 %v4806, %v4803
    %v4882 = vpack.c.b16 %v4807, %v4804
    %v4883 = vpack.c.b16 %v4811, %v4808
    %v4884 = vpack.c.b16 %v4812, %v4809
    %v4885 = vpack.c.b16 %v4813, %v4810
    %v4886 = vpack.c.b16 %v4817, %v4814
    %v4887 = vpack.c.b16 %v4818, %v4815
    %v4888 = vpack.c.b16 %v4819, %v4816
    %v4889 = vpack.c.b16 %v4823, %v4820
    %v4890 = vpack.c.b16 %v4824, %v4821
    %v4891 = vpack.c.b16 %v4825, %v4822
    %v4892 = vpack.c.b16 %v4829, %v4826
    %v4893 = vpack.c.b16 %v4830, %v4827
    %v4894 = vpack.c.b16 %v4831, %v4828
    %v4895 = vpack.c.b16 %v4835, %v4832
    %v4896 = vpack.c.b16 %v4836, %v4833
    %v4897 = vpack.c.b16 %v4837, %v4834
    %v4898 = vpack.c.b16 %v4841, %v4838
    %v4899 = vpack.c.b16 %v4842, %v4839
    %v4900 = vpack.c.b16 %v4843, %v4840
    %v4901 = vpack.c.b16 %v4847, %v4844
    %v4902 = vpack.c.b16 %v4848, %v4845
    %v4903 = vpack.c.b16 %v4849, %v4846
    %v4904 = vpack.c.b16 %v4853, %v4850
    %v4905 = vpack.c.b16 %v4854, %v4851
    %v4906 = vpack.c.b16 %v4855, %v4852
    %v4907 = vpack.c.b16 %v4859, %v4856
    %v4908 = vpack.c.b16 %v4860, %v4857
    %v4909 = vpack.c.b16 %v4861, %v4858
    %4958 = vmatpush.bf16.msra.mxu0 %v4883
    %4959 = vmatpush.bf16.msra.mxu0 %v4880
    %4960 = vmatpush.bf16.msra.mxu0 %v4877
    %4961 = vmatpush.bf16.msra.mxu0 %v4874
    %4962 = vmatpush.bf16.msra.mxu0 %v4871
    %4963 = vmatpush.bf16.msra.mxu0 %v4868
    %4964 = vmatpush.bf16.msra.mxu0 %v4865
    %4965 = vmatpush.bf16.msra.mxu0 %v4862
    %4966 = vmatmul.bf16.gmra.mxu0 %v4693
    %v4967 = vpop.f32.mrf.mxu0
    %v4968 = vadd.f32 %v4696, %v4967
    %v4969 = vpop.f32.mrf.mxu0
    %v4970 = vadd.f32 %v4696, %v4969
    %4971 = vdwg.mxu0
    %4972 = vmatpush.bf16.msra.mxu0 %v4907
    %4973 = vmatpush.bf16.msra.mxu0 %v4904
    %4974 = vmatpush.bf16.msra.mxu0 %v4901
    %4975 = vmatpush.bf16.msra.mxu0 %v4898
    %4976 = vmatpush.bf16.msra.mxu0 %v4895
    %4977 = vmatpush.bf16.msra.mxu0 %v4892
    %4978 = vmatpush.bf16.msra.mxu0 %v4889
    %4979 = vmatpush.bf16.msra.mxu0 %v4886
    %4980 = vmatmul.bf16.gmra.mxu0 %v4694
    %v4981 = vpop.f32.mrf.mxu0
    %v4982 = vadd.f32 %v4968, %v4981
    %v4983 = vpop.f32.mrf.mxu0
    %v4984 = vadd.f32 %v4970, %v4983
    %4985 = vdwg.mxu0
    %4986 = vmatpush.bf16.msra.mxu0 %v4884
    %4987 = vmatpush.bf16.msra.mxu0 %v4881
    %4988 = vmatpush.bf16.msra.mxu0 %v4878
    %4989 = vmatpush.bf16.msra.mxu0 %v4875
    %4990 = vmatpush.bf16.msra.mxu0 %v4872
    %4991 = vmatpush.bf16.msra.mxu0 %v4869
    %4992 = vmatpush.bf16.msra.mxu0 %v4866
    %4993 = vmatpush.bf16.msra.mxu0 %v4863
    %4994 = vmatmul.bf16.gmra.mxu0 %v4693
    %v4995 = vpop.f32.mrf.mxu0
    %v4996 = vadd.f32 %v4697, %v4995
    %v4997 = vpop.f32.mrf.mxu0
    %v4998 = vadd.f32 %v4697, %v4997
    %4999 = vdwg.mxu0
    %5000 = vmatpush.bf16.msra.mxu0 %v4908
    %5001 = vmatpush.bf16.msra.mxu0 %v4905
    %5002 = vmatpush.bf16.msra.mxu0 %v4902
    %5003 = vmatpush.bf16.msra.mxu0 %v4899
    %5004 = vmatpush.bf16.msra.mxu0 %v4896
    %5005 = vmatpush.bf16.msra.mxu0 %v4893
    %5006 = vmatpush.bf16.msra.mxu0 %v4890
    %5007 = vmatpush.bf16.msra.mxu0 %v4887
    %5008 = vmatmul.bf16.gmra.mxu0 %v4694
    %v5009 = vpop.f32.mrf.mxu0
    %v5010 = vadd.f32 %v4996, %v5009
    %v5011 = vpop.f32.mrf.mxu0
    %v5012 = vadd.f32 %v4998, %v5011
    %5013 = vdwg.mxu0
    %5014 = vmatpush.bf16.msra.mxu0 %v4885
    %5015 = vmatpush.bf16.msra.mxu0 %v4882
    %5016 = vmatpush.bf16.msra.mxu0 %v4879
    %5017 = vmatpush.bf16.msra.mxu0 %v4876
    %5018 = vmatpush.bf16.msra.mxu0 %v4873
    %5019 = vmatpush.bf16.msra.mxu0 %v4870
    %5020 = vmatpush.bf16.msra.mxu0 %v4867
    %5021 = vmatpush.bf16.msra.mxu0 %v4864
    %5022 = vmatmul.bf16.gmra.mxu0 %v4693
    %v5023 = vpop.f32.mrf.mxu0
    %v5024 = vadd.f32 %v4698, %v5023
    %v5025 = vpop.f32.mrf.mxu0
    %v5026 = vadd.f32 %v4698, %v5025
    %5027 = vdwg.mxu0
    %5028 = vmatpush.bf16.msra.mxu0 %v4909
    %5029 = vmatpush.bf16.msra.mxu0 %v4906
    %5030 = vmatpush.bf16.msra.mxu0 %v4903
    %5031 = vmatpush.bf16.msra.mxu0 %v4900
    %5032 = vmatpush.bf16.msra.mxu0 %v4897
    %5033 = vmatpush.bf16.msra.mxu0 %v4894
    %5034 = vmatpush.bf16.msra.mxu0 %v4891
    %5035 = vmatpush.bf16.msra.mxu0 %v4888
    %5036 = vmatmul.bf16.gmra.mxu0 %v4694
    %v5037 = vpop.f32.mrf.mxu0
    %v5038 = vadd.f32 %v5024, %v5037
    %v5039 = vpop.f32.mrf.mxu0
    %v5040 = vadd.f32 %v5026, %v5039
    %5041 = vdwg.mxu0
    %5042 = vst [vmem:[%s9] sm:$0xff] %v4982
    %5043 = vst [vmem:[%s9 + $0x8] sm:$0xff] %v5010
    %5044 = vst [vmem:[%s9 + $0x10] sm:$0xff] %v5038
    %5045 = vst [vmem:[%s9 + $0x18] sm:$0xff] %v4984
    %5046 = vst [vmem:[%s9 + $0x20] sm:$0xff] %v5012
    %5047 = vst [vmem:[%s9 + $0x28] sm:$0xff] %v5040
    // Predicated region
    $region66: #{coeffs_forward.1} parent=1 // pred_check
      _
    $region67: #{coeffs_forward.1} parent=1 // pred_check_branch
      %5049 = sbr.rel (0) target = $region69
    $region68: #{coeffs_forward.1} parent=1 // pred_region
      _
    $region69: #{coeffs_forward.1} parent=1 // pred_fallthru
      _
    // Predicated region
    $region70: #{coeffs_forward.1} parent=1 // pred_check
      _
    $region71: #{coeffs_forward.1} parent=1 // pred_check_branch
      %5051 = sbr.rel (0) target = $region73
    $region72: #{coeffs_forward.1} parent=1 // pred_region
      _
    $region73: #{coeffs_forward.1} parent=1 // pred_fallthru
      _
    %5052 = vsyncpa [#allocation3], 1
    %5053 = vsyncpa [#allocation5], 1
    %5054 = vsyncpa [#allocation8], 1
    %5055 = vsyncpa [#allocation11], 1

</llo_original>
